<compile_context>
chip_gen: v6e
topology: v6e:2x2x1
jax: 0.10.0
libtpu: 0.0.40
codegen_flags: <defaults>
</compile_context>

<pallas_src>
import jax
import jax.numpy as jnp
import numpy as np
from jax.experimental import pallas as pl

# ----------------------------- model config ---------------------------------
EMBED_DIM = 32        # embedding_dim
FFN_DIM = 64          # ffn_embedding_dim
NUM_HEADS = 4         # num_attention_heads
HEAD_DIM = EMBED_DIM // NUM_HEADS
SCALE = HEAD_DIM ** -0.5
LN_EPS = 1e-5         # torch.nn.LayerNorm default

SEQ_LEN = 8
BATCH = 2
LANES = 128           # TPU lane width (same on v5e / v6e / v7x)


def _layer_norm(x, gamma, beta):
    mean = jnp.mean(x, axis=-1, keepdims=True)
    var = jnp.mean((x - mean) ** 2, axis=-1, keepdims=True)
    inv = jax.lax.rsqrt(var + LN_EPS)
    return (x - mean) * inv * gamma + beta


# ----------------------------- Pallas kernel ---------------------------------
def _encoder_layer_kernel(
    x_ref,              # (B, T, C)
    wqkv_ref,           # (3*B*H, C, hd)  head-major, q part pre-scaled
    bqkv_ref,           # (3*B*H, 1, hd)
    wo_ref,             # (B*H, hd, C)    out-proj split per head
    bo_ref,             # (1, C)
    ln1_g_ref, ln1_b_ref,       # (1, C)
    w1_ref, b1_ref,             # (C, F), (1, F)
    w2_ref, b2_ref,             # (F, C), (1, C)
    ln2_g_ref, ln2_b_ref,       # (1, C)
    o_ref,              # (P, 128) lane-dense packed output
):
    B, T, C = x_ref.shape
    G3 = wqkv_ref.shape[0]
    G = G3 // 3                 # B * H groups
    H = G // B
    R = B * T

    x = x_ref[...]                              # f32 already; no astype needed
    x2d = x.reshape(R, C)                       # leading-dim merge only

    # ---- fused, head-major QKV projection: one batched einsum, one bias add
    xg = jnp.broadcast_to(x[:, None], (B, H, T, C)).reshape(G, T, C)
    xg3 = jnp.broadcast_to(xg[None], (3, G, T, C)).reshape(G3, T, C)
    qkv = jnp.einsum("gtc,gcd->gtd", xg3, wqkv_ref[...],
                     preferred_element_type=jnp.float32) + bqkv_ref[...]
    q = qkv[:G]                 # (G, T, hd) -- leading-dim slices only,
    k = qkv[G:2 * G]            # no lane shuffles / no per-head lane slicing
    v = qkv[2 * G:]

    # ---- self attention, heads batched along the leading axis ----
    s = jnp.einsum("gtd,gsd->gts", q, k, preferred_element_type=jnp.float32)
    s = s - jnp.max(s, axis=-1, keepdims=True)
    p = jnp.exp(s)
    p = p * pl.reciprocal(jnp.sum(p, axis=-1, keepdims=True), approx=True)
    oh = jnp.einsum("gts,gsd->gtd", p, v, preferred_element_type=jnp.float32)

    # per-head partial out-projection, summed over heads (replaces concat)
    part = jnp.einsum("gtd,gde->gte", oh, wo_ref[...],
                      preferred_element_type=jnp.float32)          # (G, T, C)
    attn = part.reshape(B, H, T, C).sum(axis=1).reshape(R, C) + bo_ref[...]

    # dropout1 identity in eval mode
    x1 = _layer_norm(x2d + attn, ln1_g_ref[...], ln1_b_ref[...])

    # ---- feed-forward (activation_fn = relu) ----
    h = jnp.dot(x1, w1_ref[...], preferred_element_type=jnp.float32) + b1_ref[...]
    h = jnp.maximum(h, 0.0)
    h = jnp.dot(h, w2_ref[...], preferred_element_type=jnp.float32) + b2_ref[...]
    # dropout2 / dropout3 identity in eval mode
    y = _layer_norm(x1 + h, ln2_g_ref[...], ln2_b_ref[...])        # (R, C)

    # ---- lane-dense packed store: (R, C) -> (P, 128), full-width vst ----
    P, lanes = o_ref.shape
    rows_per_pack = lanes // C
    assert P * rows_per_pack == R
    packed = jnp.concatenate(
        [y[j * P:(j + 1) * P, :] for j in range(rows_per_pack)], axis=-1)
    o_ref[...] = packed.astype(o_ref.dtype)


# ----------------------------- wrapper ---------------------------------------
@jax.jit
def transformer_sentence_encoder_layer(x, params):
    """x: (B, T, C) float32 batch-major.  Returns (y, None) matching (x, attn).

    fairseq feeds (T, B, C); transpose in glue code when integrating.
    """
    B, T, C = x.shape
    H = NUM_HEADS
    hd = C // H

    # --- param prep (pure layout plumbing, done wrapper-side in XLA) ---
    def head_major(wt):                     # (C, H*hd) -> (H, C, hd)
        return wt.reshape(C, H, hd).transpose(1, 0, 2)

    def tile_b(a):                          # tile head-major tensor over batch
        return jnp.tile(a, (B,) + (1,) * (a.ndim - 1))

    wq_h = head_major(params["wq_t"]) * SCALE      # fold q scaling into W, b
    wk_h = head_major(params["wk_t"])
    wv_h = head_major(params["wv_t"])
    bq_h = params["bq"].reshape(H, 1, hd) * SCALE
    bk_h = params["bk"].reshape(H, 1, hd)
    bv_h = params["bv"].reshape(H, 1, hd)

    wqkv_g = jnp.concatenate([tile_b(wq_h), tile_b(wk_h), tile_b(wv_h)], 0)
    bqkv_g = jnp.concatenate([tile_b(bq_h), tile_b(bk_h), tile_b(bv_h)], 0)
    wo_g = tile_b(params["wo_t"].reshape(H, hd, C))           # (B*H, hd, C)

    # lane-dense packed output layout: (P, 128) with P = B*T*C / 128
    assert LANES % C == 0 and (B * T) % (LANES // C) == 0
    rows_per_pack = LANES // C
    P = (B * T) // rows_per_pack

    packed = pl.pallas_call(
        _encoder_layer_kernel,
        out_shape=jax.ShapeDtypeStruct((P, LANES), x.dtype),
    )(
        x, wqkv_g, bqkv_g, wo_g, params["bo"],
        params["ln1_g"], params["ln1_b"],
        params["w1_t"], params["b1"],
        params["w2_t"], params["b2"],
        params["ln2_g"], params["ln2_b"],
    )

    # unpack (4, 128) slab -> (B, T, C); packed[r, j*C:(j+1)*C] = y[j*P + r]
    y = packed.reshape(P, rows_per_pack, C).transpose(1, 0, 2).reshape(B, T, C)
    # need_weights=False in the PyTorch default path -> attn is None
    return y, None


# ----------------------------- pure-JAX reference ----------------------------
def reference_layer(x, params):
    def linear(v, wt, b):
        return v @ wt + b

    q = linear(x, params["wq_t"], params["bq"]) * SCALE
    k = linear(x, params["wk_t"], params["bk"])
    v = linear(x, params["wv_t"], params["bv"])
    B, T, C = x.shape

    def split(a):  # (B, T, C) -> (B, H, T, hd)
        return a.reshape(B, T, NUM_HEADS, HEAD_DIM).transpose(0, 2, 1, 3)

    qh, kh, vh = split(q), split(k), split(v)
    scores = jnp.einsum("bhqd,bhkd->bhqk", qh, kh)
    p = jax.nn.softmax(scores, axis=-1)
    o = jnp.einsum("bhqk,bhkd->bhqd", p, vh)
    o = o.transpose(0, 2, 1, 3).reshape(B, T, C)
    attn_out = linear(o, params["wo_t"], params["bo"])

    x1 = x + attn_out
    x1 = _layer_norm(x1, params["ln1_g"], params["ln1_b"])
    h = jnp.maximum(linear(x1, params["w1_t"], params["b1"]), 0.0)
    h = linear(h, params["w2_t"], params["b2"])
    x2 = x1 + h
    x2 = _layer_norm(x2, params["ln2_g"], params["ln2_b"])
    return x2


# ----------------------------- param init ------------------------------------
def init_params(key):
    C, F = EMBED_DIM, FFN_DIM
    ks = jax.random.split(key, 8)
    scale = 0.02

    def w(k, shape):
        return (scale * jax.random.normal(k, shape)).astype(jnp.float32)

    params = {
        # stored pre-transposed: y = x @ W^T + b  ->  x @ wt + b
        "wq_t": w(ks[0], (C, C)), "bq": w(ks[1], (1, C)),
        "wk_t": w(ks[2], (C, C)), "bk": jnp.zeros((1, C), jnp.float32),
        "wv_t": w(ks[3], (C, C)), "bv": jnp.zeros((1, C), jnp.float32),
        "wo_t": w(ks[4], (C, C)), "bo": jnp.zeros((1, C), jnp.float32),
        "ln1_g": jnp.ones((1, C), jnp.float32),
        "ln1_b": jnp.zeros((1, C), jnp.float32),
        "w1_t": w(ks[5], (C, F)), "b1": jnp.zeros((1, F), jnp.float32),
        "w2_t": w(ks[6], (F, C)), "b2": jnp.zeros((1, C), jnp.float32),
        "ln2_g": jnp.ones((1, C), jnp.float32),
        "ln2_b": jnp.zeros((1, C), jnp.float32),
    }
    return params


if __name__ == "__main__":
    key = jax.random.PRNGKey(0)
    kx, kp = jax.random.split(key)
    x = jax.random.normal(kx, (BATCH, SEQ_LEN, EMBED_DIM), dtype=jnp.float32)
    params = init_params(kp)

    y, attn = transformer_sentence_encoder_layer(x, params)
    y = jax.block_until_ready(y)

    y_ref = jax.block_until_ready(reference_layer(x, params))
    # atol slightly relaxed vs. 1e-4 to leave headroom for the EUP
    # approximate-reciprocal softmax denominator (pl.reciprocal approx=True);
    # the attention branch is small vs. the residual, so error stays ~1e-5.
    np.testing.assert_allclose(np.asarray(y), np.asarray(y_ref),
                               rtol=1e-4, atol=2e-4)
    print("KERNEL_OK")
</pallas_src>

<mosaic_0001>
module attributes {stable_mosaic.version = 11 : i64} {
  func.func @_encoder_layer_kernel(%arg0: memref<2x8x32xf32, #tpu.memory_space<vmem>>, %arg1: memref<24x32x8xf32, #tpu.memory_space<vmem>>, %arg2: memref<24x1x8xf32, #tpu.memory_space<vmem>>, %arg3: memref<8x8x32xf32, #tpu.memory_space<vmem>>, %arg4: memref<1x32xf32, #tpu.memory_space<vmem>>, %arg5: memref<1x32xf32, #tpu.memory_space<vmem>>, %arg6: memref<1x32xf32, #tpu.memory_space<vmem>>, %arg7: memref<32x64xf32, #tpu.memory_space<vmem>>, %arg8: memref<1x64xf32, #tpu.memory_space<vmem>>, %arg9: memref<64x32xf32, #tpu.memory_space<vmem>>, %arg10: memref<1x32xf32, #tpu.memory_space<vmem>>, %arg11: memref<1x32xf32, #tpu.memory_space<vmem>>, %arg12: memref<1x32xf32, #tpu.memory_space<vmem>>, %arg13: memref<4x128xf32, #tpu.memory_space<vmem>>) attributes {dimension_semantics = [], scalar_prefetch = 0 : i64, scratch_operands = 0 : i64, tpu.core_type = #tpu.core_type<tc>} {
    %c0 = arith.constant 0 : index
    %c0_0 = arith.constant 0 : index
    %c0_1 = arith.constant 0 : index
    %0 = vector.load %arg0[%c0, %c0_0, %c0_1] : memref<2x8x32xf32, #tpu.memory_space<vmem>>, vector<2x8x32xf32>
    %1 = vector.shape_cast %0 : vector<2x8x32xf32> to vector<16x32xf32>
    %2 = vector.shape_cast %0 : vector<2x8x32xf32> to vector<2x1x8x32xf32>
    %3 = vector.shape_cast %2 : vector<2x1x8x32xf32> to vector<2x1x8x32xf32>
    %4 = vector.broadcast %3 : vector<2x1x8x32xf32> to vector<2x4x8x32xf32>
    %5 = vector.shape_cast %4 : vector<2x4x8x32xf32> to vector<8x8x32xf32>
    %6 = vector.shape_cast %5 : vector<8x8x32xf32> to vector<1x8x8x32xf32>
    %7 = vector.shape_cast %6 : vector<1x8x8x32xf32> to vector<1x8x8x32xf32>
    %8 = vector.broadcast %7 : vector<1x8x8x32xf32> to vector<3x8x8x32xf32>
    %9 = vector.shape_cast %8 : vector<3x8x8x32xf32> to vector<24x8x32xf32>
    %c0_2 = arith.constant 0 : index
    %c0_3 = arith.constant 0 : index
    %c0_4 = arith.constant 0 : index
    %10 = vector.load %arg1[%c0_2, %c0_3, %c0_4] : memref<24x32x8xf32, #tpu.memory_space<vmem>>, vector<24x32x8xf32>
    "tpu.trace_start"() <{level = 10 : i32, message = "gtc,gcd->gtd"}> : () -> ()
    %cst = arith.constant dense<0.000000e+00> : vector<24x8x8xf32>
    %11 = tpu.matmul %9, %10, %cst {dimension_numbers = #tpu.dot_dimension_numbers<[2], [1], [1], [2], [0, 0, 0, 1, 1, 2], [0], [0]>} : vector<24x8x32xf32>, vector<24x32x8xf32>, vector<24x8x8xf32> -> vector<24x8x8xf32>
    "tpu.trace_stop"() : () -> ()
    %c0_5 = arith.constant 0 : index
    %c0_6 = arith.constant 0 : index
    %c0_7 = arith.constant 0 : index
    %12 = vector.load %arg2[%c0_5, %c0_6, %c0_7] : memref<24x1x8xf32, #tpu.memory_space<vmem>>, vector<24x1x8xf32>
    %13 = vector.broadcast %12 : vector<24x1x8xf32> to vector<24x8x8xf32>
    %14 = arith.addf %11, %13 : vector<24x8x8xf32>
    %15 = vector.extract_strided_slice %14 {offsets = [0, 0, 0], sizes = [8, 8, 8], strides = [1, 1, 1]} : vector<24x8x8xf32> to vector<8x8x8xf32>
    %16 = vector.extract_strided_slice %14 {offsets = [8, 0, 0], sizes = [8, 8, 8], strides = [1, 1, 1]} : vector<24x8x8xf32> to vector<8x8x8xf32>
    %17 = vector.extract_strided_slice %14 {offsets = [16, 0, 0], sizes = [8, 8, 8], strides = [1, 1, 1]} : vector<24x8x8xf32> to vector<8x8x8xf32>
    "tpu.trace_start"() <{level = 10 : i32, message = "gtd,gsd->gts"}> : () -> ()
    %cst_8 = arith.constant dense<0.000000e+00> : vector<8x8x8xf32>
    %18 = tpu.matmul %15, %16, %cst_8 {dimension_numbers = #tpu.dot_dimension_numbers<[2], [2], [1], [1], [0, 0, 0, 1, 1, 1], [0], [0]>} : vector<8x8x8xf32>, vector<8x8x8xf32>, vector<8x8x8xf32> -> vector<8x8x8xf32>
    "tpu.trace_stop"() : () -> ()
    %cst_9 = arith.constant dense<0xFF800000> : vector<8x8xf32>
    %19 = vector.multi_reduction <maximumf>, %18, %cst_9 [2] : vector<8x8x8xf32> to vector<8x8xf32>
    %20 = vector.shape_cast %19 : vector<8x8xf32> to vector<8x8x1xf32>
    %21 = vector.broadcast %20 : vector<8x8x1xf32> to vector<8x8x8xf32>
    %22 = arith.subf %18, %21 : vector<8x8x8xf32>
    %23 = math.exp %22 : vector<8x8x8xf32>
    %cst_10 = arith.constant dense<0.000000e+00> : vector<8x8xf32>
    %24 = vector.multi_reduction <add>, %23, %cst_10 [2] : vector<8x8x8xf32> to vector<8x8xf32>
    %25 = vector.shape_cast %24 : vector<8x8xf32> to vector<8x8x1xf32>
    %26 = tpu.reciprocal %25 {approx = true} : vector<8x8x1xf32> -> vector<8x8x1xf32>
    %27 = vector.broadcast %26 : vector<8x8x1xf32> to vector<8x8x8xf32>
    %28 = arith.mulf %23, %27 : vector<8x8x8xf32>
    "tpu.trace_start"() <{level = 10 : i32, message = "gts,gsd->gtd"}> : () -> ()
    %cst_11 = arith.constant dense<0.000000e+00> : vector<8x8x8xf32>
    %29 = tpu.matmul %28, %17, %cst_11 {dimension_numbers = #tpu.dot_dimension_numbers<[2], [1], [1], [2], [0, 0, 0, 1, 1, 2], [0], [0]>} : vector<8x8x8xf32>, vector<8x8x8xf32>, vector<8x8x8xf32> -> vector<8x8x8xf32>
    "tpu.trace_stop"() : () -> ()
    %c0_12 = arith.constant 0 : index
    %c0_13 = arith.constant 0 : index
    %c0_14 = arith.constant 0 : index
    %30 = vector.load %arg3[%c0_12, %c0_13, %c0_14] : memref<8x8x32xf32, #tpu.memory_space<vmem>>, vector<8x8x32xf32>
    "tpu.trace_start"() <{level = 10 : i32, message = "gtd,gde->gte"}> : () -> ()
    %cst_15 = arith.constant dense<0.000000e+00> : vector<8x8x32xf32>
    %31 = tpu.matmul %29, %30, %cst_15 {dimension_numbers = #tpu.dot_dimension_numbers<[2], [1], [1], [2], [0, 0, 0, 1, 1, 2], [0], [0]>} : vector<8x8x8xf32>, vector<8x8x32xf32>, vector<8x8x32xf32> -> vector<8x8x32xf32>
    "tpu.trace_stop"() : () -> ()
    %32 = vector.shape_cast %31 : vector<8x8x32xf32> to vector<2x4x8x32xf32>
    %cst_16 = arith.constant dense<0.000000e+00> : vector<2x8x32xf32>
    %33 = vector.multi_reduction <add>, %32, %cst_16 [1] : vector<2x4x8x32xf32> to vector<2x8x32xf32>
    %34 = vector.shape_cast %33 : vector<2x8x32xf32> to vector<16x32xf32>
    %c0_17 = arith.constant 0 : index
    %c0_18 = arith.constant 0 : index
    %35 = vector.load %arg4[%c0_17, %c0_18] : memref<1x32xf32, #tpu.memory_space<vmem>>, vector<1x32xf32>
    %36 = vector.broadcast %35 : vector<1x32xf32> to vector<16x32xf32>
    %37 = arith.addf %34, %36 : vector<16x32xf32>
    %38 = arith.addf %1, %37 : vector<16x32xf32>
    %c0_19 = arith.constant 0 : index
    %c0_20 = arith.constant 0 : index
    %39 = vector.load %arg5[%c0_19, %c0_20] : memref<1x32xf32, #tpu.memory_space<vmem>>, vector<1x32xf32>
    %c0_21 = arith.constant 0 : index
    %c0_22 = arith.constant 0 : index
    %40 = vector.load %arg6[%c0_21, %c0_22] : memref<1x32xf32, #tpu.memory_space<vmem>>, vector<1x32xf32>
    %cst_23 = arith.constant dense<0.000000e+00> : vector<16xf32>
    %41 = vector.multi_reduction <add>, %38, %cst_23 [1] : vector<16x32xf32> to vector<16xf32>
    %42 = vector.shape_cast %41 : vector<16xf32> to vector<16x1xf32>
    %cst_24 = arith.constant 3.200000e+01 : f32
    %43 = vector.broadcast %cst_24 : f32 to vector<16x1xf32>
    %44 = arith.divf %42, %43 : vector<16x1xf32>
    %45 = vector.broadcast %44 : vector<16x1xf32> to vector<16x32xf32>
    %46 = arith.subf %38, %45 : vector<16x32xf32>
    %47 = arith.mulf %46, %46 : vector<16x32xf32>
    %cst_25 = arith.constant dense<0.000000e+00> : vector<16xf32>
    %48 = vector.multi_reduction <add>, %47, %cst_25 [1] : vector<16x32xf32> to vector<16xf32>
    %49 = vector.shape_cast %48 : vector<16xf32> to vector<16x1xf32>
    %cst_26 = arith.constant 3.200000e+01 : f32
    %50 = vector.broadcast %cst_26 : f32 to vector<16x1xf32>
    %51 = arith.divf %49, %50 : vector<16x1xf32>
    %cst_27 = arith.constant 9.99999974E-6 : f32
    %52 = vector.broadcast %cst_27 : f32 to vector<16x1xf32>
    %53 = arith.addf %51, %52 : vector<16x1xf32>
    %54 = math.rsqrt %53 : vector<16x1xf32>
    %55 = vector.broadcast %44 : vector<16x1xf32> to vector<16x32xf32>
    %56 = arith.subf %38, %55 : vector<16x32xf32>
    %57 = vector.broadcast %54 : vector<16x1xf32> to vector<16x32xf32>
    %58 = arith.mulf %56, %57 : vector<16x32xf32>
    %59 = vector.broadcast %39 : vector<1x32xf32> to vector<16x32xf32>
    %60 = arith.mulf %58, %59 : vector<16x32xf32>
    %61 = vector.broadcast %40 : vector<1x32xf32> to vector<16x32xf32>
    %62 = arith.addf %60, %61 : vector<16x32xf32>
    %c0_28 = arith.constant 0 : index
    %c0_29 = arith.constant 0 : index
    %63 = vector.load %arg7[%c0_28, %c0_29] : memref<32x64xf32, #tpu.memory_space<vmem>>, vector<32x64xf32>
    %cst_30 = arith.constant dense<0.000000e+00> : vector<16x64xf32>
    %64 = tpu.matmul %62, %63, %cst_30 {dimension_numbers = #tpu.dot_dimension_numbers<[1], [0], [0], [1], [0, 0, 1, 1], [], []>} : vector<16x32xf32>, vector<32x64xf32>, vector<16x64xf32> -> vector<16x64xf32>
    %c0_31 = arith.constant 0 : index
    %c0_32 = arith.constant 0 : index
    %65 = vector.load %arg8[%c0_31, %c0_32] : memref<1x64xf32, #tpu.memory_space<vmem>>, vector<1x64xf32>
    %66 = vector.broadcast %65 : vector<1x64xf32> to vector<16x64xf32>
    %67 = arith.addf %64, %66 : vector<16x64xf32>
    %cst_33 = arith.constant 0.000000e+00 : f32
    %68 = vector.broadcast %cst_33 : f32 to vector<16x64xf32>
    %69 = arith.maximumf %67, %68 : vector<16x64xf32>
    %c0_34 = arith.constant 0 : index
    %c0_35 = arith.constant 0 : index
    %70 = vector.load %arg9[%c0_34, %c0_35] : memref<64x32xf32, #tpu.memory_space<vmem>>, vector<64x32xf32>
    %cst_36 = arith.constant dense<0.000000e+00> : vector<16x32xf32>
    %71 = tpu.matmul %69, %70, %cst_36 {dimension_numbers = #tpu.dot_dimension_numbers<[1], [0], [0], [1], [0, 0, 1, 1], [], []>} : vector<16x64xf32>, vector<64x32xf32>, vector<16x32xf32> -> vector<16x32xf32>
    %c0_37 = arith.constant 0 : index
    %c0_38 = arith.constant 0 : index
    %72 = vector.load %arg10[%c0_37, %c0_38] : memref<1x32xf32, #tpu.memory_space<vmem>>, vector<1x32xf32>
    %73 = vector.broadcast %72 : vector<1x32xf32> to vector<16x32xf32>
    %74 = arith.addf %71, %73 : vector<16x32xf32>
    %75 = arith.addf %62, %74 : vector<16x32xf32>
    %c0_39 = arith.constant 0 : index
    %c0_40 = arith.constant 0 : index
    %76 = vector.load %arg11[%c0_39, %c0_40] : memref<1x32xf32, #tpu.memory_space<vmem>>, vector<1x32xf32>
    %c0_41 = arith.constant 0 : index
    %c0_42 = arith.constant 0 : index
    %77 = vector.load %arg12[%c0_41, %c0_42] : memref<1x32xf32, #tpu.memory_space<vmem>>, vector<1x32xf32>
    %cst_43 = arith.constant dense<0.000000e+00> : vector<16xf32>
    %78 = vector.multi_reduction <add>, %75, %cst_43 [1] : vector<16x32xf32> to vector<16xf32>
    %79 = vector.shape_cast %78 : vector<16xf32> to vector<16x1xf32>
    %cst_44 = arith.constant 3.200000e+01 : f32
    %80 = vector.broadcast %cst_44 : f32 to vector<16x1xf32>
    %81 = arith.divf %79, %80 : vector<16x1xf32>
    %82 = vector.broadcast %81 : vector<16x1xf32> to vector<16x32xf32>
    %83 = arith.subf %75, %82 : vector<16x32xf32>
    %84 = arith.mulf %83, %83 : vector<16x32xf32>
    %cst_45 = arith.constant dense<0.000000e+00> : vector<16xf32>
    %85 = vector.multi_reduction <add>, %84, %cst_45 [1] : vector<16x32xf32> to vector<16xf32>
    %86 = vector.shape_cast %85 : vector<16xf32> to vector<16x1xf32>
    %cst_46 = arith.constant 3.200000e+01 : f32
    %87 = vector.broadcast %cst_46 : f32 to vector<16x1xf32>
    %88 = arith.divf %86, %87 : vector<16x1xf32>
    %cst_47 = arith.constant 9.99999974E-6 : f32
    %89 = vector.broadcast %cst_47 : f32 to vector<16x1xf32>
    %90 = arith.addf %88, %89 : vector<16x1xf32>
    %91 = math.rsqrt %90 : vector<16x1xf32>
    %92 = vector.broadcast %81 : vector<16x1xf32> to vector<16x32xf32>
    %93 = arith.subf %75, %92 : vector<16x32xf32>
    %94 = vector.broadcast %91 : vector<16x1xf32> to vector<16x32xf32>
    %95 = arith.mulf %93, %94 : vector<16x32xf32>
    %96 = vector.broadcast %76 : vector<1x32xf32> to vector<16x32xf32>
    %97 = arith.mulf %95, %96 : vector<16x32xf32>
    %98 = vector.broadcast %77 : vector<1x32xf32> to vector<16x32xf32>
    %99 = arith.addf %97, %98 : vector<16x32xf32>
    %100 = vector.extract_strided_slice %99 {offsets = [0, 0], sizes = [4, 32], strides = [1, 1]} : vector<16x32xf32> to vector<4x32xf32>
    %101 = vector.extract_strided_slice %99 {offsets = [4, 0], sizes = [4, 32], strides = [1, 1]} : vector<16x32xf32> to vector<4x32xf32>
    %102 = vector.extract_strided_slice %99 {offsets = [8, 0], sizes = [4, 32], strides = [1, 1]} : vector<16x32xf32> to vector<4x32xf32>
    %103 = vector.extract_strided_slice %99 {offsets = [12, 0], sizes = [4, 32], strides = [1, 1]} : vector<16x32xf32> to vector<4x32xf32>
    %104 = tpu.concatenate %100, %101, %102, %103 in 1 : vector<4x32xf32>, vector<4x32xf32>, vector<4x32xf32>, vector<4x32xf32> -> vector<4x128xf32>
    %c0_48 = arith.constant 0 : index
    %c0_49 = arith.constant 0 : index
    %105 = vector.load %arg13[%c0_48, %c0_49] : memref<4x128xf32, #tpu.memory_space<vmem>>, vector<4x128xf32>
    tpu.vector_store %arg13[%c0_48, %c0_49], %104 {strides = array<i32>} : memref<4x128xf32, #tpu.memory_space<vmem>>, vector<4x128xf32>,
    return
  }
}

</mosaic_0001>

<llo_original>
// kernel: transformer_sentence_encoder_layer.1
$region0: #{transformer_sentence_encoder_layer.1}
  #allocation0 [shape = 'u32[]', space=smem, size = 0x4, offset = 0x4, fixed_abs, tag = 'smem constant byte address 0x4 - core index']
  #allocation1 [shape = 'u32[144,128]{1,0:T(1,128)}', space=vmem, size = 0x12000, scoped, tag = 'internal scratch']
  %s0 = inlined_call_operand.vmem [shape: f32[2,8,32], index: 0, kind: input, shape index: {}]
  %s1 = inlined_call_operand.vmem [shape: f32[24,32,8], index: 1, kind: input, shape index: {}]
  %s2 = inlined_call_operand.vmem [shape: f32[24,1,8], index: 2, kind: input, shape index: {}]
  %s3 = inlined_call_operand.vmem [shape: f32[8,8,32], index: 3, kind: input, shape index: {}]
  %s4 = inlined_call_operand.vmem [shape: f32[1,32], index: 4, kind: input, shape index: {}]
  %s5 = inlined_call_operand.vmem [shape: f32[1,32], index: 5, kind: input, shape index: {}]
  %s6 = inlined_call_operand.vmem [shape: f32[1,32], index: 6, kind: input, shape index: {}]
  %s7 = inlined_call_operand.vmem [shape: f32[32,64], index: 7, kind: input, shape index: {}]
  %s8 = inlined_call_operand.vmem [shape: f32[1,64], index: 8, kind: input, shape index: {}]
  %s9 = inlined_call_operand.vmem [shape: f32[64,32], index: 9, kind: input, shape index: {}]
  %s10 = inlined_call_operand.vmem [shape: f32[1,32], index: 10, kind: input, shape index: {}]
  %s11 = inlined_call_operand.vmem [shape: f32[1,32], index: 11, kind: input, shape index: {}]
  %s12 = inlined_call_operand.vmem [shape: f32[1,32], index: 12, kind: input, shape index: {}]
  %s13 = inlined_call_operand.vmem [shape: f32[4,128], index: 13, kind: output, shape index: {}]
  %s14 = sld [smem:[#allocation0]]
  $region62: #{transformer_sentence_encoder_layer.1} parent=0
    _
  %s16 = ssub.s32 1, %s14
  %s17 = scalar_select 0, %s16, %s14
  // Predicated region
  $region2: #{transformer_sentence_encoder_layer.1} parent=0 // pred_check
    _
  $region3: #{transformer_sentence_encoder_layer.1} parent=0 // pred_check_branch
    %19 = sbr.rel (0) target = $region5
  $region4: #{transformer_sentence_encoder_layer.1} parent=0 // pred_region
    _
  $region5: #{transformer_sentence_encoder_layer.1} parent=0 // pred_fallthru
    _
  // Predicated region
  $region6: #{transformer_sentence_encoder_layer.1} parent=0 // pred_check
    _
  $region7: #{transformer_sentence_encoder_layer.1} parent=0 // pred_check_branch
    %21 = sbr.rel (0) target = $region9
  $region8: #{transformer_sentence_encoder_layer.1} parent=0 // pred_region
    _
  $region9: #{transformer_sentence_encoder_layer.1} parent=0 // pred_fallthru
    _
  // Predicated region
  $region10: #{transformer_sentence_encoder_layer.1} parent=0 // pred_check
    _
  $region11: #{transformer_sentence_encoder_layer.1} parent=0 // pred_check_branch
    %23 = sbr.rel (0) target = $region13
  $region12: #{transformer_sentence_encoder_layer.1} parent=0 // pred_region
    _
  $region13: #{transformer_sentence_encoder_layer.1} parent=0 // pred_fallthru
    _
  // Predicated region
  $region14: #{transformer_sentence_encoder_layer.1} parent=0 // pred_check
    _
  $region15: #{transformer_sentence_encoder_layer.1} parent=0 // pred_check_branch
    %25 = sbr.rel (0) target = $region17
  $region16: #{transformer_sentence_encoder_layer.1} parent=0 // pred_region
    _
  $region17: #{transformer_sentence_encoder_layer.1} parent=0 // pred_fallthru
    _
  // Predicated region
  $region18: #{transformer_sentence_encoder_layer.1} parent=0 // pred_check
    _
  $region19: #{transformer_sentence_encoder_layer.1} parent=0 // pred_check_branch
    %27 = sbr.rel (0) target = $region21
  $region20: #{transformer_sentence_encoder_layer.1} parent=0 // pred_region
    _
  $region21: #{transformer_sentence_encoder_layer.1} parent=0 // pred_fallthru
    _
  // Predicated region
  $region22: #{transformer_sentence_encoder_layer.1} parent=0 // pred_check
    _
  $region23: #{transformer_sentence_encoder_layer.1} parent=0 // pred_check_branch
    %29 = sbr.rel (0) target = $region25
  $region24: #{transformer_sentence_encoder_layer.1} parent=0 // pred_region
    _
  $region25: #{transformer_sentence_encoder_layer.1} parent=0 // pred_fallthru
    _
  // Predicated region
  $region26: #{transformer_sentence_encoder_layer.1} parent=0 // pred_check
    _
  $region27: #{transformer_sentence_encoder_layer.1} parent=0 // pred_check_branch
    %31 = sbr.rel (0) target = $region29
  $region28: #{transformer_sentence_encoder_layer.1} parent=0 // pred_region
    _
  $region29: #{transformer_sentence_encoder_layer.1} parent=0 // pred_fallthru
    _
  // Predicated region
  $region30: #{transformer_sentence_encoder_layer.1} parent=0 // pred_check
    _
  $region31: #{transformer_sentence_encoder_layer.1} parent=0 // pred_check_branch
    %33 = sbr.rel (0) target = $region33
  $region32: #{transformer_sentence_encoder_layer.1} parent=0 // pred_region
    _
  $region33: #{transformer_sentence_encoder_layer.1} parent=0 // pred_fallthru
    _
  // Predicated region
  $region34: #{transformer_sentence_encoder_layer.1} parent=0 // pred_check
    _
  $region35: #{transformer_sentence_encoder_layer.1} parent=0 // pred_check_branch
    %35 = sbr.rel (0) target = $region37
  $region36: #{transformer_sentence_encoder_layer.1} parent=0 // pred_region
    _
  $region37: #{transformer_sentence_encoder_layer.1} parent=0 // pred_fallthru
    _
  // Predicated region
  $region38: #{transformer_sentence_encoder_layer.1} parent=0 // pred_check
    _
  $region39: #{transformer_sentence_encoder_layer.1} parent=0 // pred_check_branch
    %37 = sbr.rel (0) target = $region41
  $region40: #{transformer_sentence_encoder_layer.1} parent=0 // pred_region
    _
  $region41: #{transformer_sentence_encoder_layer.1} parent=0 // pred_fallthru
    _
  // Predicated region
  $region42: #{transformer_sentence_encoder_layer.1} parent=0 // pred_check
    _
  $region43: #{transformer_sentence_encoder_layer.1} parent=0 // pred_check_branch
    %39 = sbr.rel (0) target = $region45
  $region44: #{transformer_sentence_encoder_layer.1} parent=0 // pred_region
    _
  $region45: #{transformer_sentence_encoder_layer.1} parent=0 // pred_fallthru
    _
  // Predicated region
  $region46: #{transformer_sentence_encoder_layer.1} parent=0 // pred_check
    _
  $region47: #{transformer_sentence_encoder_layer.1} parent=0 // pred_check_branch
    %41 = sbr.rel (0) target = $region49
  $region48: #{transformer_sentence_encoder_layer.1} parent=0 // pred_region
    _
  $region49: #{transformer_sentence_encoder_layer.1} parent=0 // pred_fallthru
    _
  // Predicated region
  $region50: #{transformer_sentence_encoder_layer.1} parent=0 // pred_check
    _
  $region51: #{transformer_sentence_encoder_layer.1} parent=0 // pred_check_branch
    %43 = sbr.rel (0) target = $region53
  $region52: #{transformer_sentence_encoder_layer.1} parent=0 // pred_region
    _
  $region53: #{transformer_sentence_encoder_layer.1} parent=0 // pred_fallthru
    _
  %v44 = vld [vmem:[%s0] sm:$0xff]
  %v45 = vld [vmem:[%s0 + $0x8] sm:$0xff]
  %v46 = vld [vmem:[%s1] sm:$0xff]
  %v47 = vld [vmem:[%s1 + $0x8] sm:$0xff]
  %v48 = vld [vmem:[%s1 + $0x10] sm:$0xff]
  %v49 = vld [vmem:[%s1 + $0x18] sm:$0xff]
  %v50 = vld [vmem:[%s1 + $0x20] sm:$0xff]
  %v51 = vld [vmem:[%s1 + $0x28] sm:$0xff]
  %v52 = vld [vmem:[%s1 + $0x30] sm:$0xff]
  %v53 = vld [vmem:[%s1 + $0x38] sm:$0xff]
  %v54 = vld [vmem:[%s1 + $0x40] sm:$0xff]
  %v55 = vld [vmem:[%s1 + $0x48] sm:$0xff]
  %v56 = vld [vmem:[%s1 + $0x50] sm:$0xff]
  %v57 = vld [vmem:[%s1 + $0x58] sm:$0xff]
  %v58 = vld [vmem:[%s1 + $0x60] sm:$0xff]
  %v59 = vld [vmem:[%s1 + $0x68] sm:$0xff]
  %v60 = vld [vmem:[%s1 + $0x70] sm:$0xff]
  %v61 = vld [vmem:[%s1 + $0x78] sm:$0xff]
  %v62 = vld [vmem:[%s1 + $0x80] sm:$0xff]
  %v63 = vld [vmem:[%s1 + $0x88] sm:$0xff]
  %v64 = vld [vmem:[%s1 + $0x90] sm:$0xff]
  %v65 = vld [vmem:[%s1 + $0x98] sm:$0xff]
  %v66 = vld [vmem:[%s1 + $0xa0] sm:$0xff]
  %v67 = vld [vmem:[%s1 + $0xa8] sm:$0xff]
  %v68 = vld [vmem:[%s1 + $0xb0] sm:$0xff]
  %v69 = vld [vmem:[%s1 + $0xb8] sm:$0xff]
  %v70 = vld [vmem:[%s1 + $0xc0] sm:$0xff]
  %v71 = vld [vmem:[%s1 + $0xc8] sm:$0xff]
  %v72 = vld [vmem:[%s1 + $0xd0] sm:$0xff]
  %v73 = vld [vmem:[%s1 + $0xd8] sm:$0xff]
  %v74 = vld [vmem:[%s1 + $0xe0] sm:$0xff]
  %v75 = vld [vmem:[%s1 + $0xe8] sm:$0xff]
  %v76 = vld [vmem:[%s1 + $0xf0] sm:$0xff]
  %v77 = vld [vmem:[%s1 + $0xf8] sm:$0xff]
  %v78 = vld [vmem:[%s1 + $0x100] sm:$0xff]
  %v79 = vld [vmem:[%s1 + $0x108] sm:$0xff]
  %v80 = vld [vmem:[%s1 + $0x110] sm:$0xff]
  %v81 = vld [vmem:[%s1 + $0x118] sm:$0xff]
  %v82 = vld [vmem:[%s1 + $0x120] sm:$0xff]
  %v83 = vld [vmem:[%s1 + $0x128] sm:$0xff]
  %v84 = vld [vmem:[%s1 + $0x130] sm:$0xff]
  %v85 = vld [vmem:[%s1 + $0x138] sm:$0xff]
  %v86 = vld [vmem:[%s1 + $0x140] sm:$0xff]
  %v87 = vld [vmem:[%s1 + $0x148] sm:$0xff]
  %v88 = vld [vmem:[%s1 + $0x150] sm:$0xff]
  %v89 = vld [vmem:[%s1 + $0x158] sm:$0xff]
  %v90 = vld [vmem:[%s1 + $0x160] sm:$0xff]
  %v91 = vld [vmem:[%s1 + $0x168] sm:$0xff]
  %v92 = vld [vmem:[%s1 + $0x170] sm:$0xff]
  %v93 = vld [vmem:[%s1 + $0x178] sm:$0xff]
  %v94 = vld [vmem:[%s1 + $0x180] sm:$0xff]
  %v95 = vld [vmem:[%s1 + $0x188] sm:$0xff]
  %v96 = vld [vmem:[%s1 + $0x190] sm:$0xff]
  %v97 = vld [vmem:[%s1 + $0x198] sm:$0xff]
  %v98 = vld [vmem:[%s1 + $0x1a0] sm:$0xff]
  %v99 = vld [vmem:[%s1 + $0x1a8] sm:$0xff]
  %v100 = vld [vmem:[%s1 + $0x1b0] sm:$0xff]
  %v101 = vld [vmem:[%s1 + $0x1b8] sm:$0xff]
  %v102 = vld [vmem:[%s1 + $0x1c0] sm:$0xff]
  %v103 = vld [vmem:[%s1 + $0x1c8] sm:$0xff]
  %v104 = vld [vmem:[%s1 + $0x1d0] sm:$0xff]
  %v105 = vld [vmem:[%s1 + $0x1d8] sm:$0xff]
  %v106 = vld [vmem:[%s1 + $0x1e0] sm:$0xff]
  %v107 = vld [vmem:[%s1 + $0x1e8] sm:$0xff]
  %v108 = vld [vmem:[%s1 + $0x1f0] sm:$0xff]
  %v109 = vld [vmem:[%s1 + $0x1f8] sm:$0xff]
  %v110 = vld [vmem:[%s1 + $0x200] sm:$0xff]
  %v111 = vld [vmem:[%s1 + $0x208] sm:$0xff]
  %v112 = vld [vmem:[%s1 + $0x210] sm:$0xff]
  %v113 = vld [vmem:[%s1 + $0x218] sm:$0xff]
  %v114 = vld [vmem:[%s1 + $0x220] sm:$0xff]
  %v115 = vld [vmem:[%s1 + $0x228] sm:$0xff]
  %v116 = vld [vmem:[%s1 + $0x230] sm:$0xff]
  %v117 = vld [vmem:[%s1 + $0x238] sm:$0xff]
  %v118 = vld [vmem:[%s1 + $0x240] sm:$0xff]
  %v119 = vld [vmem:[%s1 + $0x248] sm:$0xff]
  %v120 = vld [vmem:[%s1 + $0x250] sm:$0xff]
  %v121 = vld [vmem:[%s1 + $0x258] sm:$0xff]
  %v122 = vld [vmem:[%s1 + $0x260] sm:$0xff]
  %v123 = vld [vmem:[%s1 + $0x268] sm:$0xff]
  %v124 = vld [vmem:[%s1 + $0x270] sm:$0xff]
  %v125 = vld [vmem:[%s1 + $0x278] sm:$0xff]
  %v126 = vld [vmem:[%s1 + $0x280] sm:$0xff]
  %v127 = vld [vmem:[%s1 + $0x288] sm:$0xff]
  %v128 = vld [vmem:[%s1 + $0x290] sm:$0xff]
  %v129 = vld [vmem:[%s1 + $0x298] sm:$0xff]
  %v130 = vld [vmem:[%s1 + $0x2a0] sm:$0xff]
  %v131 = vld [vmem:[%s1 + $0x2a8] sm:$0xff]
  %v132 = vld [vmem:[%s1 + $0x2b0] sm:$0xff]
  %v133 = vld [vmem:[%s1 + $0x2b8] sm:$0xff]
  %v134 = vld [vmem:[%s1 + $0x2c0] sm:$0xff]
  %v135 = vld [vmem:[%s1 + $0x2c8] sm:$0xff]
  %v136 = vld [vmem:[%s1 + $0x2d0] sm:$0xff]
  %v137 = vld [vmem:[%s1 + $0x2d8] sm:$0xff]
  %v138 = vld [vmem:[%s1 + $0x2e0] sm:$0xff]
  %v139 = vld [vmem:[%s1 + $0x2e8] sm:$0xff]
  %v140 = vld [vmem:[%s1 + $0x2f0] sm:$0xff]
  %v141 = vld [vmem:[%s1 + $0x2f8] sm:$0xff]
  %v142 = vld [vmem:[%s2] sm:$0x1]
  %v143 = vld [vmem:[%s2 + $0x1] sm:$0x1]
  %v144 = vld [vmem:[%s2 + $0x2] sm:$0x1]
  %v145 = vld [vmem:[%s2 + $0x3] sm:$0x1]
  %v146 = vld [vmem:[%s2 + $0x4] sm:$0x1]
  %v147 = vld [vmem:[%s2 + $0x5] sm:$0x1]
  %v148 = vld [vmem:[%s2 + $0x6] sm:$0x1]
  %v149 = vld [vmem:[%s2 + $0x7] sm:$0x1]
  %v150 = vld [vmem:[%s2 + $0x8] sm:$0x1]
  %v151 = vld [vmem:[%s2 + $0x9] sm:$0x1]
  %v152 = vld [vmem:[%s2 + $0xa] sm:$0x1]
  %v153 = vld [vmem:[%s2 + $0xb] sm:$0x1]
  %v154 = vld [vmem:[%s2 + $0xc] sm:$0x1]
  %v155 = vld [vmem:[%s2 + $0xd] sm:$0x1]
  %v156 = vld [vmem:[%s2 + $0xe] sm:$0x1]
  %v157 = vld [vmem:[%s2 + $0xf] sm:$0x1]
  %v158 = vld [vmem:[%s2 + $0x10] sm:$0x1]
  %v159 = vld [vmem:[%s2 + $0x11] sm:$0x1]
  %v160 = vld [vmem:[%s2 + $0x12] sm:$0x1]
  %v161 = vld [vmem:[%s2 + $0x13] sm:$0x1]
  %v162 = vld [vmem:[%s2 + $0x14] sm:$0x1]
  %v163 = vld [vmem:[%s2 + $0x15] sm:$0x1]
  %v164 = vld [vmem:[%s2 + $0x16] sm:$0x1]
  %v165 = vld [vmem:[%s2 + $0x17] sm:$0x1]
  %v190 = vlaneseq
  %v191 = vshrl.u32 %v190, 7
  %v192 = vsub.s32 0, %v191
  %v193 = vrot.slane %v142, %v192
  %v194 = vlaneseq
  %v195 = vshrl.u32 %v194, 7
  %v196 = vsub.s32 0, %v195
  %v197 = vrot.slane %v143, %v196
  %v198 = vlaneseq
  %v199 = vshrl.u32 %v198, 7
  %v200 = vsub.s32 0, %v199
  %v201 = vrot.slane %v144, %v200
  %v202 = vlaneseq
  %v203 = vshrl.u32 %v202, 7
  %v204 = vsub.s32 0, %v203
  %v205 = vrot.slane %v145, %v204
  %v206 = vlaneseq
  %v207 = vshrl.u32 %v206, 7
  %v208 = vsub.s32 0, %v207
  %v209 = vrot.slane %v146, %v208
  %v210 = vlaneseq
  %v211 = vshrl.u32 %v210, 7
  %v212 = vsub.s32 0, %v211
  %v213 = vrot.slane %v147, %v212
  %v214 = vlaneseq
  %v215 = vshrl.u32 %v214, 7
  %v216 = vsub.s32 0, %v215
  %v217 = vrot.slane %v148, %v216
  %v218 = vlaneseq
  %v219 = vshrl.u32 %v218, 7
  %v220 = vsub.s32 0, %v219
  %v221 = vrot.slane %v149, %v220
  %v222 = vlaneseq
  %v223 = vshrl.u32 %v222, 7
  %v224 = vsub.s32 0, %v223
  %v225 = vrot.slane %v150, %v224
  %v226 = vlaneseq
  %v227 = vshrl.u32 %v226, 7
  %v228 = vsub.s32 0, %v227
  %v229 = vrot.slane %v151, %v228
  %v230 = vlaneseq
  %v231 = vshrl.u32 %v230, 7
  %v232 = vsub.s32 0, %v231
  %v233 = vrot.slane %v152, %v232
  %v234 = vlaneseq
  %v235 = vshrl.u32 %v234, 7
  %v236 = vsub.s32 0, %v235
  %v237 = vrot.slane %v153, %v236
  %v238 = vlaneseq
  %v239 = vshrl.u32 %v238, 7
  %v240 = vsub.s32 0, %v239
  %v241 = vrot.slane %v154, %v240
  %v242 = vlaneseq
  %v243 = vshrl.u32 %v242, 7
  %v244 = vsub.s32 0, %v243
  %v245 = vrot.slane %v155, %v244
  %v246 = vlaneseq
  %v247 = vshrl.u32 %v246, 7
  %v248 = vsub.s32 0, %v247
  %v249 = vrot.slane %v156, %v248
  %v250 = vlaneseq
  %v251 = vshrl.u32 %v250, 7
  %v252 = vsub.s32 0, %v251
  %v253 = vrot.slane %v157, %v252
  %v254 = vlaneseq
  %v255 = vshrl.u32 %v254, 7
  %v256 = vsub.s32 0, %v255
  %v257 = vrot.slane %v158, %v256
  %v258 = vlaneseq
  %v259 = vshrl.u32 %v258, 7
  %v260 = vsub.s32 0, %v259
  %v261 = vrot.slane %v159, %v260
  %v262 = vlaneseq
  %v263 = vshrl.u32 %v262, 7
  %v264 = vsub.s32 0, %v263
  %v265 = vrot.slane %v160, %v264
  %v266 = vlaneseq
  %v267 = vshrl.u32 %v266, 7
  %v268 = vsub.s32 0, %v267
  %v269 = vrot.slane %v161, %v268
  %v270 = vlaneseq
  %v271 = vshrl.u32 %v270, 7
  %v272 = vsub.s32 0, %v271
  %v273 = vrot.slane %v162, %v272
  %v274 = vlaneseq
  %v275 = vshrl.u32 %v274, 7
  %v276 = vsub.s32 0, %v275
  %v277 = vrot.slane %v163, %v276
  %v278 = vlaneseq
  %v279 = vshrl.u32 %v278, 7
  %v280 = vsub.s32 0, %v279
  %v281 = vrot.slane %v164, %v280
  %v282 = vlaneseq
  %v283 = vshrl.u32 %v282, 7
  %v284 = vsub.s32 0, %v283
  %v285 = vrot.slane %v165, %v284
  %vm310 = vcmask 261120
  %v312 = vsel %vm310, %v44, 0
  %314 = vmatprep.subr.mxu0 0.0
  %315 = vmatpush1.msra.mxu0 0.0
  %316 = vmatprep.subr.mxu0 0.0
  %317 = vmatpush1.msra.mxu0 0.0
  %318 = vmatprep.subr.mxu0 0.0
  %319 = vmatpush1.msra.mxu0 0.0
  %320 = vmatprep.subr.mxu0 0.0
  %321 = vmatpush1.msra.mxu0 0.0
  %322 = vmatprep.subr.mxu0 0.0
  %323 = vmatpush1.msra.mxu0 0.0
  %324 = vmatprep.subr.mxu0 0.0
  %325 = vmatpush1.msra.mxu0 0.0
  %326 = vmatprep.subr.mxu0 0.0
  %327 = vmatpush1.msra.mxu0 0.0
  %328 = vmatprep.subr.mxu0 0.0
  %329 = vmatpush1.msra.mxu0 0.0
  %330 = vmatprep.subr.mxu0 0.0
  %331 = vmatpush1.msra.mxu0 0.0
  %332 = vmatprep.subr.mxu0 0.0
  %333 = vmatpush1.msra.mxu0 0.0
  %334 = vmatprep.subr.mxu0 0.0
  %335 = vmatpush1.msra.mxu0 0.0
  %336 = vmatprep.subr.mxu0 0.0
  %337 = vmatpush1.msra.mxu0 0.0
  %338 = vmatprep.subr.mxu0 0.0
  %339 = vmatpush1.msra.mxu0 %v49
  %340 = vmatprep.subr.mxu0 0.0
  %341 = vmatpush1.msra.mxu0 %v48
  %342 = vmatprep.subr.mxu0 0.0
  %343 = vmatpush1.msra.mxu0 %v47
  %344 = vmatprep.subr.mxu0 0.0
  %345 = vmatpush1.msra.mxu0 %v46
  %346 = vmatprep.subr.mxu0 0.0
  %347 = vmatpush2.msra.mxu0 0.0
  %348 = vmatprep.subr.mxu0 0.0
  %349 = vmatpush2.msra.mxu0 0.0
  %350 = vmatprep.subr.mxu0 0.0
  %351 = vmatpush2.msra.mxu0 0.0
  %352 = vmatprep.subr.mxu0 0.0
  %353 = vmatpush2.msra.mxu0 0.0
  %354 = vmatprep.subr.mxu0 0.0
  %355 = vmatpush2.msra.mxu0 0.0
  %356 = vmatprep.subr.mxu0 0.0
  %357 = vmatpush2.msra.mxu0 0.0
  %358 = vmatprep.subr.mxu0 0.0
  %359 = vmatpush2.msra.mxu0 0.0
  %360 = vmatprep.subr.mxu0 0.0
  %361 = vmatpush2.msra.mxu0 0.0
  %362 = vmatprep.subr.mxu0 0.0
  %363 = vmatpush2.msra.mxu0 0.0
  %364 = vmatprep.subr.mxu0 0.0
  %365 = vmatpush2.msra.mxu0 0.0
  %366 = vmatprep.subr.mxu0 0.0
  %367 = vmatpush2.msra.mxu0 0.0
  %368 = vmatprep.subr.mxu0 0.0
  %369 = vmatpush2.msra.mxu0 0.0
  %370 = vmatprep.subr.mxu0 0.0
  %371 = vmatpush2.msra.mxu0 0.0
  %372 = vmatprep.subr.mxu0 0.0
  %373 = vmatpush2.msra.mxu0 0.0
  %374 = vmatprep.subr.mxu0 0.0
  %375 = vmatpush2.msra.mxu0 0.0
  %376 = vmatprep.subr.mxu0 0.0
  %377 = vmatpush2.msra.mxu0 0.0
  %378 = vmatprep.mubr.f32.mxu0 0.0
  %379 = vmatmul.mubr.f32.gmra.mxu0 %v312
  %v380 = vpop.f32.mrf.mxu0
  %v381 = vadd.f32 %v193, %v380
  %v382 = vpop.f32.mrf.mxu0
  %383 = vdwg.mxu0
  %384 = vmatprep.subr.mxu0 0.0
  %385 = vmatpush1.msra.mxu0 0.0
  %386 = vmatprep.subr.mxu0 0.0
  %387 = vmatpush1.msra.mxu0 0.0
  %388 = vmatprep.subr.mxu0 0.0
  %389 = vmatpush1.msra.mxu0 0.0
  %390 = vmatprep.subr.mxu0 0.0
  %391 = vmatpush1.msra.mxu0 0.0
  %392 = vmatprep.subr.mxu0 0.0
  %393 = vmatpush1.msra.mxu0 0.0
  %394 = vmatprep.subr.mxu0 0.0
  %395 = vmatpush1.msra.mxu0 0.0
  %396 = vmatprep.subr.mxu0 0.0
  %397 = vmatpush1.msra.mxu0 0.0
  %398 = vmatprep.subr.mxu0 0.0
  %399 = vmatpush1.msra.mxu0 0.0
  %400 = vmatprep.subr.mxu0 0.0
  %401 = vmatpush1.msra.mxu0 0.0
  %402 = vmatprep.subr.mxu0 0.0
  %403 = vmatpush1.msra.mxu0 0.0
  %404 = vmatprep.subr.mxu0 0.0
  %405 = vmatpush1.msra.mxu0 0.0
  %406 = vmatprep.subr.mxu0 0.0
  %407 = vmatpush1.msra.mxu0 0.0
  %408 = vmatprep.subr.mxu0 0.0
  %409 = vmatpush1.msra.mxu0 %v53
  %410 = vmatprep.subr.mxu0 0.0
  %411 = vmatpush1.msra.mxu0 %v52
  %412 = vmatprep.subr.mxu0 0.0
  %413 = vmatpush1.msra.mxu0 %v51
  %414 = vmatprep.subr.mxu0 0.0
  %415 = vmatpush1.msra.mxu0 %v50
  %416 = vmatprep.subr.mxu0 0.0
  %417 = vmatpush2.msra.mxu0 0.0
  %418 = vmatprep.subr.mxu0 0.0
  %419 = vmatpush2.msra.mxu0 0.0
  %420 = vmatprep.subr.mxu0 0.0
  %421 = vmatpush2.msra.mxu0 0.0
  %422 = vmatprep.subr.mxu0 0.0
  %423 = vmatpush2.msra.mxu0 0.0
  %424 = vmatprep.subr.mxu0 0.0
  %425 = vmatpush2.msra.mxu0 0.0
  %426 = vmatprep.subr.mxu0 0.0
  %427 = vmatpush2.msra.mxu0 0.0
  %428 = vmatprep.subr.mxu0 0.0
  %429 = vmatpush2.msra.mxu0 0.0
  %430 = vmatprep.subr.mxu0 0.0
  %431 = vmatpush2.msra.mxu0 0.0
  %432 = vmatprep.subr.mxu0 0.0
  %433 = vmatpush2.msra.mxu0 0.0
  %434 = vmatprep.subr.mxu0 0.0
  %435 = vmatpush2.msra.mxu0 0.0
  %436 = vmatprep.subr.mxu0 0.0
  %437 = vmatpush2.msra.mxu0 0.0
  %438 = vmatprep.subr.mxu0 0.0
  %439 = vmatpush2.msra.mxu0 0.0
  %440 = vmatprep.subr.mxu0 0.0
  %441 = vmatpush2.msra.mxu0 0.0
  %442 = vmatprep.subr.mxu0 0.0
  %443 = vmatpush2.msra.mxu0 0.0
  %444 = vmatprep.subr.mxu0 0.0
  %445 = vmatpush2.msra.mxu0 0.0
  %446 = vmatprep.subr.mxu0 0.0
  %447 = vmatpush2.msra.mxu0 0.0
  %448 = vmatprep.mubr.f32.mxu0 0.0
  %449 = vmatmul.mubr.f32.gmra.mxu0 %v312
  %v450 = vpop.f32.mrf.mxu0
  %v451 = vadd.f32 %v197, %v450
  %v452 = vpop.f32.mrf.mxu0
  %453 = vdwg.mxu0
  %454 = vmatprep.subr.mxu0 0.0
  %455 = vmatpush1.msra.mxu0 0.0
  %456 = vmatprep.subr.mxu0 0.0
  %457 = vmatpush1.msra.mxu0 0.0
  %458 = vmatprep.subr.mxu0 0.0
  %459 = vmatpush1.msra.mxu0 0.0
  %460 = vmatprep.subr.mxu0 0.0
  %461 = vmatpush1.msra.mxu0 0.0
  %462 = vmatprep.subr.mxu0 0.0
  %463 = vmatpush1.msra.mxu0 0.0
  %464 = vmatprep.subr.mxu0 0.0
  %465 = vmatpush1.msra.mxu0 0.0
  %466 = vmatprep.subr.mxu0 0.0
  %467 = vmatpush1.msra.mxu0 0.0
  %468 = vmatprep.subr.mxu0 0.0
  %469 = vmatpush1.msra.mxu0 0.0
  %470 = vmatprep.subr.mxu0 0.0
  %471 = vmatpush1.msra.mxu0 0.0
  %472 = vmatprep.subr.mxu0 0.0
  %473 = vmatpush1.msra.mxu0 0.0
  %474 = vmatprep.subr.mxu0 0.0
  %475 = vmatpush1.msra.mxu0 0.0
  %476 = vmatprep.subr.mxu0 0.0
  %477 = vmatpush1.msra.mxu0 0.0
  %478 = vmatprep.subr.mxu0 0.0
  %479 = vmatpush1.msra.mxu0 %v57
  %480 = vmatprep.subr.mxu0 0.0
  %481 = vmatpush1.msra.mxu0 %v56
  %482 = vmatprep.subr.mxu0 0.0
  %483 = vmatpush1.msra.mxu0 %v55
  %484 = vmatprep.subr.mxu0 0.0
  %485 = vmatpush1.msra.mxu0 %v54
  %486 = vmatprep.subr.mxu0 0.0
  %487 = vmatpush2.msra.mxu0 0.0
  %488 = vmatprep.subr.mxu0 0.0
  %489 = vmatpush2.msra.mxu0 0.0
  %490 = vmatprep.subr.mxu0 0.0
  %491 = vmatpush2.msra.mxu0 0.0
  %492 = vmatprep.subr.mxu0 0.0
  %493 = vmatpush2.msra.mxu0 0.0
  %494 = vmatprep.subr.mxu0 0.0
  %495 = vmatpush2.msra.mxu0 0.0
  %496 = vmatprep.subr.mxu0 0.0
  %497 = vmatpush2.msra.mxu0 0.0
  %498 = vmatprep.subr.mxu0 0.0
  %499 = vmatpush2.msra.mxu0 0.0
  %500 = vmatprep.subr.mxu0 0.0
  %501 = vmatpush2.msra.mxu0 0.0
  %502 = vmatprep.subr.mxu0 0.0
  %503 = vmatpush2.msra.mxu0 0.0
  %504 = vmatprep.subr.mxu0 0.0
  %505 = vmatpush2.msra.mxu0 0.0
  %506 = vmatprep.subr.mxu0 0.0
  %507 = vmatpush2.msra.mxu0 0.0
  %508 = vmatprep.subr.mxu0 0.0
  %509 = vmatpush2.msra.mxu0 0.0
  %510 = vmatprep.subr.mxu0 0.0
  %511 = vmatpush2.msra.mxu0 0.0
  %512 = vmatprep.subr.mxu0 0.0
  %513 = vmatpush2.msra.mxu0 0.0
  %514 = vmatprep.subr.mxu0 0.0
  %515 = vmatpush2.msra.mxu0 0.0
  %516 = vmatprep.subr.mxu0 0.0
  %517 = vmatpush2.msra.mxu0 0.0
  %518 = vmatprep.mubr.f32.mxu0 0.0
  %519 = vmatmul.mubr.f32.gmra.mxu0 %v312
  %v520 = vpop.f32.mrf.mxu0
  %v521 = vadd.f32 %v201, %v520
  %v522 = vpop.f32.mrf.mxu0
  %523 = vdwg.mxu0
  %524 = vmatprep.subr.mxu0 0.0
  %525 = vmatpush1.msra.mxu0 0.0
  %526 = vmatprep.subr.mxu0 0.0
  %527 = vmatpush1.msra.mxu0 0.0
  %528 = vmatprep.subr.mxu0 0.0
  %529 = vmatpush1.msra.mxu0 0.0
  %530 = vmatprep.subr.mxu0 0.0
  %531 = vmatpush1.msra.mxu0 0.0
  %532 = vmatprep.subr.mxu0 0.0
  %533 = vmatpush1.msra.mxu0 0.0
  %534 = vmatprep.subr.mxu0 0.0
  %535 = vmatpush1.msra.mxu0 0.0
  %536 = vmatprep.subr.mxu0 0.0
  %537 = vmatpush1.msra.mxu0 0.0
  %538 = vmatprep.subr.mxu0 0.0
  %539 = vmatpush1.msra.mxu0 0.0
  %540 = vmatprep.subr.mxu0 0.0
  %541 = vmatpush1.msra.mxu0 0.0
  %542 = vmatprep.subr.mxu0 0.0
  %543 = vmatpush1.msra.mxu0 0.0
  %544 = vmatprep.subr.mxu0 0.0
  %545 = vmatpush1.msra.mxu0 0.0
  %546 = vmatprep.subr.mxu0 0.0
  %547 = vmatpush1.msra.mxu0 0.0
  %548 = vmatprep.subr.mxu0 0.0
  %549 = vmatpush1.msra.mxu0 %v61
  %550 = vmatprep.subr.mxu0 0.0
  %551 = vmatpush1.msra.mxu0 %v60
  %552 = vmatprep.subr.mxu0 0.0
  %553 = vmatpush1.msra.mxu0 %v59
  %554 = vmatprep.subr.mxu0 0.0
  %555 = vmatpush1.msra.mxu0 %v58
  %556 = vmatprep.subr.mxu0 0.0
  %557 = vmatpush2.msra.mxu0 0.0
  %558 = vmatprep.subr.mxu0 0.0
  %559 = vmatpush2.msra.mxu0 0.0
  %560 = vmatprep.subr.mxu0 0.0
  %561 = vmatpush2.msra.mxu0 0.0
  %562 = vmatprep.subr.mxu0 0.0
  %563 = vmatpush2.msra.mxu0 0.0
  %564 = vmatprep.subr.mxu0 0.0
  %565 = vmatpush2.msra.mxu0 0.0
  %566 = vmatprep.subr.mxu0 0.0
  %567 = vmatpush2.msra.mxu0 0.0
  %568 = vmatprep.subr.mxu0 0.0
  %569 = vmatpush2.msra.mxu0 0.0
  %570 = vmatprep.subr.mxu0 0.0
  %571 = vmatpush2.msra.mxu0 0.0
  %572 = vmatprep.subr.mxu0 0.0
  %573 = vmatpush2.msra.mxu0 0.0
  %574 = vmatprep.subr.mxu0 0.0
  %575 = vmatpush2.msra.mxu0 0.0
  %576 = vmatprep.subr.mxu0 0.0
  %577 = vmatpush2.msra.mxu0 0.0
  %578 = vmatprep.subr.mxu0 0.0
  %579 = vmatpush2.msra.mxu0 0.0
  %580 = vmatprep.subr.mxu0 0.0
  %581 = vmatpush2.msra.mxu0 0.0
  %582 = vmatprep.subr.mxu0 0.0
  %583 = vmatpush2.msra.mxu0 0.0
  %584 = vmatprep.subr.mxu0 0.0
  %585 = vmatpush2.msra.mxu0 0.0
  %586 = vmatprep.subr.mxu0 0.0
  %587 = vmatpush2.msra.mxu0 0.0
  %588 = vmatprep.mubr.f32.mxu0 0.0
  %589 = vmatmul.mubr.f32.gmra.mxu0 %v312
  %v590 = vpop.f32.mrf.mxu0
  %v591 = vadd.f32 %v205, %v590
  %v592 = vpop.f32.mrf.mxu0
  %593 = vdwg.mxu0
  %v595 = vsel %vm310, %v45, 0
  %597 = vmatprep.subr.mxu0 0.0
  %598 = vmatpush1.msra.mxu0 0.0
  %599 = vmatprep.subr.mxu0 0.0
  %600 = vmatpush1.msra.mxu0 0.0
  %601 = vmatprep.subr.mxu0 0.0
  %602 = vmatpush1.msra.mxu0 0.0
  %603 = vmatprep.subr.mxu0 0.0
  %604 = vmatpush1.msra.mxu0 0.0
  %605 = vmatprep.subr.mxu0 0.0
  %606 = vmatpush1.msra.mxu0 0.0
  %607 = vmatprep.subr.mxu0 0.0
  %608 = vmatpush1.msra.mxu0 0.0
  %609 = vmatprep.subr.mxu0 0.0
  %610 = vmatpush1.msra.mxu0 0.0
  %611 = vmatprep.subr.mxu0 0.0
  %612 = vmatpush1.msra.mxu0 0.0
  %613 = vmatprep.subr.mxu0 0.0
  %614 = vmatpush1.msra.mxu0 0.0
  %615 = vmatprep.subr.mxu0 0.0
  %616 = vmatpush1.msra.mxu0 0.0
  %617 = vmatprep.subr.mxu0 0.0
  %618 = vmatpush1.msra.mxu0 0.0
  %619 = vmatprep.subr.mxu0 0.0
  %620 = vmatpush1.msra.mxu0 0.0
  %621 = vmatprep.subr.mxu0 0.0
  %622 = vmatpush1.msra.mxu0 %v65
  %623 = vmatprep.subr.mxu0 0.0
  %624 = vmatpush1.msra.mxu0 %v64
  %625 = vmatprep.subr.mxu0 0.0
  %626 = vmatpush1.msra.mxu0 %v63
  %627 = vmatprep.subr.mxu0 0.0
  %628 = vmatpush1.msra.mxu0 %v62
  %629 = vmatprep.subr.mxu0 0.0
  %630 = vmatpush2.msra.mxu0 0.0
  %631 = vmatprep.subr.mxu0 0.0
  %632 = vmatpush2.msra.mxu0 0.0
  %633 = vmatprep.subr.mxu0 0.0
  %634 = vmatpush2.msra.mxu0 0.0
  %635 = vmatprep.subr.mxu0 0.0
  %636 = vmatpush2.msra.mxu0 0.0
  %637 = vmatprep.subr.mxu0 0.0
  %638 = vmatpush2.msra.mxu0 0.0
  %639 = vmatprep.subr.mxu0 0.0
  %640 = vmatpush2.msra.mxu0 0.0
  %641 = vmatprep.subr.mxu0 0.0
  %642 = vmatpush2.msra.mxu0 0.0
  %643 = vmatprep.subr.mxu0 0.0
  %644 = vmatpush2.msra.mxu0 0.0
  %645 = vmatprep.subr.mxu0 0.0
  %646 = vmatpush2.msra.mxu0 0.0
  %647 = vmatprep.subr.mxu0 0.0
  %648 = vmatpush2.msra.mxu0 0.0
  %649 = vmatprep.subr.mxu0 0.0
  %650 = vmatpush2.msra.mxu0 0.0
  %651 = vmatprep.subr.mxu0 0.0
  %652 = vmatpush2.msra.mxu0 0.0
  %653 = vmatprep.subr.mxu0 0.0
  %654 = vmatpush2.msra.mxu0 0.0
  %655 = vmatprep.subr.mxu0 0.0
  %656 = vmatpush2.msra.mxu0 0.0
  %657 = vmatprep.subr.mxu0 0.0
  %658 = vmatpush2.msra.mxu0 0.0
  %659 = vmatprep.subr.mxu0 0.0
  %660 = vmatpush2.msra.mxu0 0.0
  %661 = vmatprep.mubr.f32.mxu0 0.0
  %662 = vmatmul.mubr.f32.gmra.mxu0 %v595
  %v663 = vpop.f32.mrf.mxu0
  %v664 = vadd.f32 %v209, %v663
  %v665 = vpop.f32.mrf.mxu0
  %666 = vdwg.mxu0
  %667 = vmatprep.subr.mxu0 0.0
  %668 = vmatpush1.msra.mxu0 0.0
  %669 = vmatprep.subr.mxu0 0.0
  %670 = vmatpush1.msra.mxu0 0.0
  %671 = vmatprep.subr.mxu0 0.0
  %672 = vmatpush1.msra.mxu0 0.0
  %673 = vmatprep.subr.mxu0 0.0
  %674 = vmatpush1.msra.mxu0 0.0
  %675 = vmatprep.subr.mxu0 0.0
  %676 = vmatpush1.msra.mxu0 0.0
  %677 = vmatprep.subr.mxu0 0.0
  %678 = vmatpush1.msra.mxu0 0.0
  %679 = vmatprep.subr.mxu0 0.0
  %680 = vmatpush1.msra.mxu0 0.0
  %681 = vmatprep.subr.mxu0 0.0
  %682 = vmatpush1.msra.mxu0 0.0
  %683 = vmatprep.subr.mxu0 0.0
  %684 = vmatpush1.msra.mxu0 0.0
  %685 = vmatprep.subr.mxu0 0.0
  %686 = vmatpush1.msra.mxu0 0.0
  %687 = vmatprep.subr.mxu0 0.0
  %688 = vmatpush1.msra.mxu0 0.0
  %689 = vmatprep.subr.mxu0 0.0
  %690 = vmatpush1.msra.mxu0 0.0
  %691 = vmatprep.subr.mxu0 0.0
  %692 = vmatpush1.msra.mxu0 %v69
  %693 = vmatprep.subr.mxu0 0.0
  %694 = vmatpush1.msra.mxu0 %v68
  %695 = vmatprep.subr.mxu0 0.0
  %696 = vmatpush1.msra.mxu0 %v67
  %697 = vmatprep.subr.mxu0 0.0
  %698 = vmatpush1.msra.mxu0 %v66
  %699 = vmatprep.subr.mxu0 0.0
  %700 = vmatpush2.msra.mxu0 0.0
  %701 = vmatprep.subr.mxu0 0.0
  %702 = vmatpush2.msra.mxu0 0.0
  %703 = vmatprep.subr.mxu0 0.0
  %704 = vmatpush2.msra.mxu0 0.0
  %705 = vmatprep.subr.mxu0 0.0
  %706 = vmatpush2.msra.mxu0 0.0
  %707 = vmatprep.subr.mxu0 0.0
  %708 = vmatpush2.msra.mxu0 0.0
  %709 = vmatprep.subr.mxu0 0.0
  %710 = vmatpush2.msra.mxu0 0.0
  %711 = vmatprep.subr.mxu0 0.0
  %712 = vmatpush2.msra.mxu0 0.0
  %713 = vmatprep.subr.mxu0 0.0
  %714 = vmatpush2.msra.mxu0 0.0
  %715 = vmatprep.subr.mxu0 0.0
  %716 = vmatpush2.msra.mxu0 0.0
  %717 = vmatprep.subr.mxu0 0.0
  %718 = vmatpush2.msra.mxu0 0.0
  %719 = vmatprep.subr.mxu0 0.0
  %720 = vmatpush2.msra.mxu0 0.0
  %721 = vmatprep.subr.mxu0 0.0
  %722 = vmatpush2.msra.mxu0 0.0
  %723 = vmatprep.subr.mxu0 0.0
  %724 = vmatpush2.msra.mxu0 0.0
  %725 = vmatprep.subr.mxu0 0.0
  %726 = vmatpush2.msra.mxu0 0.0
  %727 = vmatprep.subr.mxu0 0.0
  %728 = vmatpush2.msra.mxu0 0.0
  %729 = vmatprep.subr.mxu0 0.0
  %730 = vmatpush2.msra.mxu0 0.0
  %731 = vmatprep.mubr.f32.mxu0 0.0
  %732 = vmatmul.mubr.f32.gmra.mxu0 %v595
  %v733 = vpop.f32.mrf.mxu0
  %v734 = vadd.f32 %v213, %v733
  %v735 = vpop.f32.mrf.mxu0
  %736 = vdwg.mxu0
  %737 = vmatprep.subr.mxu0 0.0
  %738 = vmatpush1.msra.mxu0 0.0
  %739 = vmatprep.subr.mxu0 0.0
  %740 = vmatpush1.msra.mxu0 0.0
  %741 = vmatprep.subr.mxu0 0.0
  %742 = vmatpush1.msra.mxu0 0.0
  %743 = vmatprep.subr.mxu0 0.0
  %744 = vmatpush1.msra.mxu0 0.0
  %745 = vmatprep.subr.mxu0 0.0
  %746 = vmatpush1.msra.mxu0 0.0
  %747 = vmatprep.subr.mxu0 0.0
  %748 = vmatpush1.msra.mxu0 0.0
  %749 = vmatprep.subr.mxu0 0.0
  %750 = vmatpush1.msra.mxu0 0.0
  %751 = vmatprep.subr.mxu0 0.0
  %752 = vmatpush1.msra.mxu0 0.0
  %753 = vmatprep.subr.mxu0 0.0
  %754 = vmatpush1.msra.mxu0 0.0
  %755 = vmatprep.subr.mxu0 0.0
  %756 = vmatpush1.msra.mxu0 0.0
  %757 = vmatprep.subr.mxu0 0.0
  %758 = vmatpush1.msra.mxu0 0.0
  %759 = vmatprep.subr.mxu0 0.0
  %760 = vmatpush1.msra.mxu0 0.0
  %761 = vmatprep.subr.mxu0 0.0
  %762 = vmatpush1.msra.mxu0 %v73
  %763 = vmatprep.subr.mxu0 0.0
  %764 = vmatpush1.msra.mxu0 %v72
  %765 = vmatprep.subr.mxu0 0.0
  %766 = vmatpush1.msra.mxu0 %v71
  %767 = vmatprep.subr.mxu0 0.0
  %768 = vmatpush1.msra.mxu0 %v70
  %769 = vmatprep.subr.mxu0 0.0
  %770 = vmatpush2.msra.mxu0 0.0
  %771 = vmatprep.subr.mxu0 0.0
  %772 = vmatpush2.msra.mxu0 0.0
  %773 = vmatprep.subr.mxu0 0.0
  %774 = vmatpush2.msra.mxu0 0.0
  %775 = vmatprep.subr.mxu0 0.0
  %776 = vmatpush2.msra.mxu0 0.0
  %777 = vmatprep.subr.mxu0 0.0
  %778 = vmatpush2.msra.mxu0 0.0
  %779 = vmatprep.subr.mxu0 0.0
  %780 = vmatpush2.msra.mxu0 0.0
  %781 = vmatprep.subr.mxu0 0.0
  %782 = vmatpush2.msra.mxu0 0.0
  %783 = vmatprep.subr.mxu0 0.0
  %784 = vmatpush2.msra.mxu0 0.0
  %785 = vmatprep.subr.mxu0 0.0
  %786 = vmatpush2.msra.mxu0 0.0
  %787 = vmatprep.subr.mxu0 0.0
  %788 = vmatpush2.msra.mxu0 0.0
  %789 = vmatprep.subr.mxu0 0.0
  %790 = vmatpush2.msra.mxu0 0.0
  %791 = vmatprep.subr.mxu0 0.0
  %792 = vmatpush2.msra.mxu0 0.0
  %793 = vmatprep.subr.mxu0 0.0
  %794 = vmatpush2.msra.mxu0 0.0
  %795 = vmatprep.subr.mxu0 0.0
  %796 = vmatpush2.msra.mxu0 0.0
  %797 = vmatprep.subr.mxu0 0.0
  %798 = vmatpush2.msra.mxu0 0.0
  %799 = vmatprep.subr.mxu0 0.0
  %800 = vmatpush2.msra.mxu0 0.0
  %801 = vmatprep.mubr.f32.mxu0 0.0
  %802 = vmatmul.mubr.f32.gmra.mxu0 %v595
  %v803 = vpop.f32.mrf.mxu0
  %v804 = vadd.f32 %v217, %v803
  %v805 = vpop.f32.mrf.mxu0
  %806 = vdwg.mxu0
  %807 = vmatprep.subr.mxu0 0.0
  %808 = vmatpush1.msra.mxu0 0.0
  %809 = vmatprep.subr.mxu0 0.0
  %810 = vmatpush1.msra.mxu0 0.0
  %811 = vmatprep.subr.mxu0 0.0
  %812 = vmatpush1.msra.mxu0 0.0
  %813 = vmatprep.subr.mxu0 0.0
  %814 = vmatpush1.msra.mxu0 0.0
  %815 = vmatprep.subr.mxu0 0.0
  %816 = vmatpush1.msra.mxu0 0.0
  %817 = vmatprep.subr.mxu0 0.0
  %818 = vmatpush1.msra.mxu0 0.0
  %819 = vmatprep.subr.mxu0 0.0
  %820 = vmatpush1.msra.mxu0 0.0
  %821 = vmatprep.subr.mxu0 0.0
  %822 = vmatpush1.msra.mxu0 0.0
  %823 = vmatprep.subr.mxu0 0.0
  %824 = vmatpush1.msra.mxu0 0.0
  %825 = vmatprep.subr.mxu0 0.0
  %826 = vmatpush1.msra.mxu0 0.0
  %827 = vmatprep.subr.mxu0 0.0
  %828 = vmatpush1.msra.mxu0 0.0
  %829 = vmatprep.subr.mxu0 0.0
  %830 = vmatpush1.msra.mxu0 0.0
  %831 = vmatprep.subr.mxu0 0.0
  %832 = vmatpush1.msra.mxu0 %v77
  %833 = vmatprep.subr.mxu0 0.0
  %834 = vmatpush1.msra.mxu0 %v76
  %835 = vmatprep.subr.mxu0 0.0
  %836 = vmatpush1.msra.mxu0 %v75
  %837 = vmatprep.subr.mxu0 0.0
  %838 = vmatpush1.msra.mxu0 %v74
  %839 = vmatprep.subr.mxu0 0.0
  %840 = vmatpush2.msra.mxu0 0.0
  %841 = vmatprep.subr.mxu0 0.0
  %842 = vmatpush2.msra.mxu0 0.0
  %843 = vmatprep.subr.mxu0 0.0
  %844 = vmatpush2.msra.mxu0 0.0
  %845 = vmatprep.subr.mxu0 0.0
  %846 = vmatpush2.msra.mxu0 0.0
  %847 = vmatprep.subr.mxu0 0.0
  %848 = vmatpush2.msra.mxu0 0.0
  %849 = vmatprep.subr.mxu0 0.0
  %850 = vmatpush2.msra.mxu0 0.0
  %851 = vmatprep.subr.mxu0 0.0
  %852 = vmatpush2.msra.mxu0 0.0
  %853 = vmatprep.subr.mxu0 0.0
  %854 = vmatpush2.msra.mxu0 0.0
  %855 = vmatprep.subr.mxu0 0.0
  %856 = vmatpush2.msra.mxu0 0.0
  %857 = vmatprep.subr.mxu0 0.0
  %858 = vmatpush2.msra.mxu0 0.0
  %859 = vmatprep.subr.mxu0 0.0
  %860 = vmatpush2.msra.mxu0 0.0
  %861 = vmatprep.subr.mxu0 0.0
  %862 = vmatpush2.msra.mxu0 0.0
  %863 = vmatprep.subr.mxu0 0.0
  %864 = vmatpush2.msra.mxu0 0.0
  %865 = vmatprep.subr.mxu0 0.0
  %866 = vmatpush2.msra.mxu0 0.0
  %867 = vmatprep.subr.mxu0 0.0
  %868 = vmatpush2.msra.mxu0 0.0
  %869 = vmatprep.subr.mxu0 0.0
  %870 = vmatpush2.msra.mxu0 0.0
  %871 = vmatprep.mubr.f32.mxu0 0.0
  %872 = vmatmul.mubr.f32.gmra.mxu0 %v595
  %v873 = vpop.f32.mrf.mxu0
  %v874 = vadd.f32 %v221, %v873
  %v875 = vpop.f32.mrf.mxu0
  %876 = vdwg.mxu0
  %877 = vmatprep.subr.mxu0 0.0
  %878 = vmatpush1.msra.mxu0 0.0
  %879 = vmatprep.subr.mxu0 0.0
  %880 = vmatpush1.msra.mxu0 0.0
  %881 = vmatprep.subr.mxu0 0.0
  %882 = vmatpush1.msra.mxu0 0.0
  %883 = vmatprep.subr.mxu0 0.0
  %884 = vmatpush1.msra.mxu0 0.0
  %885 = vmatprep.subr.mxu0 0.0
  %886 = vmatpush1.msra.mxu0 0.0
  %887 = vmatprep.subr.mxu0 0.0
  %888 = vmatpush1.msra.mxu0 0.0
  %889 = vmatprep.subr.mxu0 0.0
  %890 = vmatpush1.msra.mxu0 0.0
  %891 = vmatprep.subr.mxu0 0.0
  %892 = vmatpush1.msra.mxu0 0.0
  %893 = vmatprep.subr.mxu0 0.0
  %894 = vmatpush1.msra.mxu0 0.0
  %895 = vmatprep.subr.mxu0 0.0
  %896 = vmatpush1.msra.mxu0 0.0
  %897 = vmatprep.subr.mxu0 0.0
  %898 = vmatpush1.msra.mxu0 0.0
  %899 = vmatprep.subr.mxu0 0.0
  %900 = vmatpush1.msra.mxu0 0.0
  %901 = vmatprep.subr.mxu0 0.0
  %902 = vmatpush1.msra.mxu0 %v81
  %903 = vmatprep.subr.mxu0 0.0
  %904 = vmatpush1.msra.mxu0 %v80
  %905 = vmatprep.subr.mxu0 0.0
  %906 = vmatpush1.msra.mxu0 %v79
  %907 = vmatprep.subr.mxu0 0.0
  %908 = vmatpush1.msra.mxu0 %v78
  %909 = vmatprep.subr.mxu0 0.0
  %910 = vmatpush2.msra.mxu0 0.0
  %911 = vmatprep.subr.mxu0 0.0
  %912 = vmatpush2.msra.mxu0 0.0
  %913 = vmatprep.subr.mxu0 0.0
  %914 = vmatpush2.msra.mxu0 0.0
  %915 = vmatprep.subr.mxu0 0.0
  %916 = vmatpush2.msra.mxu0 0.0
  %917 = vmatprep.subr.mxu0 0.0
  %918 = vmatpush2.msra.mxu0 0.0
  %919 = vmatprep.subr.mxu0 0.0
  %920 = vmatpush2.msra.mxu0 0.0
  %921 = vmatprep.subr.mxu0 0.0
  %922 = vmatpush2.msra.mxu0 0.0
  %923 = vmatprep.subr.mxu0 0.0
  %924 = vmatpush2.msra.mxu0 0.0
  %925 = vmatprep.subr.mxu0 0.0
  %926 = vmatpush2.msra.mxu0 0.0
  %927 = vmatprep.subr.mxu0 0.0
  %928 = vmatpush2.msra.mxu0 0.0
  %929 = vmatprep.subr.mxu0 0.0
  %930 = vmatpush2.msra.mxu0 0.0
  %931 = vmatprep.subr.mxu0 0.0
  %932 = vmatpush2.msra.mxu0 0.0
  %933 = vmatprep.subr.mxu0 0.0
  %934 = vmatpush2.msra.mxu0 0.0
  %935 = vmatprep.subr.mxu0 0.0
  %936 = vmatpush2.msra.mxu0 0.0
  %937 = vmatprep.subr.mxu0 0.0
  %938 = vmatpush2.msra.mxu0 0.0
  %939 = vmatprep.subr.mxu0 0.0
  %940 = vmatpush2.msra.mxu0 0.0
  %941 = vmatprep.mubr.f32.mxu0 0.0
  %942 = vmatmul.mubr.f32.gmra.mxu0 %v312
  %v943 = vpop.f32.mrf.mxu0
  %v944 = vadd.f32 %v225, %v943
  %v945 = vpop.f32.mrf.mxu0
  %946 = vdwg.mxu0
  %947 = vmatprep.subr.mxu0 0.0
  %948 = vmatpush1.msra.mxu0 0.0
  %949 = vmatprep.subr.mxu0 0.0
  %950 = vmatpush1.msra.mxu0 0.0
  %951 = vmatprep.subr.mxu0 0.0
  %952 = vmatpush1.msra.mxu0 0.0
  %953 = vmatprep.subr.mxu0 0.0
  %954 = vmatpush1.msra.mxu0 0.0
  %955 = vmatprep.subr.mxu0 0.0
  %956 = vmatpush1.msra.mxu0 0.0
  %957 = vmatprep.subr.mxu0 0.0
  %958 = vmatpush1.msra.mxu0 0.0
  %959 = vmatprep.subr.mxu0 0.0
  %960 = vmatpush1.msra.mxu0 0.0
  %961 = vmatprep.subr.mxu0 0.0
  %962 = vmatpush1.msra.mxu0 0.0
  %963 = vmatprep.subr.mxu0 0.0
  %964 = vmatpush1.msra.mxu0 0.0
  %965 = vmatprep.subr.mxu0 0.0
  %966 = vmatpush1.msra.mxu0 0.0
  %967 = vmatprep.subr.mxu0 0.0
  %968 = vmatpush1.msra.mxu0 0.0
  %969 = vmatprep.subr.mxu0 0.0
  %970 = vmatpush1.msra.mxu0 0.0
  %971 = vmatprep.subr.mxu0 0.0
  %972 = vmatpush1.msra.mxu0 %v85
  %973 = vmatprep.subr.mxu0 0.0
  %974 = vmatpush1.msra.mxu0 %v84
  %975 = vmatprep.subr.mxu0 0.0
  %976 = vmatpush1.msra.mxu0 %v83
  %977 = vmatprep.subr.mxu0 0.0
  %978 = vmatpush1.msra.mxu0 %v82
  %979 = vmatprep.subr.mxu0 0.0
  %980 = vmatpush2.msra.mxu0 0.0
  %981 = vmatprep.subr.mxu0 0.0
  %982 = vmatpush2.msra.mxu0 0.0
  %983 = vmatprep.subr.mxu0 0.0
  %984 = vmatpush2.msra.mxu0 0.0
  %985 = vmatprep.subr.mxu0 0.0
  %986 = vmatpush2.msra.mxu0 0.0
  %987 = vmatprep.subr.mxu0 0.0
  %988 = vmatpush2.msra.mxu0 0.0
  %989 = vmatprep.subr.mxu0 0.0
  %990 = vmatpush2.msra.mxu0 0.0
  %991 = vmatprep.subr.mxu0 0.0
  %992 = vmatpush2.msra.mxu0 0.0
  %993 = vmatprep.subr.mxu0 0.0
  %994 = vmatpush2.msra.mxu0 0.0
  %995 = vmatprep.subr.mxu0 0.0
  %996 = vmatpush2.msra.mxu0 0.0
  %997 = vmatprep.subr.mxu0 0.0
  %998 = vmatpush2.msra.mxu0 0.0
  %999 = vmatprep.subr.mxu0 0.0
  %1000 = vmatpush2.msra.mxu0 0.0
  %1001 = vmatprep.subr.mxu0 0.0
  %1002 = vmatpush2.msra.mxu0 0.0
  %1003 = vmatprep.subr.mxu0 0.0
  %1004 = vmatpush2.msra.mxu0 0.0
  %1005 = vmatprep.subr.mxu0 0.0
  %1006 = vmatpush2.msra.mxu0 0.0
  %1007 = vmatprep.subr.mxu0 0.0
  %1008 = vmatpush2.msra.mxu0 0.0
  %1009 = vmatprep.subr.mxu0 0.0
  %1010 = vmatpush2.msra.mxu0 0.0
  %1011 = vmatprep.mubr.f32.mxu0 0.0
  %1012 = vmatmul.mubr.f32.gmra.mxu0 %v312
  %v1013 = vpop.f32.mrf.mxu0
  %v1014 = vadd.f32 %v229, %v1013
  %v1015 = vpop.f32.mrf.mxu0
  %1016 = vdwg.mxu0
  %1017 = vmatprep.subr.mxu0 0.0
  %1018 = vmatpush1.msra.mxu0 0.0
  %1019 = vmatprep.subr.mxu0 0.0
  %1020 = vmatpush1.msra.mxu0 0.0
  %1021 = vmatprep.subr.mxu0 0.0
  %1022 = vmatpush1.msra.mxu0 0.0
  %1023 = vmatprep.subr.mxu0 0.0
  %1024 = vmatpush1.msra.mxu0 0.0
  %1025 = vmatprep.subr.mxu0 0.0
  %1026 = vmatpush1.msra.mxu0 0.0
  %1027 = vmatprep.subr.mxu0 0.0
  %1028 = vmatpush1.msra.mxu0 0.0
  %1029 = vmatprep.subr.mxu0 0.0
  %1030 = vmatpush1.msra.mxu0 0.0
  %1031 = vmatprep.subr.mxu0 0.0
  %1032 = vmatpush1.msra.mxu0 0.0
  %1033 = vmatprep.subr.mxu0 0.0
  %1034 = vmatpush1.msra.mxu0 0.0
  %1035 = vmatprep.subr.mxu0 0.0
  %1036 = vmatpush1.msra.mxu0 0.0
  %1037 = vmatprep.subr.mxu0 0.0
  %1038 = vmatpush1.msra.mxu0 0.0
  %1039 = vmatprep.subr.mxu0 0.0
  %1040 = vmatpush1.msra.mxu0 0.0
  %1041 = vmatprep.subr.mxu0 0.0
  %1042 = vmatpush1.msra.mxu0 %v89
  %1043 = vmatprep.subr.mxu0 0.0
  %1044 = vmatpush1.msra.mxu0 %v88
  %1045 = vmatprep.subr.mxu0 0.0
  %1046 = vmatpush1.msra.mxu0 %v87
  %1047 = vmatprep.subr.mxu0 0.0
  %1048 = vmatpush1.msra.mxu0 %v86
  %1049 = vmatprep.subr.mxu0 0.0
  %1050 = vmatpush2.msra.mxu0 0.0
  %1051 = vmatprep.subr.mxu0 0.0
  %1052 = vmatpush2.msra.mxu0 0.0
  %1053 = vmatprep.subr.mxu0 0.0
  %1054 = vmatpush2.msra.mxu0 0.0
  %1055 = vmatprep.subr.mxu0 0.0
  %1056 = vmatpush2.msra.mxu0 0.0
  %1057 = vmatprep.subr.mxu0 0.0
  %1058 = vmatpush2.msra.mxu0 0.0
  %1059 = vmatprep.subr.mxu0 0.0
  %1060 = vmatpush2.msra.mxu0 0.0
  %1061 = vmatprep.subr.mxu0 0.0
  %1062 = vmatpush2.msra.mxu0 0.0
  %1063 = vmatprep.subr.mxu0 0.0
  %1064 = vmatpush2.msra.mxu0 0.0
  %1065 = vmatprep.subr.mxu0 0.0
  %1066 = vmatpush2.msra.mxu0 0.0
  %1067 = vmatprep.subr.mxu0 0.0
  %1068 = vmatpush2.msra.mxu0 0.0
  %1069 = vmatprep.subr.mxu0 0.0
  %1070 = vmatpush2.msra.mxu0 0.0
  %1071 = vmatprep.subr.mxu0 0.0
  %1072 = vmatpush2.msra.mxu0 0.0
  %1073 = vmatprep.subr.mxu0 0.0
  %1074 = vmatpush2.msra.mxu0 0.0
  %1075 = vmatprep.subr.mxu0 0.0
  %1076 = vmatpush2.msra.mxu0 0.0
  %1077 = vmatprep.subr.mxu0 0.0
  %1078 = vmatpush2.msra.mxu0 0.0
  %1079 = vmatprep.subr.mxu0 0.0
  %1080 = vmatpush2.msra.mxu0 0.0
  %1081 = vmatprep.mubr.f32.mxu0 0.0
  %1082 = vmatmul.mubr.f32.gmra.mxu0 %v312
  %v1083 = vpop.f32.mrf.mxu0
  %v1084 = vadd.f32 %v233, %v1083
  %v1085 = vpop.f32.mrf.mxu0
  %1086 = vdwg.mxu0
  %1087 = vmatprep.subr.mxu0 0.0
  %1088 = vmatpush1.msra.mxu0 0.0
  %1089 = vmatprep.subr.mxu0 0.0
  %1090 = vmatpush1.msra.mxu0 0.0
  %1091 = vmatprep.subr.mxu0 0.0
  %1092 = vmatpush1.msra.mxu0 0.0
  %1093 = vmatprep.subr.mxu0 0.0
  %1094 = vmatpush1.msra.mxu0 0.0
  %1095 = vmatprep.subr.mxu0 0.0
  %1096 = vmatpush1.msra.mxu0 0.0
  %1097 = vmatprep.subr.mxu0 0.0
  %1098 = vmatpush1.msra.mxu0 0.0
  %1099 = vmatprep.subr.mxu0 0.0
  %1100 = vmatpush1.msra.mxu0 0.0
  %1101 = vmatprep.subr.mxu0 0.0
  %1102 = vmatpush1.msra.mxu0 0.0
  %1103 = vmatprep.subr.mxu0 0.0
  %1104 = vmatpush1.msra.mxu0 0.0
  %1105 = vmatprep.subr.mxu0 0.0
  %1106 = vmatpush1.msra.mxu0 0.0
  %1107 = vmatprep.subr.mxu0 0.0
  %1108 = vmatpush1.msra.mxu0 0.0
  %1109 = vmatprep.subr.mxu0 0.0
  %1110 = vmatpush1.msra.mxu0 0.0
  %1111 = vmatprep.subr.mxu0 0.0
  %1112 = vmatpush1.msra.mxu0 %v93
  %1113 = vmatprep.subr.mxu0 0.0
  %1114 = vmatpush1.msra.mxu0 %v92
  %1115 = vmatprep.subr.mxu0 0.0
  %1116 = vmatpush1.msra.mxu0 %v91
  %1117 = vmatprep.subr.mxu0 0.0
  %1118 = vmatpush1.msra.mxu0 %v90
  %1119 = vmatprep.subr.mxu0 0.0
  %1120 = vmatpush2.msra.mxu0 0.0
  %1121 = vmatprep.subr.mxu0 0.0
  %1122 = vmatpush2.msra.mxu0 0.0
  %1123 = vmatprep.subr.mxu0 0.0
  %1124 = vmatpush2.msra.mxu0 0.0
  %1125 = vmatprep.subr.mxu0 0.0
  %1126 = vmatpush2.msra.mxu0 0.0
  %1127 = vmatprep.subr.mxu0 0.0
  %1128 = vmatpush2.msra.mxu0 0.0
  %1129 = vmatprep.subr.mxu0 0.0
  %1130 = vmatpush2.msra.mxu0 0.0
  %1131 = vmatprep.subr.mxu0 0.0
  %1132 = vmatpush2.msra.mxu0 0.0
  %1133 = vmatprep.subr.mxu0 0.0
  %1134 = vmatpush2.msra.mxu0 0.0
  %1135 = vmatprep.subr.mxu0 0.0
  %1136 = vmatpush2.msra.mxu0 0.0
  %1137 = vmatprep.subr.mxu0 0.0
  %1138 = vmatpush2.msra.mxu0 0.0
  %1139 = vmatprep.subr.mxu0 0.0
  %1140 = vmatpush2.msra.mxu0 0.0
  %1141 = vmatprep.subr.mxu0 0.0
  %1142 = vmatpush2.msra.mxu0 0.0
  %1143 = vmatprep.subr.mxu0 0.0
  %1144 = vmatpush2.msra.mxu0 0.0
  %1145 = vmatprep.subr.mxu0 0.0
  %1146 = vmatpush2.msra.mxu0 0.0
  %1147 = vmatprep.subr.mxu0 0.0
  %1148 = vmatpush2.msra.mxu0 0.0
  %1149 = vmatprep.subr.mxu0 0.0
  %1150 = vmatpush2.msra.mxu0 0.0
  %1151 = vmatprep.mubr.f32.mxu0 0.0
  %1152 = vmatmul.mubr.f32.gmra.mxu0 %v312
  %v1153 = vpop.f32.mrf.mxu0
  %v1154 = vadd.f32 %v237, %v1153
  %v1155 = vpop.f32.mrf.mxu0
  %1156 = vdwg.mxu0
  %1157 = vmatprep.subr.mxu0 0.0
  %1158 = vmatpush1.msra.mxu0 0.0
  %1159 = vmatprep.subr.mxu0 0.0
  %1160 = vmatpush1.msra.mxu0 0.0
  %1161 = vmatprep.subr.mxu0 0.0
  %1162 = vmatpush1.msra.mxu0 0.0
  %1163 = vmatprep.subr.mxu0 0.0
  %1164 = vmatpush1.msra.mxu0 0.0
  %1165 = vmatprep.subr.mxu0 0.0
  %1166 = vmatpush1.msra.mxu0 0.0
  %1167 = vmatprep.subr.mxu0 0.0
  %1168 = vmatpush1.msra.mxu0 0.0
  %1169 = vmatprep.subr.mxu0 0.0
  %1170 = vmatpush1.msra.mxu0 0.0
  %1171 = vmatprep.subr.mxu0 0.0
  %1172 = vmatpush1.msra.mxu0 0.0
  %1173 = vmatprep.subr.mxu0 0.0
  %1174 = vmatpush1.msra.mxu0 0.0
  %1175 = vmatprep.subr.mxu0 0.0
  %1176 = vmatpush1.msra.mxu0 0.0
  %1177 = vmatprep.subr.mxu0 0.0
  %1178 = vmatpush1.msra.mxu0 0.0
  %1179 = vmatprep.subr.mxu0 0.0
  %1180 = vmatpush1.msra.mxu0 0.0
  %1181 = vmatprep.subr.mxu0 0.0
  %1182 = vmatpush1.msra.mxu0 %v97
  %1183 = vmatprep.subr.mxu0 0.0
  %1184 = vmatpush1.msra.mxu0 %v96
  %1185 = vmatprep.subr.mxu0 0.0
  %1186 = vmatpush1.msra.mxu0 %v95
  %1187 = vmatprep.subr.mxu0 0.0
  %1188 = vmatpush1.msra.mxu0 %v94
  %1189 = vmatprep.subr.mxu0 0.0
  %1190 = vmatpush2.msra.mxu0 0.0
  %1191 = vmatprep.subr.mxu0 0.0
  %1192 = vmatpush2.msra.mxu0 0.0
  %1193 = vmatprep.subr.mxu0 0.0
  %1194 = vmatpush2.msra.mxu0 0.0
  %1195 = vmatprep.subr.mxu0 0.0
  %1196 = vmatpush2.msra.mxu0 0.0
  %1197 = vmatprep.subr.mxu0 0.0
  %1198 = vmatpush2.msra.mxu0 0.0
  %1199 = vmatprep.subr.mxu0 0.0
  %1200 = vmatpush2.msra.mxu0 0.0
  %1201 = vmatprep.subr.mxu0 0.0
  %1202 = vmatpush2.msra.mxu0 0.0
  %1203 = vmatprep.subr.mxu0 0.0
  %1204 = vmatpush2.msra.mxu0 0.0
  %1205 = vmatprep.subr.mxu0 0.0
  %1206 = vmatpush2.msra.mxu0 0.0
  %1207 = vmatprep.subr.mxu0 0.0
  %1208 = vmatpush2.msra.mxu0 0.0
  %1209 = vmatprep.subr.mxu0 0.0
  %1210 = vmatpush2.msra.mxu0 0.0
  %1211 = vmatprep.subr.mxu0 0.0
  %1212 = vmatpush2.msra.mxu0 0.0
  %1213 = vmatprep.subr.mxu0 0.0
  %1214 = vmatpush2.msra.mxu0 0.0
  %1215 = vmatprep.subr.mxu0 0.0
  %1216 = vmatpush2.msra.mxu0 0.0
  %1217 = vmatprep.subr.mxu0 0.0
  %1218 = vmatpush2.msra.mxu0 0.0
  %1219 = vmatprep.subr.mxu0 0.0
  %1220 = vmatpush2.msra.mxu0 0.0
  %1221 = vmatprep.mubr.f32.mxu0 0.0
  %1222 = vmatmul.mubr.f32.gmra.mxu0 %v595
  %v1223 = vpop.f32.mrf.mxu0
  %v1224 = vadd.f32 %v241, %v1223
  %v1225 = vpop.f32.mrf.mxu0
  %1226 = vdwg.mxu0
  %1227 = vmatprep.subr.mxu0 0.0
  %1228 = vmatpush1.msra.mxu0 0.0
  %1229 = vmatprep.subr.mxu0 0.0
  %1230 = vmatpush1.msra.mxu0 0.0
  %1231 = vmatprep.subr.mxu0 0.0
  %1232 = vmatpush1.msra.mxu0 0.0
  %1233 = vmatprep.subr.mxu0 0.0
  %1234 = vmatpush1.msra.mxu0 0.0
  %1235 = vmatprep.subr.mxu0 0.0
  %1236 = vmatpush1.msra.mxu0 0.0
  %1237 = vmatprep.subr.mxu0 0.0
  %1238 = vmatpush1.msra.mxu0 0.0
  %1239 = vmatprep.subr.mxu0 0.0
  %1240 = vmatpush1.msra.mxu0 0.0
  %1241 = vmatprep.subr.mxu0 0.0
  %1242 = vmatpush1.msra.mxu0 0.0
  %1243 = vmatprep.subr.mxu0 0.0
  %1244 = vmatpush1.msra.mxu0 0.0
  %1245 = vmatprep.subr.mxu0 0.0
  %1246 = vmatpush1.msra.mxu0 0.0
  %1247 = vmatprep.subr.mxu0 0.0
  %1248 = vmatpush1.msra.mxu0 0.0
  %1249 = vmatprep.subr.mxu0 0.0
  %1250 = vmatpush1.msra.mxu0 0.0
  %1251 = vmatprep.subr.mxu0 0.0
  %1252 = vmatpush1.msra.mxu0 %v101
  %1253 = vmatprep.subr.mxu0 0.0
  %1254 = vmatpush1.msra.mxu0 %v100
  %1255 = vmatprep.subr.mxu0 0.0
  %1256 = vmatpush1.msra.mxu0 %v99
  %1257 = vmatprep.subr.mxu0 0.0
  %1258 = vmatpush1.msra.mxu0 %v98
  %1259 = vmatprep.subr.mxu0 0.0
  %1260 = vmatpush2.msra.mxu0 0.0
  %1261 = vmatprep.subr.mxu0 0.0
  %1262 = vmatpush2.msra.mxu0 0.0
  %1263 = vmatprep.subr.mxu0 0.0
  %1264 = vmatpush2.msra.mxu0 0.0
  %1265 = vmatprep.subr.mxu0 0.0
  %1266 = vmatpush2.msra.mxu0 0.0
  %1267 = vmatprep.subr.mxu0 0.0
  %1268 = vmatpush2.msra.mxu0 0.0
  %1269 = vmatprep.subr.mxu0 0.0
  %1270 = vmatpush2.msra.mxu0 0.0
  %1271 = vmatprep.subr.mxu0 0.0
  %1272 = vmatpush2.msra.mxu0 0.0
  %1273 = vmatprep.subr.mxu0 0.0
  %1274 = vmatpush2.msra.mxu0 0.0
  %1275 = vmatprep.subr.mxu0 0.0
  %1276 = vmatpush2.msra.mxu0 0.0
  %1277 = vmatprep.subr.mxu0 0.0
  %1278 = vmatpush2.msra.mxu0 0.0
  %1279 = vmatprep.subr.mxu0 0.0
  %1280 = vmatpush2.msra.mxu0 0.0
  %1281 = vmatprep.subr.mxu0 0.0
  %1282 = vmatpush2.msra.mxu0 0.0
  %1283 = vmatprep.subr.mxu0 0.0
  %1284 = vmatpush2.msra.mxu0 0.0
  %1285 = vmatprep.subr.mxu0 0.0
  %1286 = vmatpush2.msra.mxu0 0.0
  %1287 = vmatprep.subr.mxu0 0.0
  %1288 = vmatpush2.msra.mxu0 0.0
  %1289 = vmatprep.subr.mxu0 0.0
  %1290 = vmatpush2.msra.mxu0 0.0
  %1291 = vmatprep.mubr.f32.mxu0 0.0
  %1292 = vmatmul.mubr.f32.gmra.mxu0 %v595
  %v1293 = vpop.f32.mrf.mxu0
  %v1294 = vadd.f32 %v245, %v1293
  %v1295 = vpop.f32.mrf.mxu0
  %1296 = vdwg.mxu0
  %1297 = vmatprep.subr.mxu0 0.0
  %1298 = vmatpush1.msra.mxu0 0.0
  %1299 = vmatprep.subr.mxu0 0.0
  %1300 = vmatpush1.msra.mxu0 0.0
  %1301 = vmatprep.subr.mxu0 0.0
  %1302 = vmatpush1.msra.mxu0 0.0
  %1303 = vmatprep.subr.mxu0 0.0
  %1304 = vmatpush1.msra.mxu0 0.0
  %1305 = vmatprep.subr.mxu0 0.0
  %1306 = vmatpush1.msra.mxu0 0.0
  %1307 = vmatprep.subr.mxu0 0.0
  %1308 = vmatpush1.msra.mxu0 0.0
  %1309 = vmatprep.subr.mxu0 0.0
  %1310 = vmatpush1.msra.mxu0 0.0
  %1311 = vmatprep.subr.mxu0 0.0
  %1312 = vmatpush1.msra.mxu0 0.0
  %1313 = vmatprep.subr.mxu0 0.0
  %1314 = vmatpush1.msra.mxu0 0.0
  %1315 = vmatprep.subr.mxu0 0.0
  %1316 = vmatpush1.msra.mxu0 0.0
  %1317 = vmatprep.subr.mxu0 0.0
  %1318 = vmatpush1.msra.mxu0 0.0
  %1319 = vmatprep.subr.mxu0 0.0
  %1320 = vmatpush1.msra.mxu0 0.0
  %1321 = vmatprep.subr.mxu0 0.0
  %1322 = vmatpush1.msra.mxu0 %v105
  %1323 = vmatprep.subr.mxu0 0.0
  %1324 = vmatpush1.msra.mxu0 %v104
  %1325 = vmatprep.subr.mxu0 0.0
  %1326 = vmatpush1.msra.mxu0 %v103
  %1327 = vmatprep.subr.mxu0 0.0
  %1328 = vmatpush1.msra.mxu0 %v102
  %1329 = vmatprep.subr.mxu0 0.0
  %1330 = vmatpush2.msra.mxu0 0.0
  %1331 = vmatprep.subr.mxu0 0.0
  %1332 = vmatpush2.msra.mxu0 0.0
  %1333 = vmatprep.subr.mxu0 0.0
  %1334 = vmatpush2.msra.mxu0 0.0
  %1335 = vmatprep.subr.mxu0 0.0
  %1336 = vmatpush2.msra.mxu0 0.0
  %1337 = vmatprep.subr.mxu0 0.0
  %1338 = vmatpush2.msra.mxu0 0.0
  %1339 = vmatprep.subr.mxu0 0.0
  %1340 = vmatpush2.msra.mxu0 0.0
  %1341 = vmatprep.subr.mxu0 0.0
  %1342 = vmatpush2.msra.mxu0 0.0
  %1343 = vmatprep.subr.mxu0 0.0
  %1344 = vmatpush2.msra.mxu0 0.0
  %1345 = vmatprep.subr.mxu0 0.0
  %1346 = vmatpush2.msra.mxu0 0.0
  %1347 = vmatprep.subr.mxu0 0.0
  %1348 = vmatpush2.msra.mxu0 0.0
  %1349 = vmatprep.subr.mxu0 0.0
  %1350 = vmatpush2.msra.mxu0 0.0
  %1351 = vmatprep.subr.mxu0 0.0
  %1352 = vmatpush2.msra.mxu0 0.0
  %1353 = vmatprep.subr.mxu0 0.0
  %1354 = vmatpush2.msra.mxu0 0.0
  %1355 = vmatprep.subr.mxu0 0.0
  %1356 = vmatpush2.msra.mxu0 0.0
  %1357 = vmatprep.subr.mxu0 0.0
  %1358 = vmatpush2.msra.mxu0 0.0
  %1359 = vmatprep.subr.mxu0 0.0
  %1360 = vmatpush2.msra.mxu0 0.0
  %1361 = vmatprep.mubr.f32.mxu0 0.0
  %1362 = vmatmul.mubr.f32.gmra.mxu0 %v595
  %v1363 = vpop.f32.mrf.mxu0
  %v1364 = vadd.f32 %v249, %v1363
  %v1365 = vpop.f32.mrf.mxu0
  %1366 = vdwg.mxu0
  %1367 = vmatprep.subr.mxu0 0.0
  %1368 = vmatpush1.msra.mxu0 0.0
  %1369 = vmatprep.subr.mxu0 0.0
  %1370 = vmatpush1.msra.mxu0 0.0
  %1371 = vmatprep.subr.mxu0 0.0
  %1372 = vmatpush1.msra.mxu0 0.0
  %1373 = vmatprep.subr.mxu0 0.0
  %1374 = vmatpush1.msra.mxu0 0.0
  %1375 = vmatprep.subr.mxu0 0.0
  %1376 = vmatpush1.msra.mxu0 0.0
  %1377 = vmatprep.subr.mxu0 0.0
  %1378 = vmatpush1.msra.mxu0 0.0
  %1379 = vmatprep.subr.mxu0 0.0
  %1380 = vmatpush1.msra.mxu0 0.0
  %1381 = vmatprep.subr.mxu0 0.0
  %1382 = vmatpush1.msra.mxu0 0.0
  %1383 = vmatprep.subr.mxu0 0.0
  %1384 = vmatpush1.msra.mxu0 0.0
  %1385 = vmatprep.subr.mxu0 0.0
  %1386 = vmatpush1.msra.mxu0 0.0
  %1387 = vmatprep.subr.mxu0 0.0
  %1388 = vmatpush1.msra.mxu0 0.0
  %1389 = vmatprep.subr.mxu0 0.0
  %1390 = vmatpush1.msra.mxu0 0.0
  %1391 = vmatprep.subr.mxu0 0.0
  %1392 = vmatpush1.msra.mxu0 %v109
  %1393 = vmatprep.subr.mxu0 0.0
  %1394 = vmatpush1.msra.mxu0 %v108
  %1395 = vmatprep.subr.mxu0 0.0
  %1396 = vmatpush1.msra.mxu0 %v107
  %1397 = vmatprep.subr.mxu0 0.0
  %1398 = vmatpush1.msra.mxu0 %v106
  %1399 = vmatprep.subr.mxu0 0.0
  %1400 = vmatpush2.msra.mxu0 0.0
  %1401 = vmatprep.subr.mxu0 0.0
  %1402 = vmatpush2.msra.mxu0 0.0
  %1403 = vmatprep.subr.mxu0 0.0
  %1404 = vmatpush2.msra.mxu0 0.0
  %1405 = vmatprep.subr.mxu0 0.0
  %1406 = vmatpush2.msra.mxu0 0.0
  %1407 = vmatprep.subr.mxu0 0.0
  %1408 = vmatpush2.msra.mxu0 0.0
  %1409 = vmatprep.subr.mxu0 0.0
  %1410 = vmatpush2.msra.mxu0 0.0
  %1411 = vmatprep.subr.mxu0 0.0
  %1412 = vmatpush2.msra.mxu0 0.0
  %1413 = vmatprep.subr.mxu0 0.0
  %1414 = vmatpush2.msra.mxu0 0.0
  %1415 = vmatprep.subr.mxu0 0.0
  %1416 = vmatpush2.msra.mxu0 0.0
  %1417 = vmatprep.subr.mxu0 0.0
  %1418 = vmatpush2.msra.mxu0 0.0
  %1419 = vmatprep.subr.mxu0 0.0
  %1420 = vmatpush2.msra.mxu0 0.0
  %1421 = vmatprep.subr.mxu0 0.0
  %1422 = vmatpush2.msra.mxu0 0.0
  %1423 = vmatprep.subr.mxu0 0.0
  %1424 = vmatpush2.msra.mxu0 0.0
  %1425 = vmatprep.subr.mxu0 0.0
  %1426 = vmatpush2.msra.mxu0 0.0
  %1427 = vmatprep.subr.mxu0 0.0
  %1428 = vmatpush2.msra.mxu0 0.0
  %1429 = vmatprep.subr.mxu0 0.0
  %1430 = vmatpush2.msra.mxu0 0.0
  %1431 = vmatprep.mubr.f32.mxu0 0.0
  %1432 = vmatmul.mubr.f32.gmra.mxu0 %v595
  %v1433 = vpop.f32.mrf.mxu0
  %v1434 = vadd.f32 %v253, %v1433
  %v1435 = vpop.f32.mrf.mxu0
  %1436 = vdwg.mxu0
  %1437 = vmatprep.subr.mxu0 0.0
  %1438 = vmatpush1.msra.mxu0 0.0
  %1439 = vmatprep.subr.mxu0 0.0
  %1440 = vmatpush1.msra.mxu0 0.0
  %1441 = vmatprep.subr.mxu0 0.0
  %1442 = vmatpush1.msra.mxu0 0.0
  %1443 = vmatprep.subr.mxu0 0.0
  %1444 = vmatpush1.msra.mxu0 0.0
  %1445 = vmatprep.subr.mxu0 0.0
  %1446 = vmatpush1.msra.mxu0 0.0
  %1447 = vmatprep.subr.mxu0 0.0
  %1448 = vmatpush1.msra.mxu0 0.0
  %1449 = vmatprep.subr.mxu0 0.0
  %1450 = vmatpush1.msra.mxu0 0.0
  %1451 = vmatprep.subr.mxu0 0.0
  %1452 = vmatpush1.msra.mxu0 0.0
  %1453 = vmatprep.subr.mxu0 0.0
  %1454 = vmatpush1.msra.mxu0 0.0
  %1455 = vmatprep.subr.mxu0 0.0
  %1456 = vmatpush1.msra.mxu0 0.0
  %1457 = vmatprep.subr.mxu0 0.0
  %1458 = vmatpush1.msra.mxu0 0.0
  %1459 = vmatprep.subr.mxu0 0.0
  %1460 = vmatpush1.msra.mxu0 0.0
  %1461 = vmatprep.subr.mxu0 0.0
  %1462 = vmatpush1.msra.mxu0 %v113
  %1463 = vmatprep.subr.mxu0 0.0
  %1464 = vmatpush1.msra.mxu0 %v112
  %1465 = vmatprep.subr.mxu0 0.0
  %1466 = vmatpush1.msra.mxu0 %v111
  %1467 = vmatprep.subr.mxu0 0.0
  %1468 = vmatpush1.msra.mxu0 %v110
  %1469 = vmatprep.subr.mxu0 0.0
  %1470 = vmatpush2.msra.mxu0 0.0
  %1471 = vmatprep.subr.mxu0 0.0
  %1472 = vmatpush2.msra.mxu0 0.0
  %1473 = vmatprep.subr.mxu0 0.0
  %1474 = vmatpush2.msra.mxu0 0.0
  %1475 = vmatprep.subr.mxu0 0.0
  %1476 = vmatpush2.msra.mxu0 0.0
  %1477 = vmatprep.subr.mxu0 0.0
  %1478 = vmatpush2.msra.mxu0 0.0
  %1479 = vmatprep.subr.mxu0 0.0
  %1480 = vmatpush2.msra.mxu0 0.0
  %1481 = vmatprep.subr.mxu0 0.0
  %1482 = vmatpush2.msra.mxu0 0.0
  %1483 = vmatprep.subr.mxu0 0.0
  %1484 = vmatpush2.msra.mxu0 0.0
  %1485 = vmatprep.subr.mxu0 0.0
  %1486 = vmatpush2.msra.mxu0 0.0
  %1487 = vmatprep.subr.mxu0 0.0
  %1488 = vmatpush2.msra.mxu0 0.0
  %1489 = vmatprep.subr.mxu0 0.0
  %1490 = vmatpush2.msra.mxu0 0.0
  %1491 = vmatprep.subr.mxu0 0.0
  %1492 = vmatpush2.msra.mxu0 0.0
  %1493 = vmatprep.subr.mxu0 0.0
  %1494 = vmatpush2.msra.mxu0 0.0
  %1495 = vmatprep.subr.mxu0 0.0
  %1496 = vmatpush2.msra.mxu0 0.0
  %1497 = vmatprep.subr.mxu0 0.0
  %1498 = vmatpush2.msra.mxu0 0.0
  %1499 = vmatprep.subr.mxu0 0.0
  %1500 = vmatpush2.msra.mxu0 0.0
  %1501 = vmatprep.mubr.f32.mxu0 0.0
  %1502 = vmatmul.mubr.f32.gmra.mxu0 %v312
  %v1503 = vpop.f32.mrf.mxu0
  %v1504 = vadd.f32 %v257, %v1503
  %v1505 = vpop.f32.mrf.mxu0
  %1506 = vdwg.mxu0
  %1507 = vmatprep.subr.mxu0 0.0
  %1508 = vmatpush1.msra.mxu0 0.0
  %1509 = vmatprep.subr.mxu0 0.0
  %1510 = vmatpush1.msra.mxu0 0.0
  %1511 = vmatprep.subr.mxu0 0.0
  %1512 = vmatpush1.msra.mxu0 0.0
  %1513 = vmatprep.subr.mxu0 0.0
  %1514 = vmatpush1.msra.mxu0 0.0
  %1515 = vmatprep.subr.mxu0 0.0
  %1516 = vmatpush1.msra.mxu0 0.0
  %1517 = vmatprep.subr.mxu0 0.0
  %1518 = vmatpush1.msra.mxu0 0.0
  %1519 = vmatprep.subr.mxu0 0.0
  %1520 = vmatpush1.msra.mxu0 0.0
  %1521 = vmatprep.subr.mxu0 0.0
  %1522 = vmatpush1.msra.mxu0 0.0
  %1523 = vmatprep.subr.mxu0 0.0
  %1524 = vmatpush1.msra.mxu0 0.0
  %1525 = vmatprep.subr.mxu0 0.0
  %1526 = vmatpush1.msra.mxu0 0.0
  %1527 = vmatprep.subr.mxu0 0.0
  %1528 = vmatpush1.msra.mxu0 0.0
  %1529 = vmatprep.subr.mxu0 0.0
  %1530 = vmatpush1.msra.mxu0 0.0
  %1531 = vmatprep.subr.mxu0 0.0
  %1532 = vmatpush1.msra.mxu0 %v117
  %1533 = vmatprep.subr.mxu0 0.0
  %1534 = vmatpush1.msra.mxu0 %v116
  %1535 = vmatprep.subr.mxu0 0.0
  %1536 = vmatpush1.msra.mxu0 %v115
  %1537 = vmatprep.subr.mxu0 0.0
  %1538 = vmatpush1.msra.mxu0 %v114
  %1539 = vmatprep.subr.mxu0 0.0
  %1540 = vmatpush2.msra.mxu0 0.0
  %1541 = vmatprep.subr.mxu0 0.0
  %1542 = vmatpush2.msra.mxu0 0.0
  %1543 = vmatprep.subr.mxu0 0.0
  %1544 = vmatpush2.msra.mxu0 0.0
  %1545 = vmatprep.subr.mxu0 0.0
  %1546 = vmatpush2.msra.mxu0 0.0
  %1547 = vmatprep.subr.mxu0 0.0
  %1548 = vmatpush2.msra.mxu0 0.0
  %1549 = vmatprep.subr.mxu0 0.0
  %1550 = vmatpush2.msra.mxu0 0.0
  %1551 = vmatprep.subr.mxu0 0.0
  %1552 = vmatpush2.msra.mxu0 0.0
  %1553 = vmatprep.subr.mxu0 0.0
  %1554 = vmatpush2.msra.mxu0 0.0
  %1555 = vmatprep.subr.mxu0 0.0
  %1556 = vmatpush2.msra.mxu0 0.0
  %1557 = vmatprep.subr.mxu0 0.0
  %1558 = vmatpush2.msra.mxu0 0.0
  %1559 = vmatprep.subr.mxu0 0.0
  %1560 = vmatpush2.msra.mxu0 0.0
  %1561 = vmatprep.subr.mxu0 0.0
  %1562 = vmatpush2.msra.mxu0 0.0
  %1563 = vmatprep.subr.mxu0 0.0
  %1564 = vmatpush2.msra.mxu0 0.0
  %1565 = vmatprep.subr.mxu0 0.0
  %1566 = vmatpush2.msra.mxu0 0.0
  %1567 = vmatprep.subr.mxu0 0.0
  %1568 = vmatpush2.msra.mxu0 0.0
  %1569 = vmatprep.subr.mxu0 0.0
  %1570 = vmatpush2.msra.mxu0 0.0
  %1571 = vmatprep.mubr.f32.mxu0 0.0
  %1572 = vmatmul.mubr.f32.gmra.mxu0 %v312
  %v1573 = vpop.f32.mrf.mxu0
  %v1574 = vadd.f32 %v261, %v1573
  %v1575 = vpop.f32.mrf.mxu0
  %1576 = vdwg.mxu0
  %1577 = vmatprep.subr.mxu0 0.0
  %1578 = vmatpush1.msra.mxu0 0.0
  %1579 = vmatprep.subr.mxu0 0.0
  %1580 = vmatpush1.msra.mxu0 0.0
  %1581 = vmatprep.subr.mxu0 0.0
  %1582 = vmatpush1.msra.mxu0 0.0
  %1583 = vmatprep.subr.mxu0 0.0
  %1584 = vmatpush1.msra.mxu0 0.0
  %1585 = vmatprep.subr.mxu0 0.0
  %1586 = vmatpush1.msra.mxu0 0.0
  %1587 = vmatprep.subr.mxu0 0.0
  %1588 = vmatpush1.msra.mxu0 0.0
  %1589 = vmatprep.subr.mxu0 0.0
  %1590 = vmatpush1.msra.mxu0 0.0
  %1591 = vmatprep.subr.mxu0 0.0
  %1592 = vmatpush1.msra.mxu0 0.0
  %1593 = vmatprep.subr.mxu0 0.0
  %1594 = vmatpush1.msra.mxu0 0.0
  %1595 = vmatprep.subr.mxu0 0.0
  %1596 = vmatpush1.msra.mxu0 0.0
  %1597 = vmatprep.subr.mxu0 0.0
  %1598 = vmatpush1.msra.mxu0 0.0
  %1599 = vmatprep.subr.mxu0 0.0
  %1600 = vmatpush1.msra.mxu0 0.0
  %1601 = vmatprep.subr.mxu0 0.0
  %1602 = vmatpush1.msra.mxu0 %v121
  %1603 = vmatprep.subr.mxu0 0.0
  %1604 = vmatpush1.msra.mxu0 %v120
  %1605 = vmatprep.subr.mxu0 0.0
  %1606 = vmatpush1.msra.mxu0 %v119
  %1607 = vmatprep.subr.mxu0 0.0
  %1608 = vmatpush1.msra.mxu0 %v118
  %1609 = vmatprep.subr.mxu0 0.0
  %1610 = vmatpush2.msra.mxu0 0.0
  %1611 = vmatprep.subr.mxu0 0.0
  %1612 = vmatpush2.msra.mxu0 0.0
  %1613 = vmatprep.subr.mxu0 0.0
  %1614 = vmatpush2.msra.mxu0 0.0
  %1615 = vmatprep.subr.mxu0 0.0
  %1616 = vmatpush2.msra.mxu0 0.0
  %1617 = vmatprep.subr.mxu0 0.0
  %1618 = vmatpush2.msra.mxu0 0.0
  %1619 = vmatprep.subr.mxu0 0.0
  %1620 = vmatpush2.msra.mxu0 0.0
  %1621 = vmatprep.subr.mxu0 0.0
  %1622 = vmatpush2.msra.mxu0 0.0
  %1623 = vmatprep.subr.mxu0 0.0
  %1624 = vmatpush2.msra.mxu0 0.0
  %1625 = vmatprep.subr.mxu0 0.0
  %1626 = vmatpush2.msra.mxu0 0.0
  %1627 = vmatprep.subr.mxu0 0.0
  %1628 = vmatpush2.msra.mxu0 0.0
  %1629 = vmatprep.subr.mxu0 0.0
  %1630 = vmatpush2.msra.mxu0 0.0
  %1631 = vmatprep.subr.mxu0 0.0
  %1632 = vmatpush2.msra.mxu0 0.0
  %1633 = vmatprep.subr.mxu0 0.0
  %1634 = vmatpush2.msra.mxu0 0.0
  %1635 = vmatprep.subr.mxu0 0.0
  %1636 = vmatpush2.msra.mxu0 0.0
  %1637 = vmatprep.subr.mxu0 0.0
  %1638 = vmatpush2.msra.mxu0 0.0
  %1639 = vmatprep.subr.mxu0 0.0
  %1640 = vmatpush2.msra.mxu0 0.0
  %1641 = vmatprep.mubr.f32.mxu0 0.0
  %1642 = vmatmul.mubr.f32.gmra.mxu0 %v312
  %v1643 = vpop.f32.mrf.mxu0
  %v1644 = vadd.f32 %v265, %v1643
  %v1645 = vpop.f32.mrf.mxu0
  %1646 = vdwg.mxu0
  %1647 = vmatprep.subr.mxu0 0.0
  %1648 = vmatpush1.msra.mxu0 0.0
  %1649 = vmatprep.subr.mxu0 0.0
  %1650 = vmatpush1.msra.mxu0 0.0
  %1651 = vmatprep.subr.mxu0 0.0
  %1652 = vmatpush1.msra.mxu0 0.0
  %1653 = vmatprep.subr.mxu0 0.0
  %1654 = vmatpush1.msra.mxu0 0.0
  %1655 = vmatprep.subr.mxu0 0.0
  %1656 = vmatpush1.msra.mxu0 0.0
  %1657 = vmatprep.subr.mxu0 0.0
  %1658 = vmatpush1.msra.mxu0 0.0
  %1659 = vmatprep.subr.mxu0 0.0
  %1660 = vmatpush1.msra.mxu0 0.0
  %1661 = vmatprep.subr.mxu0 0.0
  %1662 = vmatpush1.msra.mxu0 0.0
  %1663 = vmatprep.subr.mxu0 0.0
  %1664 = vmatpush1.msra.mxu0 0.0
  %1665 = vmatprep.subr.mxu0 0.0
  %1666 = vmatpush1.msra.mxu0 0.0
  %1667 = vmatprep.subr.mxu0 0.0
  %1668 = vmatpush1.msra.mxu0 0.0
  %1669 = vmatprep.subr.mxu0 0.0
  %1670 = vmatpush1.msra.mxu0 0.0
  %1671 = vmatprep.subr.mxu0 0.0
  %1672 = vmatpush1.msra.mxu0 %v125
  %1673 = vmatprep.subr.mxu0 0.0
  %1674 = vmatpush1.msra.mxu0 %v124
  %1675 = vmatprep.subr.mxu0 0.0
  %1676 = vmatpush1.msra.mxu0 %v123
  %1677 = vmatprep.subr.mxu0 0.0
  %1678 = vmatpush1.msra.mxu0 %v122
  %1679 = vmatprep.subr.mxu0 0.0
  %1680 = vmatpush2.msra.mxu0 0.0
  %1681 = vmatprep.subr.mxu0 0.0
  %1682 = vmatpush2.msra.mxu0 0.0
  %1683 = vmatprep.subr.mxu0 0.0
  %1684 = vmatpush2.msra.mxu0 0.0
  %1685 = vmatprep.subr.mxu0 0.0
  %1686 = vmatpush2.msra.mxu0 0.0
  %1687 = vmatprep.subr.mxu0 0.0
  %1688 = vmatpush2.msra.mxu0 0.0
  %1689 = vmatprep.subr.mxu0 0.0
  %1690 = vmatpush2.msra.mxu0 0.0
  %1691 = vmatprep.subr.mxu0 0.0
  %1692 = vmatpush2.msra.mxu0 0.0
  %1693 = vmatprep.subr.mxu0 0.0
  %1694 = vmatpush2.msra.mxu0 0.0
  %1695 = vmatprep.subr.mxu0 0.0
  %1696 = vmatpush2.msra.mxu0 0.0
  %1697 = vmatprep.subr.mxu0 0.0
  %1698 = vmatpush2.msra.mxu0 0.0
  %1699 = vmatprep.subr.mxu0 0.0
  %1700 = vmatpush2.msra.mxu0 0.0
  %1701 = vmatprep.subr.mxu0 0.0
  %1702 = vmatpush2.msra.mxu0 0.0
  %1703 = vmatprep.subr.mxu0 0.0
  %1704 = vmatpush2.msra.mxu0 0.0
  %1705 = vmatprep.subr.mxu0 0.0
  %1706 = vmatpush2.msra.mxu0 0.0
  %1707 = vmatprep.subr.mxu0 0.0
  %1708 = vmatpush2.msra.mxu0 0.0
  %1709 = vmatprep.subr.mxu0 0.0
  %1710 = vmatpush2.msra.mxu0 0.0
  %1711 = vmatprep.mubr.f32.mxu0 0.0
  %1712 = vmatmul.mubr.f32.gmra.mxu0 %v312
  %v1713 = vpop.f32.mrf.mxu0
  %v1714 = vadd.f32 %v269, %v1713
  %v1715 = vpop.f32.mrf.mxu0
  %1716 = vdwg.mxu0
  %1717 = vmatprep.subr.mxu0 0.0
  %1718 = vmatpush1.msra.mxu0 0.0
  %1719 = vmatprep.subr.mxu0 0.0
  %1720 = vmatpush1.msra.mxu0 0.0
  %1721 = vmatprep.subr.mxu0 0.0
  %1722 = vmatpush1.msra.mxu0 0.0
  %1723 = vmatprep.subr.mxu0 0.0
  %1724 = vmatpush1.msra.mxu0 0.0
  %1725 = vmatprep.subr.mxu0 0.0
  %1726 = vmatpush1.msra.mxu0 0.0
  %1727 = vmatprep.subr.mxu0 0.0
  %1728 = vmatpush1.msra.mxu0 0.0
  %1729 = vmatprep.subr.mxu0 0.0
  %1730 = vmatpush1.msra.mxu0 0.0
  %1731 = vmatprep.subr.mxu0 0.0
  %1732 = vmatpush1.msra.mxu0 0.0
  %1733 = vmatprep.subr.mxu0 0.0
  %1734 = vmatpush1.msra.mxu0 0.0
  %1735 = vmatprep.subr.mxu0 0.0
  %1736 = vmatpush1.msra.mxu0 0.0
  %1737 = vmatprep.subr.mxu0 0.0
  %1738 = vmatpush1.msra.mxu0 0.0
  %1739 = vmatprep.subr.mxu0 0.0
  %1740 = vmatpush1.msra.mxu0 0.0
  %1741 = vmatprep.subr.mxu0 0.0
  %1742 = vmatpush1.msra.mxu0 %v129
  %1743 = vmatprep.subr.mxu0 0.0
  %1744 = vmatpush1.msra.mxu0 %v128
  %1745 = vmatprep.subr.mxu0 0.0
  %1746 = vmatpush1.msra.mxu0 %v127
  %1747 = vmatprep.subr.mxu0 0.0
  %1748 = vmatpush1.msra.mxu0 %v126
  %1749 = vmatprep.subr.mxu0 0.0
  %1750 = vmatpush2.msra.mxu0 0.0
  %1751 = vmatprep.subr.mxu0 0.0
  %1752 = vmatpush2.msra.mxu0 0.0
  %1753 = vmatprep.subr.mxu0 0.0
  %1754 = vmatpush2.msra.mxu0 0.0
  %1755 = vmatprep.subr.mxu0 0.0
  %1756 = vmatpush2.msra.mxu0 0.0
  %1757 = vmatprep.subr.mxu0 0.0
  %1758 = vmatpush2.msra.mxu0 0.0
  %1759 = vmatprep.subr.mxu0 0.0
  %1760 = vmatpush2.msra.mxu0 0.0
  %1761 = vmatprep.subr.mxu0 0.0
  %1762 = vmatpush2.msra.mxu0 0.0
  %1763 = vmatprep.subr.mxu0 0.0
  %1764 = vmatpush2.msra.mxu0 0.0
  %1765 = vmatprep.subr.mxu0 0.0
  %1766 = vmatpush2.msra.mxu0 0.0
  %1767 = vmatprep.subr.mxu0 0.0
  %1768 = vmatpush2.msra.mxu0 0.0
  %1769 = vmatprep.subr.mxu0 0.0
  %1770 = vmatpush2.msra.mxu0 0.0
  %1771 = vmatprep.subr.mxu0 0.0
  %1772 = vmatpush2.msra.mxu0 0.0
  %1773 = vmatprep.subr.mxu0 0.0
  %1774 = vmatpush2.msra.mxu0 0.0
  %1775 = vmatprep.subr.mxu0 0.0
  %1776 = vmatpush2.msra.mxu0 0.0
  %1777 = vmatprep.subr.mxu0 0.0
  %1778 = vmatpush2.msra.mxu0 0.0
  %1779 = vmatprep.subr.mxu0 0.0
  %1780 = vmatpush2.msra.mxu0 0.0
  %1781 = vmatprep.mubr.f32.mxu0 0.0
  %1782 = vmatmul.mubr.f32.gmra.mxu0 %v595
  %v1783 = vpop.f32.mrf.mxu0
  %v1784 = vadd.f32 %v273, %v1783
  %v1785 = vpop.f32.mrf.mxu0
  %1786 = vdwg.mxu0
  %1787 = vmatprep.subr.mxu0 0.0
  %1788 = vmatpush1.msra.mxu0 0.0
  %1789 = vmatprep.subr.mxu0 0.0
  %1790 = vmatpush1.msra.mxu0 0.0
  %1791 = vmatprep.subr.mxu0 0.0
  %1792 = vmatpush1.msra.mxu0 0.0
  %1793 = vmatprep.subr.mxu0 0.0
  %1794 = vmatpush1.msra.mxu0 0.0
  %1795 = vmatprep.subr.mxu0 0.0
  %1796 = vmatpush1.msra.mxu0 0.0
  %1797 = vmatprep.subr.mxu0 0.0
  %1798 = vmatpush1.msra.mxu0 0.0
  %1799 = vmatprep.subr.mxu0 0.0
  %1800 = vmatpush1.msra.mxu0 0.0
  %1801 = vmatprep.subr.mxu0 0.0
  %1802 = vmatpush1.msra.mxu0 0.0
  %1803 = vmatprep.subr.mxu0 0.0
  %1804 = vmatpush1.msra.mxu0 0.0
  %1805 = vmatprep.subr.mxu0 0.0
  %1806 = vmatpush1.msra.mxu0 0.0
  %1807 = vmatprep.subr.mxu0 0.0
  %1808 = vmatpush1.msra.mxu0 0.0
  %1809 = vmatprep.subr.mxu0 0.0
  %1810 = vmatpush1.msra.mxu0 0.0
  %1811 = vmatprep.subr.mxu0 0.0
  %1812 = vmatpush1.msra.mxu0 %v133
  %1813 = vmatprep.subr.mxu0 0.0
  %1814 = vmatpush1.msra.mxu0 %v132
  %1815 = vmatprep.subr.mxu0 0.0
  %1816 = vmatpush1.msra.mxu0 %v131
  %1817 = vmatprep.subr.mxu0 0.0
  %1818 = vmatpush1.msra.mxu0 %v130
  %1819 = vmatprep.subr.mxu0 0.0
  %1820 = vmatpush2.msra.mxu0 0.0
  %1821 = vmatprep.subr.mxu0 0.0
  %1822 = vmatpush2.msra.mxu0 0.0
  %1823 = vmatprep.subr.mxu0 0.0
  %1824 = vmatpush2.msra.mxu0 0.0
  %1825 = vmatprep.subr.mxu0 0.0
  %1826 = vmatpush2.msra.mxu0 0.0
  %1827 = vmatprep.subr.mxu0 0.0
  %1828 = vmatpush2.msra.mxu0 0.0
  %1829 = vmatprep.subr.mxu0 0.0
  %1830 = vmatpush2.msra.mxu0 0.0
  %1831 = vmatprep.subr.mxu0 0.0
  %1832 = vmatpush2.msra.mxu0 0.0
  %1833 = vmatprep.subr.mxu0 0.0
  %1834 = vmatpush2.msra.mxu0 0.0
  %1835 = vmatprep.subr.mxu0 0.0
  %1836 = vmatpush2.msra.mxu0 0.0
  %1837 = vmatprep.subr.mxu0 0.0
  %1838 = vmatpush2.msra.mxu0 0.0
  %1839 = vmatprep.subr.mxu0 0.0
  %1840 = vmatpush2.msra.mxu0 0.0
  %1841 = vmatprep.subr.mxu0 0.0
  %1842 = vmatpush2.msra.mxu0 0.0
  %1843 = vmatprep.subr.mxu0 0.0
  %1844 = vmatpush2.msra.mxu0 0.0
  %1845 = vmatprep.subr.mxu0 0.0
  %1846 = vmatpush2.msra.mxu0 0.0
  %1847 = vmatprep.subr.mxu0 0.0
  %1848 = vmatpush2.msra.mxu0 0.0
  %1849 = vmatprep.subr.mxu0 0.0
  %1850 = vmatpush2.msra.mxu0 0.0
  %1851 = vmatprep.mubr.f32.mxu0 0.0
  %1852 = vmatmul.mubr.f32.gmra.mxu0 %v595
  %v1853 = vpop.f32.mrf.mxu0
  %v1854 = vadd.f32 %v277, %v1853
  %v1855 = vpop.f32.mrf.mxu0
  %1856 = vdwg.mxu0
  %1857 = vmatprep.subr.mxu0 0.0
  %1858 = vmatpush1.msra.mxu0 0.0
  %1859 = vmatprep.subr.mxu0 0.0
  %1860 = vmatpush1.msra.mxu0 0.0
  %1861 = vmatprep.subr.mxu0 0.0
  %1862 = vmatpush1.msra.mxu0 0.0
  %1863 = vmatprep.subr.mxu0 0.0
  %1864 = vmatpush1.msra.mxu0 0.0
  %1865 = vmatprep.subr.mxu0 0.0
  %1866 = vmatpush1.msra.mxu0 0.0
  %1867 = vmatprep.subr.mxu0 0.0
  %1868 = vmatpush1.msra.mxu0 0.0
  %1869 = vmatprep.subr.mxu0 0.0
  %1870 = vmatpush1.msra.mxu0 0.0
  %1871 = vmatprep.subr.mxu0 0.0
  %1872 = vmatpush1.msra.mxu0 0.0
  %1873 = vmatprep.subr.mxu0 0.0
  %1874 = vmatpush1.msra.mxu0 0.0
  %1875 = vmatprep.subr.mxu0 0.0
  %1876 = vmatpush1.msra.mxu0 0.0
  %1877 = vmatprep.subr.mxu0 0.0
  %1878 = vmatpush1.msra.mxu0 0.0
  %1879 = vmatprep.subr.mxu0 0.0
  %1880 = vmatpush1.msra.mxu0 0.0
  %1881 = vmatprep.subr.mxu0 0.0
  %1882 = vmatpush1.msra.mxu0 %v137
  %1883 = vmatprep.subr.mxu0 0.0
  %1884 = vmatpush1.msra.mxu0 %v136
  %1885 = vmatprep.subr.mxu0 0.0
  %1886 = vmatpush1.msra.mxu0 %v135
  %1887 = vmatprep.subr.mxu0 0.0
  %1888 = vmatpush1.msra.mxu0 %v134
  %1889 = vmatprep.subr.mxu0 0.0
  %1890 = vmatpush2.msra.mxu0 0.0
  %1891 = vmatprep.subr.mxu0 0.0
  %1892 = vmatpush2.msra.mxu0 0.0
  %1893 = vmatprep.subr.mxu0 0.0
  %1894 = vmatpush2.msra.mxu0 0.0
  %1895 = vmatprep.subr.mxu0 0.0
  %1896 = vmatpush2.msra.mxu0 0.0
  %1897 = vmatprep.subr.mxu0 0.0
  %1898 = vmatpush2.msra.mxu0 0.0
  %1899 = vmatprep.subr.mxu0 0.0
  %1900 = vmatpush2.msra.mxu0 0.0
  %1901 = vmatprep.subr.mxu0 0.0
  %1902 = vmatpush2.msra.mxu0 0.0
  %1903 = vmatprep.subr.mxu0 0.0
  %1904 = vmatpush2.msra.mxu0 0.0
  %1905 = vmatprep.subr.mxu0 0.0
  %1906 = vmatpush2.msra.mxu0 0.0
  %1907 = vmatprep.subr.mxu0 0.0
  %1908 = vmatpush2.msra.mxu0 0.0
  %1909 = vmatprep.subr.mxu0 0.0
  %1910 = vmatpush2.msra.mxu0 0.0
  %1911 = vmatprep.subr.mxu0 0.0
  %1912 = vmatpush2.msra.mxu0 0.0
  %1913 = vmatprep.subr.mxu0 0.0
  %1914 = vmatpush2.msra.mxu0 0.0
  %1915 = vmatprep.subr.mxu0 0.0
  %1916 = vmatpush2.msra.mxu0 0.0
  %1917 = vmatprep.subr.mxu0 0.0
  %1918 = vmatpush2.msra.mxu0 0.0
  %1919 = vmatprep.subr.mxu0 0.0
  %1920 = vmatpush2.msra.mxu0 0.0
  %1921 = vmatprep.mubr.f32.mxu0 0.0
  %1922 = vmatmul.mubr.f32.gmra.mxu0 %v595
  %v1923 = vpop.f32.mrf.mxu0
  %v1924 = vadd.f32 %v281, %v1923
  %v1925 = vpop.f32.mrf.mxu0
  %1926 = vdwg.mxu0
  %1927 = vmatprep.subr.mxu0 0.0
  %1928 = vmatpush1.msra.mxu0 0.0
  %1929 = vmatprep.subr.mxu0 0.0
  %1930 = vmatpush1.msra.mxu0 0.0
  %1931 = vmatprep.subr.mxu0 0.0
  %1932 = vmatpush1.msra.mxu0 0.0
  %1933 = vmatprep.subr.mxu0 0.0
  %1934 = vmatpush1.msra.mxu0 0.0
  %1935 = vmatprep.subr.mxu0 0.0
  %1936 = vmatpush1.msra.mxu0 0.0
  %1937 = vmatprep.subr.mxu0 0.0
  %1938 = vmatpush1.msra.mxu0 0.0
  %1939 = vmatprep.subr.mxu0 0.0
  %1940 = vmatpush1.msra.mxu0 0.0
  %1941 = vmatprep.subr.mxu0 0.0
  %1942 = vmatpush1.msra.mxu0 0.0
  %1943 = vmatprep.subr.mxu0 0.0
  %1944 = vmatpush1.msra.mxu0 0.0
  %1945 = vmatprep.subr.mxu0 0.0
  %1946 = vmatpush1.msra.mxu0 0.0
  %1947 = vmatprep.subr.mxu0 0.0
  %1948 = vmatpush1.msra.mxu0 0.0
  %1949 = vmatprep.subr.mxu0 0.0
  %1950 = vmatpush1.msra.mxu0 0.0
  %1951 = vmatprep.subr.mxu0 0.0
  %1952 = vmatpush1.msra.mxu0 %v141
  %1953 = vmatprep.subr.mxu0 0.0
  %1954 = vmatpush1.msra.mxu0 %v140
  %1955 = vmatprep.subr.mxu0 0.0
  %1956 = vmatpush1.msra.mxu0 %v139
  %1957 = vmatprep.subr.mxu0 0.0
  %1958 = vmatpush1.msra.mxu0 %v138
  %1959 = vmatprep.subr.mxu0 0.0
  %1960 = vmatpush2.msra.mxu0 0.0
  %1961 = vmatprep.subr.mxu0 0.0
  %1962 = vmatpush2.msra.mxu0 0.0
  %1963 = vmatprep.subr.mxu0 0.0
  %1964 = vmatpush2.msra.mxu0 0.0
  %1965 = vmatprep.subr.mxu0 0.0
  %1966 = vmatpush2.msra.mxu0 0.0
  %1967 = vmatprep.subr.mxu0 0.0
  %1968 = vmatpush2.msra.mxu0 0.0
  %1969 = vmatprep.subr.mxu0 0.0
  %1970 = vmatpush2.msra.mxu0 0.0
  %1971 = vmatprep.subr.mxu0 0.0
  %1972 = vmatpush2.msra.mxu0 0.0
  %1973 = vmatprep.subr.mxu0 0.0
  %1974 = vmatpush2.msra.mxu0 0.0
  %1975 = vmatprep.subr.mxu0 0.0
  %1976 = vmatpush2.msra.mxu0 0.0
  %1977 = vmatprep.subr.mxu0 0.0
  %1978 = vmatpush2.msra.mxu0 0.0
  %1979 = vmatprep.subr.mxu0 0.0
  %1980 = vmatpush2.msra.mxu0 0.0
  %1981 = vmatprep.subr.mxu0 0.0
  %1982 = vmatpush2.msra.mxu0 0.0
  %1983 = vmatprep.subr.mxu0 0.0
  %1984 = vmatpush2.msra.mxu0 0.0
  %1985 = vmatprep.subr.mxu0 0.0
  %1986 = vmatpush2.msra.mxu0 0.0
  %1987 = vmatprep.subr.mxu0 0.0
  %1988 = vmatpush2.msra.mxu0 0.0
  %1989 = vmatprep.subr.mxu0 0.0
  %1990 = vmatpush2.msra.mxu0 0.0
  %1991 = vmatprep.mubr.f32.mxu0 0.0
  %1992 = vmatmul.mubr.f32.gmra.mxu0 %v595
  %v1993 = vpop.f32.mrf.mxu0
  %v1994 = vadd.f32 %v285, %v1993
  %v1995 = vpop.f32.mrf.mxu0
  %1996 = vdwg.mxu0
  %vm1997 = vcmask 64512
  %v1999 = vsel %vm1997, %v381, 0
  %v2002 = vsel %vm1997, %v944, 0
  %2004 = vmatprep.subr.mxu0 0.0
  %2005 = vmatpush1.xpose.msra.mxu0 0.0
  %2006 = vmatprep.subr.mxu0 0.0
  %2007 = vmatpush1.xpose.msra.mxu0 0.0
  %2008 = vmatprep.subr.mxu0 0.0
  %2009 = vmatpush1.xpose.msra.mxu0 0.0
  %2010 = vmatprep.subr.mxu0 0.0
  %2011 = vmatpush1.xpose.msra.mxu0 0.0
  %2012 = vmatprep.subr.mxu0 0.0
  %2013 = vmatpush1.xpose.msra.mxu0 0.0
  %2014 = vmatprep.subr.mxu0 0.0
  %2015 = vmatpush1.xpose.msra.mxu0 0.0
  %2016 = vmatprep.subr.mxu0 0.0
  %2017 = vmatpush1.xpose.msra.mxu0 0.0
  %2018 = vmatprep.subr.mxu0 0.0
  %2019 = vmatpush1.xpose.msra.mxu0 0.0
  %2020 = vmatprep.subr.mxu0 0.0
  %2021 = vmatpush1.xpose.msra.mxu0 0.0
  %2022 = vmatprep.subr.mxu0 0.0
  %2023 = vmatpush1.xpose.msra.mxu0 0.0
  %2024 = vmatprep.subr.mxu0 0.0
  %2025 = vmatpush1.xpose.msra.mxu0 0.0
  %2026 = vmatprep.subr.mxu0 0.0
  %2027 = vmatpush1.xpose.msra.mxu0 0.0
  %2028 = vmatprep.subr.mxu0 0.0
  %2029 = vmatpush1.xpose.msra.mxu0 0.0
  %2030 = vmatprep.subr.mxu0 0.0
  %2031 = vmatpush1.xpose.msra.mxu0 0.0
  %2032 = vmatprep.subr.mxu0 0.0
  %2033 = vmatpush1.xpose.msra.mxu0 0.0
  %2034 = vmatprep.subr.mxu0 0.0
  %2035 = vmatpush1.xpose.msra.mxu0 %v2002
  %2036 = vmatprep.subr.mxu0 0.0
  %2037 = vmatpush2.xpose.msra.mxu0 0.0
  %2038 = vmatprep.subr.mxu0 0.0
  %2039 = vmatpush2.xpose.msra.mxu0 0.0
  %2040 = vmatprep.subr.mxu0 0.0
  %2041 = vmatpush2.xpose.msra.mxu0 0.0
  %2042 = vmatprep.subr.mxu0 0.0
  %2043 = vmatpush2.xpose.msra.mxu0 0.0
  %2044 = vmatprep.subr.mxu0 0.0
  %2045 = vmatpush2.xpose.msra.mxu0 0.0
  %2046 = vmatprep.subr.mxu0 0.0
  %2047 = vmatpush2.xpose.msra.mxu0 0.0
  %2048 = vmatprep.subr.mxu0 0.0
  %2049 = vmatpush2.xpose.msra.mxu0 0.0
  %2050 = vmatprep.subr.mxu0 0.0
  %2051 = vmatpush2.xpose.msra.mxu0 0.0
  %2052 = vmatprep.subr.mxu0 0.0
  %2053 = vmatpush2.xpose.msra.mxu0 0.0
  %2054 = vmatprep.subr.mxu0 0.0
  %2055 = vmatpush2.xpose.msra.mxu0 0.0
  %2056 = vmatprep.subr.mxu0 0.0
  %2057 = vmatpush2.xpose.msra.mxu0 0.0
  %2058 = vmatprep.subr.mxu0 0.0
  %2059 = vmatpush2.xpose.msra.mxu0 0.0
  %2060 = vmatprep.subr.mxu0 0.0
  %2061 = vmatpush2.xpose.msra.mxu0 0.0
  %2062 = vmatprep.subr.mxu0 0.0
  %2063 = vmatpush2.xpose.msra.mxu0 0.0
  %2064 = vmatprep.subr.mxu0 0.0
  %2065 = vmatpush2.xpose.msra.mxu0 0.0
  %2066 = vmatprep.subr.mxu0 0.0
  %2067 = vmatpush2.xpose.msra.mxu0 0.0
  %2068 = vmatprep.mubr.f32.mxu0 0.0
  %2069 = vmatmul.mubr.f32.gmra.mxu0 %v1999
  %v2070 = vpop.f32.mrf.mxu0
  %v2071 = vadd.f32 0.0, %v2070
  %v2072 = vpop.f32.mrf.mxu0
  %2073 = vdwg.mxu0
  %v2075 = vsel %vm1997, %v451, 0
  %v2078 = vsel %vm1997, %v1014, 0
  %2080 = vmatprep.subr.mxu0 0.0
  %2081 = vmatpush1.xpose.msra.mxu0 0.0
  %2082 = vmatprep.subr.mxu0 0.0
  %2083 = vmatpush1.xpose.msra.mxu0 0.0
  %2084 = vmatprep.subr.mxu0 0.0
  %2085 = vmatpush1.xpose.msra.mxu0 0.0
  %2086 = vmatprep.subr.mxu0 0.0
  %2087 = vmatpush1.xpose.msra.mxu0 0.0
  %2088 = vmatprep.subr.mxu0 0.0
  %2089 = vmatpush1.xpose.msra.mxu0 0.0
  %2090 = vmatprep.subr.mxu0 0.0
  %2091 = vmatpush1.xpose.msra.mxu0 0.0
  %2092 = vmatprep.subr.mxu0 0.0
  %2093 = vmatpush1.xpose.msra.mxu0 0.0
  %2094 = vmatprep.subr.mxu0 0.0
  %2095 = vmatpush1.xpose.msra.mxu0 0.0
  %2096 = vmatprep.subr.mxu0 0.0
  %2097 = vmatpush1.xpose.msra.mxu0 0.0
  %2098 = vmatprep.subr.mxu0 0.0
  %2099 = vmatpush1.xpose.msra.mxu0 0.0
  %2100 = vmatprep.subr.mxu0 0.0
  %2101 = vmatpush1.xpose.msra.mxu0 0.0
  %2102 = vmatprep.subr.mxu0 0.0
  %2103 = vmatpush1.xpose.msra.mxu0 0.0
  %2104 = vmatprep.subr.mxu0 0.0
  %2105 = vmatpush1.xpose.msra.mxu0 0.0
  %2106 = vmatprep.subr.mxu0 0.0
  %2107 = vmatpush1.xpose.msra.mxu0 0.0
  %2108 = vmatprep.subr.mxu0 0.0
  %2109 = vmatpush1.xpose.msra.mxu0 0.0
  %2110 = vmatprep.subr.mxu0 0.0
  %2111 = vmatpush1.xpose.msra.mxu0 %v2078
  %2112 = vmatprep.subr.mxu0 0.0
  %2113 = vmatpush2.xpose.msra.mxu0 0.0
  %2114 = vmatprep.subr.mxu0 0.0
  %2115 = vmatpush2.xpose.msra.mxu0 0.0
  %2116 = vmatprep.subr.mxu0 0.0
  %2117 = vmatpush2.xpose.msra.mxu0 0.0
  %2118 = vmatprep.subr.mxu0 0.0
  %2119 = vmatpush2.xpose.msra.mxu0 0.0
  %2120 = vmatprep.subr.mxu0 0.0
  %2121 = vmatpush2.xpose.msra.mxu0 0.0
  %2122 = vmatprep.subr.mxu0 0.0
  %2123 = vmatpush2.xpose.msra.mxu0 0.0
  %2124 = vmatprep.subr.mxu0 0.0
  %2125 = vmatpush2.xpose.msra.mxu0 0.0
  %2126 = vmatprep.subr.mxu0 0.0
  %2127 = vmatpush2.xpose.msra.mxu0 0.0
  %2128 = vmatprep.subr.mxu0 0.0
  %2129 = vmatpush2.xpose.msra.mxu0 0.0
  %2130 = vmatprep.subr.mxu0 0.0
  %2131 = vmatpush2.xpose.msra.mxu0 0.0
  %2132 = vmatprep.subr.mxu0 0.0
  %2133 = vmatpush2.xpose.msra.mxu0 0.0
  %2134 = vmatprep.subr.mxu0 0.0
  %2135 = vmatpush2.xpose.msra.mxu0 0.0
  %2136 = vmatprep.subr.mxu0 0.0
  %2137 = vmatpush2.xpose.msra.mxu0 0.0
  %2138 = vmatprep.subr.mxu0 0.0
  %2139 = vmatpush2.xpose.msra.mxu0 0.0
  %2140 = vmatprep.subr.mxu0 0.0
  %2141 = vmatpush2.xpose.msra.mxu0 0.0
  %2142 = vmatprep.subr.mxu0 0.0
  %2143 = vmatpush2.xpose.msra.mxu0 0.0
  %2144 = vmatprep.mubr.f32.mxu0 0.0
  %2145 = vmatmul.mubr.f32.gmra.mxu0 %v2075
  %v2146 = vpop.f32.mrf.mxu0
  %v2147 = vadd.f32 0.0, %v2146
  %v2148 = vpop.f32.mrf.mxu0
  %2149 = vdwg.mxu0
  %v2151 = vsel %vm1997, %v521, 0
  %v2154 = vsel %vm1997, %v1084, 0
  %2156 = vmatprep.subr.mxu0 0.0
  %2157 = vmatpush1.xpose.msra.mxu0 0.0
  %2158 = vmatprep.subr.mxu0 0.0
  %2159 = vmatpush1.xpose.msra.mxu0 0.0
  %2160 = vmatprep.subr.mxu0 0.0
  %2161 = vmatpush1.xpose.msra.mxu0 0.0
  %2162 = vmatprep.subr.mxu0 0.0
  %2163 = vmatpush1.xpose.msra.mxu0 0.0
  %2164 = vmatprep.subr.mxu0 0.0
  %2165 = vmatpush1.xpose.msra.mxu0 0.0
  %2166 = vmatprep.subr.mxu0 0.0
  %2167 = vmatpush1.xpose.msra.mxu0 0.0
  %2168 = vmatprep.subr.mxu0 0.0
  %2169 = vmatpush1.xpose.msra.mxu0 0.0
  %2170 = vmatprep.subr.mxu0 0.0
  %2171 = vmatpush1.xpose.msra.mxu0 0.0
  %2172 = vmatprep.subr.mxu0 0.0
  %2173 = vmatpush1.xpose.msra.mxu0 0.0
  %2174 = vmatprep.subr.mxu0 0.0
  %2175 = vmatpush1.xpose.msra.mxu0 0.0
  %2176 = vmatprep.subr.mxu0 0.0
  %2177 = vmatpush1.xpose.msra.mxu0 0.0
  %2178 = vmatprep.subr.mxu0 0.0
  %2179 = vmatpush1.xpose.msra.mxu0 0.0
  %2180 = vmatprep.subr.mxu0 0.0
  %2181 = vmatpush1.xpose.msra.mxu0 0.0
  %2182 = vmatprep.subr.mxu0 0.0
  %2183 = vmatpush1.xpose.msra.mxu0 0.0
  %2184 = vmatprep.subr.mxu0 0.0
  %2185 = vmatpush1.xpose.msra.mxu0 0.0
  %2186 = vmatprep.subr.mxu0 0.0
  %2187 = vmatpush1.xpose.msra.mxu0 %v2154
  %2188 = vmatprep.subr.mxu0 0.0
  %2189 = vmatpush2.xpose.msra.mxu0 0.0
  %2190 = vmatprep.subr.mxu0 0.0
  %2191 = vmatpush2.xpose.msra.mxu0 0.0
  %2192 = vmatprep.subr.mxu0 0.0
  %2193 = vmatpush2.xpose.msra.mxu0 0.0
  %2194 = vmatprep.subr.mxu0 0.0
  %2195 = vmatpush2.xpose.msra.mxu0 0.0
  %2196 = vmatprep.subr.mxu0 0.0
  %2197 = vmatpush2.xpose.msra.mxu0 0.0
  %2198 = vmatprep.subr.mxu0 0.0
  %2199 = vmatpush2.xpose.msra.mxu0 0.0
  %2200 = vmatprep.subr.mxu0 0.0
  %2201 = vmatpush2.xpose.msra.mxu0 0.0
  %2202 = vmatprep.subr.mxu0 0.0
  %2203 = vmatpush2.xpose.msra.mxu0 0.0
  %2204 = vmatprep.subr.mxu0 0.0
  %2205 = vmatpush2.xpose.msra.mxu0 0.0
  %2206 = vmatprep.subr.mxu0 0.0
  %2207 = vmatpush2.xpose.msra.mxu0 0.0
  %2208 = vmatprep.subr.mxu0 0.0
  %2209 = vmatpush2.xpose.msra.mxu0 0.0
  %2210 = vmatprep.subr.mxu0 0.0
  %2211 = vmatpush2.xpose.msra.mxu0 0.0
  %2212 = vmatprep.subr.mxu0 0.0
  %2213 = vmatpush2.xpose.msra.mxu0 0.0
  %2214 = vmatprep.subr.mxu0 0.0
  %2215 = vmatpush2.xpose.msra.mxu0 0.0
  %2216 = vmatprep.subr.mxu0 0.0
  %2217 = vmatpush2.xpose.msra.mxu0 0.0
  %2218 = vmatprep.subr.mxu0 0.0
  %2219 = vmatpush2.xpose.msra.mxu0 0.0
  %2220 = vmatprep.mubr.f32.mxu0 0.0
  %2221 = vmatmul.mubr.f32.gmra.mxu0 %v2151
  %v2222 = vpop.f32.mrf.mxu0
  %v2223 = vadd.f32 0.0, %v2222
  %v2224 = vpop.f32.mrf.mxu0
  %2225 = vdwg.mxu0
  %v2227 = vsel %vm1997, %v591, 0
  %v2230 = vsel %vm1997, %v1154, 0
  %2232 = vmatprep.subr.mxu0 0.0
  %2233 = vmatpush1.xpose.msra.mxu0 0.0
  %2234 = vmatprep.subr.mxu0 0.0
  %2235 = vmatpush1.xpose.msra.mxu0 0.0
  %2236 = vmatprep.subr.mxu0 0.0
  %2237 = vmatpush1.xpose.msra.mxu0 0.0
  %2238 = vmatprep.subr.mxu0 0.0
  %2239 = vmatpush1.xpose.msra.mxu0 0.0
  %2240 = vmatprep.subr.mxu0 0.0
  %2241 = vmatpush1.xpose.msra.mxu0 0.0
  %2242 = vmatprep.subr.mxu0 0.0
  %2243 = vmatpush1.xpose.msra.mxu0 0.0
  %2244 = vmatprep.subr.mxu0 0.0
  %2245 = vmatpush1.xpose.msra.mxu0 0.0
  %2246 = vmatprep.subr.mxu0 0.0
  %2247 = vmatpush1.xpose.msra.mxu0 0.0
  %2248 = vmatprep.subr.mxu0 0.0
  %2249 = vmatpush1.xpose.msra.mxu0 0.0
  %2250 = vmatprep.subr.mxu0 0.0
  %2251 = vmatpush1.xpose.msra.mxu0 0.0
  %2252 = vmatprep.subr.mxu0 0.0
  %2253 = vmatpush1.xpose.msra.mxu0 0.0
  %2254 = vmatprep.subr.mxu0 0.0
  %2255 = vmatpush1.xpose.msra.mxu0 0.0
  %2256 = vmatprep.subr.mxu0 0.0
  %2257 = vmatpush1.xpose.msra.mxu0 0.0
  %2258 = vmatprep.subr.mxu0 0.0
  %2259 = vmatpush1.xpose.msra.mxu0 0.0
  %2260 = vmatprep.subr.mxu0 0.0
  %2261 = vmatpush1.xpose.msra.mxu0 0.0
  %2262 = vmatprep.subr.mxu0 0.0
  %2263 = vmatpush1.xpose.msra.mxu0 %v2230
  %2264 = vmatprep.subr.mxu0 0.0
  %2265 = vmatpush2.xpose.msra.mxu0 0.0
  %2266 = vmatprep.subr.mxu0 0.0
  %2267 = vmatpush2.xpose.msra.mxu0 0.0
  %2268 = vmatprep.subr.mxu0 0.0
  %2269 = vmatpush2.xpose.msra.mxu0 0.0
  %2270 = vmatprep.subr.mxu0 0.0
  %2271 = vmatpush2.xpose.msra.mxu0 0.0
  %2272 = vmatprep.subr.mxu0 0.0
  %2273 = vmatpush2.xpose.msra.mxu0 0.0
  %2274 = vmatprep.subr.mxu0 0.0
  %2275 = vmatpush2.xpose.msra.mxu0 0.0
  %2276 = vmatprep.subr.mxu0 0.0
  %2277 = vmatpush2.xpose.msra.mxu0 0.0
  %2278 = vmatprep.subr.mxu0 0.0
  %2279 = vmatpush2.xpose.msra.mxu0 0.0
  %2280 = vmatprep.subr.mxu0 0.0
  %2281 = vmatpush2.xpose.msra.mxu0 0.0
  %2282 = vmatprep.subr.mxu0 0.0
  %2283 = vmatpush2.xpose.msra.mxu0 0.0
  %2284 = vmatprep.subr.mxu0 0.0
  %2285 = vmatpush2.xpose.msra.mxu0 0.0
  %2286 = vmatprep.subr.mxu0 0.0
  %2287 = vmatpush2.xpose.msra.mxu0 0.0
  %2288 = vmatprep.subr.mxu0 0.0
  %2289 = vmatpush2.xpose.msra.mxu0 0.0
  %2290 = vmatprep.subr.mxu0 0.0
  %2291 = vmatpush2.xpose.msra.mxu0 0.0
  %2292 = vmatprep.subr.mxu0 0.0
  %2293 = vmatpush2.xpose.msra.mxu0 0.0
  %2294 = vmatprep.subr.mxu0 0.0
  %2295 = vmatpush2.xpose.msra.mxu0 0.0
  %2296 = vmatprep.mubr.f32.mxu0 0.0
  %2297 = vmatmul.mubr.f32.gmra.mxu0 %v2227
  %v2298 = vpop.f32.mrf.mxu0
  %v2299 = vadd.f32 0.0, %v2298
  %v2300 = vpop.f32.mrf.mxu0
  %2301 = vdwg.mxu0
  %v2303 = vsel %vm1997, %v664, 0
  %v2306 = vsel %vm1997, %v1224, 0
  %2308 = vmatprep.subr.mxu0 0.0
  %2309 = vmatpush1.xpose.msra.mxu0 0.0
  %2310 = vmatprep.subr.mxu0 0.0
  %2311 = vmatpush1.xpose.msra.mxu0 0.0
  %2312 = vmatprep.subr.mxu0 0.0
  %2313 = vmatpush1.xpose.msra.mxu0 0.0
  %2314 = vmatprep.subr.mxu0 0.0
  %2315 = vmatpush1.xpose.msra.mxu0 0.0
  %2316 = vmatprep.subr.mxu0 0.0
  %2317 = vmatpush1.xpose.msra.mxu0 0.0
  %2318 = vmatprep.subr.mxu0 0.0
  %2319 = vmatpush1.xpose.msra.mxu0 0.0
  %2320 = vmatprep.subr.mxu0 0.0
  %2321 = vmatpush1.xpose.msra.mxu0 0.0
  %2322 = vmatprep.subr.mxu0 0.0
  %2323 = vmatpush1.xpose.msra.mxu0 0.0
  %2324 = vmatprep.subr.mxu0 0.0
  %2325 = vmatpush1.xpose.msra.mxu0 0.0
  %2326 = vmatprep.subr.mxu0 0.0
  %2327 = vmatpush1.xpose.msra.mxu0 0.0
  %2328 = vmatprep.subr.mxu0 0.0
  %2329 = vmatpush1.xpose.msra.mxu0 0.0
  %2330 = vmatprep.subr.mxu0 0.0
  %2331 = vmatpush1.xpose.msra.mxu0 0.0
  %2332 = vmatprep.subr.mxu0 0.0
  %2333 = vmatpush1.xpose.msra.mxu0 0.0
  %2334 = vmatprep.subr.mxu0 0.0
  %2335 = vmatpush1.xpose.msra.mxu0 0.0
  %2336 = vmatprep.subr.mxu0 0.0
  %2337 = vmatpush1.xpose.msra.mxu0 0.0
  %2338 = vmatprep.subr.mxu0 0.0
  %2339 = vmatpush1.xpose.msra.mxu0 %v2306
  %2340 = vmatprep.subr.mxu0 0.0
  %2341 = vmatpush2.xpose.msra.mxu0 0.0
  %2342 = vmatprep.subr.mxu0 0.0
  %2343 = vmatpush2.xpose.msra.mxu0 0.0
  %2344 = vmatprep.subr.mxu0 0.0
  %2345 = vmatpush2.xpose.msra.mxu0 0.0
  %2346 = vmatprep.subr.mxu0 0.0
  %2347 = vmatpush2.xpose.msra.mxu0 0.0
  %2348 = vmatprep.subr.mxu0 0.0
  %2349 = vmatpush2.xpose.msra.mxu0 0.0
  %2350 = vmatprep.subr.mxu0 0.0
  %2351 = vmatpush2.xpose.msra.mxu0 0.0
  %2352 = vmatprep.subr.mxu0 0.0
  %2353 = vmatpush2.xpose.msra.mxu0 0.0
  %2354 = vmatprep.subr.mxu0 0.0
  %2355 = vmatpush2.xpose.msra.mxu0 0.0
  %2356 = vmatprep.subr.mxu0 0.0
  %2357 = vmatpush2.xpose.msra.mxu0 0.0
  %2358 = vmatprep.subr.mxu0 0.0
  %2359 = vmatpush2.xpose.msra.mxu0 0.0
  %2360 = vmatprep.subr.mxu0 0.0
  %2361 = vmatpush2.xpose.msra.mxu0 0.0
  %2362 = vmatprep.subr.mxu0 0.0
  %2363 = vmatpush2.xpose.msra.mxu0 0.0
  %2364 = vmatprep.subr.mxu0 0.0
  %2365 = vmatpush2.xpose.msra.mxu0 0.0
  %2366 = vmatprep.subr.mxu0 0.0
  %2367 = vmatpush2.xpose.msra.mxu0 0.0
  %2368 = vmatprep.subr.mxu0 0.0
  %2369 = vmatpush2.xpose.msra.mxu0 0.0
  %2370 = vmatprep.subr.mxu0 0.0
  %2371 = vmatpush2.xpose.msra.mxu0 0.0
  %2372 = vmatprep.mubr.f32.mxu0 0.0
  %2373 = vmatmul.mubr.f32.gmra.mxu0 %v2303
  %v2374 = vpop.f32.mrf.mxu0
  %v2375 = vadd.f32 0.0, %v2374
  %v2376 = vpop.f32.mrf.mxu0
  %2377 = vdwg.mxu0
  %v2379 = vsel %vm1997, %v734, 0
  %v2382 = vsel %vm1997, %v1294, 0
  %2384 = vmatprep.subr.mxu0 0.0
  %2385 = vmatpush1.xpose.msra.mxu0 0.0
  %2386 = vmatprep.subr.mxu0 0.0
  %2387 = vmatpush1.xpose.msra.mxu0 0.0
  %2388 = vmatprep.subr.mxu0 0.0
  %2389 = vmatpush1.xpose.msra.mxu0 0.0
  %2390 = vmatprep.subr.mxu0 0.0
  %2391 = vmatpush1.xpose.msra.mxu0 0.0
  %2392 = vmatprep.subr.mxu0 0.0
  %2393 = vmatpush1.xpose.msra.mxu0 0.0
  %2394 = vmatprep.subr.mxu0 0.0
  %2395 = vmatpush1.xpose.msra.mxu0 0.0
  %2396 = vmatprep.subr.mxu0 0.0
  %2397 = vmatpush1.xpose.msra.mxu0 0.0
  %2398 = vmatprep.subr.mxu0 0.0
  %2399 = vmatpush1.xpose.msra.mxu0 0.0
  %2400 = vmatprep.subr.mxu0 0.0
  %2401 = vmatpush1.xpose.msra.mxu0 0.0
  %2402 = vmatprep.subr.mxu0 0.0
  %2403 = vmatpush1.xpose.msra.mxu0 0.0
  %2404 = vmatprep.subr.mxu0 0.0
  %2405 = vmatpush1.xpose.msra.mxu0 0.0
  %2406 = vmatprep.subr.mxu0 0.0
  %2407 = vmatpush1.xpose.msra.mxu0 0.0
  %2408 = vmatprep.subr.mxu0 0.0
  %2409 = vmatpush1.xpose.msra.mxu0 0.0
  %2410 = vmatprep.subr.mxu0 0.0
  %2411 = vmatpush1.xpose.msra.mxu0 0.0
  %2412 = vmatprep.subr.mxu0 0.0
  %2413 = vmatpush1.xpose.msra.mxu0 0.0
  %2414 = vmatprep.subr.mxu0 0.0
  %2415 = vmatpush1.xpose.msra.mxu0 %v2382
  %2416 = vmatprep.subr.mxu0 0.0
  %2417 = vmatpush2.xpose.msra.mxu0 0.0
  %2418 = vmatprep.subr.mxu0 0.0
  %2419 = vmatpush2.xpose.msra.mxu0 0.0
  %2420 = vmatprep.subr.mxu0 0.0
  %2421 = vmatpush2.xpose.msra.mxu0 0.0
  %2422 = vmatprep.subr.mxu0 0.0
  %2423 = vmatpush2.xpose.msra.mxu0 0.0
  %2424 = vmatprep.subr.mxu0 0.0
  %2425 = vmatpush2.xpose.msra.mxu0 0.0
  %2426 = vmatprep.subr.mxu0 0.0
  %2427 = vmatpush2.xpose.msra.mxu0 0.0
  %2428 = vmatprep.subr.mxu0 0.0
  %2429 = vmatpush2.xpose.msra.mxu0 0.0
  %2430 = vmatprep.subr.mxu0 0.0
  %2431 = vmatpush2.xpose.msra.mxu0 0.0
  %2432 = vmatprep.subr.mxu0 0.0
  %2433 = vmatpush2.xpose.msra.mxu0 0.0
  %2434 = vmatprep.subr.mxu0 0.0
  %2435 = vmatpush2.xpose.msra.mxu0 0.0
  %2436 = vmatprep.subr.mxu0 0.0
  %2437 = vmatpush2.xpose.msra.mxu0 0.0
  %2438 = vmatprep.subr.mxu0 0.0
  %2439 = vmatpush2.xpose.msra.mxu0 0.0
  %2440 = vmatprep.subr.mxu0 0.0
  %2441 = vmatpush2.xpose.msra.mxu0 0.0
  %2442 = vmatprep.subr.mxu0 0.0
  %2443 = vmatpush2.xpose.msra.mxu0 0.0
  %2444 = vmatprep.subr.mxu0 0.0
  %2445 = vmatpush2.xpose.msra.mxu0 0.0
  %2446 = vmatprep.subr.mxu0 0.0
  %2447 = vmatpush2.xpose.msra.mxu0 0.0
  %2448 = vmatprep.mubr.f32.mxu0 0.0
  %2449 = vmatmul.mubr.f32.gmra.mxu0 %v2379
  %v2450 = vpop.f32.mrf.mxu0
  %v2451 = vadd.f32 0.0, %v2450
  %v2452 = vpop.f32.mrf.mxu0
  %2453 = vdwg.mxu0
  %v2455 = vsel %vm1997, %v804, 0
  %v2458 = vsel %vm1997, %v1364, 0
  %2460 = vmatprep.subr.mxu0 0.0
  %2461 = vmatpush1.xpose.msra.mxu0 0.0
  %2462 = vmatprep.subr.mxu0 0.0
  %2463 = vmatpush1.xpose.msra.mxu0 0.0
  %2464 = vmatprep.subr.mxu0 0.0
  %2465 = vmatpush1.xpose.msra.mxu0 0.0
  %2466 = vmatprep.subr.mxu0 0.0
  %2467 = vmatpush1.xpose.msra.mxu0 0.0
  %2468 = vmatprep.subr.mxu0 0.0
  %2469 = vmatpush1.xpose.msra.mxu0 0.0
  %2470 = vmatprep.subr.mxu0 0.0
  %2471 = vmatpush1.xpose.msra.mxu0 0.0
  %2472 = vmatprep.subr.mxu0 0.0
  %2473 = vmatpush1.xpose.msra.mxu0 0.0
  %2474 = vmatprep.subr.mxu0 0.0
  %2475 = vmatpush1.xpose.msra.mxu0 0.0
  %2476 = vmatprep.subr.mxu0 0.0
  %2477 = vmatpush1.xpose.msra.mxu0 0.0
  %2478 = vmatprep.subr.mxu0 0.0
  %2479 = vmatpush1.xpose.msra.mxu0 0.0
  %2480 = vmatprep.subr.mxu0 0.0
  %2481 = vmatpush1.xpose.msra.mxu0 0.0
  %2482 = vmatprep.subr.mxu0 0.0
  %2483 = vmatpush1.xpose.msra.mxu0 0.0
  %2484 = vmatprep.subr.mxu0 0.0
  %2485 = vmatpush1.xpose.msra.mxu0 0.0
  %2486 = vmatprep.subr.mxu0 0.0
  %2487 = vmatpush1.xpose.msra.mxu0 0.0
  %2488 = vmatprep.subr.mxu0 0.0
  %2489 = vmatpush1.xpose.msra.mxu0 0.0
  %2490 = vmatprep.subr.mxu0 0.0
  %2491 = vmatpush1.xpose.msra.mxu0 %v2458
  %2492 = vmatprep.subr.mxu0 0.0
  %2493 = vmatpush2.xpose.msra.mxu0 0.0
  %2494 = vmatprep.subr.mxu0 0.0
  %2495 = vmatpush2.xpose.msra.mxu0 0.0
  %2496 = vmatprep.subr.mxu0 0.0
  %2497 = vmatpush2.xpose.msra.mxu0 0.0
  %2498 = vmatprep.subr.mxu0 0.0
  %2499 = vmatpush2.xpose.msra.mxu0 0.0
  %2500 = vmatprep.subr.mxu0 0.0
  %2501 = vmatpush2.xpose.msra.mxu0 0.0
  %2502 = vmatprep.subr.mxu0 0.0
  %2503 = vmatpush2.xpose.msra.mxu0 0.0
  %2504 = vmatprep.subr.mxu0 0.0
  %2505 = vmatpush2.xpose.msra.mxu0 0.0
  %2506 = vmatprep.subr.mxu0 0.0
  %2507 = vmatpush2.xpose.msra.mxu0 0.0
  %2508 = vmatprep.subr.mxu0 0.0
  %2509 = vmatpush2.xpose.msra.mxu0 0.0
  %2510 = vmatprep.subr.mxu0 0.0
  %2511 = vmatpush2.xpose.msra.mxu0 0.0
  %2512 = vmatprep.subr.mxu0 0.0
  %2513 = vmatpush2.xpose.msra.mxu0 0.0
  %2514 = vmatprep.subr.mxu0 0.0
  %2515 = vmatpush2.xpose.msra.mxu0 0.0
  %2516 = vmatprep.subr.mxu0 0.0
  %2517 = vmatpush2.xpose.msra.mxu0 0.0
  %2518 = vmatprep.subr.mxu0 0.0
  %2519 = vmatpush2.xpose.msra.mxu0 0.0
  %2520 = vmatprep.subr.mxu0 0.0
  %2521 = vmatpush2.xpose.msra.mxu0 0.0
  %2522 = vmatprep.subr.mxu0 0.0
  %2523 = vmatpush2.xpose.msra.mxu0 0.0
  %2524 = vmatprep.mubr.f32.mxu0 0.0
  %2525 = vmatmul.mubr.f32.gmra.mxu0 %v2455
  %v2526 = vpop.f32.mrf.mxu0
  %v2527 = vadd.f32 0.0, %v2526
  %v2528 = vpop.f32.mrf.mxu0
  %2529 = vdwg.mxu0
  %v2531 = vsel %vm1997, %v874, 0
  %v2534 = vsel %vm1997, %v1434, 0
  %2536 = vmatprep.subr.mxu0 0.0
  %2537 = vmatpush1.xpose.msra.mxu0 0.0
  %2538 = vmatprep.subr.mxu0 0.0
  %2539 = vmatpush1.xpose.msra.mxu0 0.0
  %2540 = vmatprep.subr.mxu0 0.0
  %2541 = vmatpush1.xpose.msra.mxu0 0.0
  %2542 = vmatprep.subr.mxu0 0.0
  %2543 = vmatpush1.xpose.msra.mxu0 0.0
  %2544 = vmatprep.subr.mxu0 0.0
  %2545 = vmatpush1.xpose.msra.mxu0 0.0
  %2546 = vmatprep.subr.mxu0 0.0
  %2547 = vmatpush1.xpose.msra.mxu0 0.0
  %2548 = vmatprep.subr.mxu0 0.0
  %2549 = vmatpush1.xpose.msra.mxu0 0.0
  %2550 = vmatprep.subr.mxu0 0.0
  %2551 = vmatpush1.xpose.msra.mxu0 0.0
  %2552 = vmatprep.subr.mxu0 0.0
  %2553 = vmatpush1.xpose.msra.mxu0 0.0
  %2554 = vmatprep.subr.mxu0 0.0
  %2555 = vmatpush1.xpose.msra.mxu0 0.0
  %2556 = vmatprep.subr.mxu0 0.0
  %2557 = vmatpush1.xpose.msra.mxu0 0.0
  %2558 = vmatprep.subr.mxu0 0.0
  %2559 = vmatpush1.xpose.msra.mxu0 0.0
  %2560 = vmatprep.subr.mxu0 0.0
  %2561 = vmatpush1.xpose.msra.mxu0 0.0
  %2562 = vmatprep.subr.mxu0 0.0
  %2563 = vmatpush1.xpose.msra.mxu0 0.0
  %2564 = vmatprep.subr.mxu0 0.0
  %2565 = vmatpush1.xpose.msra.mxu0 0.0
  %2566 = vmatprep.subr.mxu0 0.0
  %2567 = vmatpush1.xpose.msra.mxu0 %v2534
  %2568 = vmatprep.subr.mxu0 0.0
  %2569 = vmatpush2.xpose.msra.mxu0 0.0
  %2570 = vmatprep.subr.mxu0 0.0
  %2571 = vmatpush2.xpose.msra.mxu0 0.0
  %2572 = vmatprep.subr.mxu0 0.0
  %2573 = vmatpush2.xpose.msra.mxu0 0.0
  %2574 = vmatprep.subr.mxu0 0.0
  %2575 = vmatpush2.xpose.msra.mxu0 0.0
  %2576 = vmatprep.subr.mxu0 0.0
  %2577 = vmatpush2.xpose.msra.mxu0 0.0
  %2578 = vmatprep.subr.mxu0 0.0
  %2579 = vmatpush2.xpose.msra.mxu0 0.0
  %2580 = vmatprep.subr.mxu0 0.0
  %2581 = vmatpush2.xpose.msra.mxu0 0.0
  %2582 = vmatprep.subr.mxu0 0.0
  %2583 = vmatpush2.xpose.msra.mxu0 0.0
  %2584 = vmatprep.subr.mxu0 0.0
  %2585 = vmatpush2.xpose.msra.mxu0 0.0
  %2586 = vmatprep.subr.mxu0 0.0
  %2587 = vmatpush2.xpose.msra.mxu0 0.0
  %2588 = vmatprep.subr.mxu0 0.0
  %2589 = vmatpush2.xpose.msra.mxu0 0.0
  %2590 = vmatprep.subr.mxu0 0.0
  %2591 = vmatpush2.xpose.msra.mxu0 0.0
  %2592 = vmatprep.subr.mxu0 0.0
  %2593 = vmatpush2.xpose.msra.mxu0 0.0
  %2594 = vmatprep.subr.mxu0 0.0
  %2595 = vmatpush2.xpose.msra.mxu0 0.0
  %2596 = vmatprep.subr.mxu0 0.0
  %2597 = vmatpush2.xpose.msra.mxu0 0.0
  %2598 = vmatprep.subr.mxu0 0.0
  %2599 = vmatpush2.xpose.msra.mxu0 0.0
  %2600 = vmatprep.mubr.f32.mxu0 0.0
  %2601 = vmatmul.mubr.f32.gmra.mxu0 %v2531
  %v2602 = vpop.f32.mrf.mxu0
  %v2603 = vadd.f32 0.0, %v2602
  %v2604 = vpop.f32.mrf.mxu0
  %2605 = vdwg.mxu0
  %v2606 = vsel %vm1997, %v2071, -inf
  %2607 = vmax.xlane.f32.xlu0 %v2606
  %v2608 = vpop.xlane.xlu0 %2607
  %v2609 = vsel %vm1997, %v2147, -inf
  %2610 = vmax.xlane.f32.xlu0 %v2609
  %v2611 = vpop.xlane.xlu0 %2610
  %v2612 = vsel %vm1997, %v2223, -inf
  %2613 = vmax.xlane.f32.xlu0 %v2612
  %v2614 = vpop.xlane.xlu0 %2613
  %v2615 = vsel %vm1997, %v2299, -inf
  %2616 = vmax.xlane.f32.xlu0 %v2615
  %v2617 = vpop.xlane.xlu0 %2616
  %v2618 = vsel %vm1997, %v2375, -inf
  %2619 = vmax.xlane.f32.xlu0 %v2618
  %v2620 = vpop.xlane.xlu0 %2619
  %v2621 = vsel %vm1997, %v2451, -inf
  %2622 = vmax.xlane.f32.xlu0 %v2621
  %v2623 = vpop.xlane.xlu0 %2622
  %v2624 = vsel %vm1997, %v2527, -inf
  %2625 = vmax.xlane.f32.xlu0 %v2624
  %v2626 = vpop.xlane.xlu0 %2625
  %v2627 = vsel %vm1997, %v2603, -inf
  %2628 = vmax.xlane.f32.xlu0 %v2627
  %v2629 = vpop.xlane.xlu0 %2628
  %v2630 = vsub.f32 %v2071, %v2608
  %v2631 = vsub.f32 %v2147, %v2611
  %v2632 = vsub.f32 %v2223, %v2614
  %v2633 = vsub.f32 %v2299, %v2617
  %v2634 = vsub.f32 %v2375, %v2620
  %v2635 = vsub.f32 %v2451, %v2623
  %v2636 = vsub.f32 %v2527, %v2626
  %v2637 = vsub.f32 %v2603, %v2629
  %v2638 = vmul.f32 %v2630, 1.442695
  %v2639 = vpow.pop %v2638
  %v2640 = vmul.f32 %v2631, 1.442695
  %v2641 = vpow.pop %v2640
  %v2642 = vmul.f32 %v2632, 1.442695
  %v2643 = vpow.pop %v2642
  %v2644 = vmul.f32 %v2633, 1.442695
  %v2645 = vpow.pop %v2644
  %v2646 = vmul.f32 %v2634, 1.442695
  %v2647 = vpow.pop %v2646
  %v2648 = vmul.f32 %v2635, 1.442695
  %v2649 = vpow.pop %v2648
  %v2650 = vmul.f32 %v2636, 1.442695
  %v2651 = vpow.pop %v2650
  %v2652 = vmul.f32 %v2637, 1.442695
  %v2653 = vpow.pop %v2652
  %v2654 = vsel %vm1997, %v2639, 0.0
  %2655 = vadd.xlane.f32.xlu0 %v2654
  %v2656 = vpop.xlane.xlu0 %2655
  %v2657 = vsel %vm1997, %v2641, 0.0
  %2658 = vadd.xlane.f32.xlu0 %v2657
  %v2659 = vpop.xlane.xlu0 %2658
  %v2660 = vsel %vm1997, %v2643, 0.0
  %2661 = vadd.xlane.f32.xlu0 %v2660
  %v2662 = vpop.xlane.xlu0 %2661
  %v2663 = vsel %vm1997, %v2645, 0.0
  %2664 = vadd.xlane.f32.xlu0 %v2663
  %v2665 = vpop.xlane.xlu0 %2664
  %v2666 = vsel %vm1997, %v2647, 0.0
  %2667 = vadd.xlane.f32.xlu0 %v2666
  %v2668 = vpop.xlane.xlu0 %2667
  %v2669 = vsel %vm1997, %v2649, 0.0
  %2670 = vadd.xlane.f32.xlu0 %v2669
  %v2671 = vpop.xlane.xlu0 %2670
  %v2672 = vsel %vm1997, %v2651, 0.0
  %2673 = vadd.xlane.f32.xlu0 %v2672
  %v2674 = vpop.xlane.xlu0 %2673
  %v2675 = vsel %vm1997, %v2653, 0.0
  %2676 = vadd.xlane.f32.xlu0 %v2675
  %v2677 = vpop.xlane.xlu0 %2676
  %v2678 = vrcp.pop %v2656
  %v2679 = vrcp.pop %v2659
  %v2680 = vrcp.pop %v2662
  %v2681 = vrcp.pop %v2665
  %v2682 = vrcp.pop %v2668
  %v2683 = vrcp.pop %v2671
  %v2684 = vrcp.pop %v2674
  %v2685 = vrcp.pop %v2677
  %v2686 = vmul.f32 %v2639, %v2678
  %v2687 = vmul.f32 %v2641, %v2679
  %v2688 = vmul.f32 %v2643, %v2680
  %v2689 = vmul.f32 %v2645, %v2681
  %v2690 = vmul.f32 %v2647, %v2682
  %v2691 = vmul.f32 %v2649, %v2683
  %v2692 = vmul.f32 %v2651, %v2684
  %v2693 = vmul.f32 %v2653, %v2685
  %v2695 = vsel %vm1997, %v2686, 0
  %2697 = vmatprep.subr.mxu0 0.0
  %2698 = vmatpush1.msra.mxu0 0.0
  %2699 = vmatprep.subr.mxu0 0.0
  %2700 = vmatpush1.msra.mxu0 0.0
  %2701 = vmatprep.subr.mxu0 0.0
  %2702 = vmatpush1.msra.mxu0 0.0
  %2703 = vmatprep.subr.mxu0 0.0
  %2704 = vmatpush1.msra.mxu0 0.0
  %2705 = vmatprep.subr.mxu0 0.0
  %2706 = vmatpush1.msra.mxu0 0.0
  %2707 = vmatprep.subr.mxu0 0.0
  %2708 = vmatpush1.msra.mxu0 0.0
  %2709 = vmatprep.subr.mxu0 0.0
  %2710 = vmatpush1.msra.mxu0 0.0
  %2711 = vmatprep.subr.mxu0 0.0
  %2712 = vmatpush1.msra.mxu0 0.0
  %2713 = vmatprep.subr.mxu0 0.0
  %2714 = vmatpush1.msra.mxu0 0.0
  %2715 = vmatprep.subr.mxu0 0.0
  %2716 = vmatpush1.msra.mxu0 0.0
  %2717 = vmatprep.subr.mxu0 0.0
  %2718 = vmatpush1.msra.mxu0 0.0
  %2719 = vmatprep.subr.mxu0 0.0
  %2720 = vmatpush1.msra.mxu0 0.0
  %2721 = vmatprep.subr.mxu0 0.0
  %2722 = vmatpush1.msra.mxu0 0.0
  %2723 = vmatprep.subr.mxu0 0.0
  %2724 = vmatpush1.msra.mxu0 0.0
  %2725 = vmatprep.subr.mxu0 0.0
  %2726 = vmatpush1.msra.mxu0 0.0
  %2727 = vmatprep.subr.mxu0 0.0
  %2728 = vmatpush1.msra.mxu0 %v1504
  %2729 = vmatprep.subr.mxu0 0.0
  %2730 = vmatpush2.msra.mxu0 0.0
  %2731 = vmatprep.subr.mxu0 0.0
  %2732 = vmatpush2.msra.mxu0 0.0
  %2733 = vmatprep.subr.mxu0 0.0
  %2734 = vmatpush2.msra.mxu0 0.0
  %2735 = vmatprep.subr.mxu0 0.0
  %2736 = vmatpush2.msra.mxu0 0.0
  %2737 = vmatprep.subr.mxu0 0.0
  %2738 = vmatpush2.msra.mxu0 0.0
  %2739 = vmatprep.subr.mxu0 0.0
  %2740 = vmatpush2.msra.mxu0 0.0
  %2741 = vmatprep.subr.mxu0 0.0
  %2742 = vmatpush2.msra.mxu0 0.0
  %2743 = vmatprep.subr.mxu0 0.0
  %2744 = vmatpush2.msra.mxu0 0.0
  %2745 = vmatprep.subr.mxu0 0.0
  %2746 = vmatpush2.msra.mxu0 0.0
  %2747 = vmatprep.subr.mxu0 0.0
  %2748 = vmatpush2.msra.mxu0 0.0
  %2749 = vmatprep.subr.mxu0 0.0
  %2750 = vmatpush2.msra.mxu0 0.0
  %2751 = vmatprep.subr.mxu0 0.0
  %2752 = vmatpush2.msra.mxu0 0.0
  %2753 = vmatprep.subr.mxu0 0.0
  %2754 = vmatpush2.msra.mxu0 0.0
  %2755 = vmatprep.subr.mxu0 0.0
  %2756 = vmatpush2.msra.mxu0 0.0
  %2757 = vmatprep.subr.mxu0 0.0
  %2758 = vmatpush2.msra.mxu0 0.0
  %2759 = vmatprep.subr.mxu0 0.0
  %2760 = vmatpush2.msra.mxu0 0.0
  %2761 = vmatprep.mubr.f32.mxu0 0.0
  %2762 = vmatmul.mubr.f32.gmra.mxu0 %v2695
  %v2763 = vpop.f32.mrf.mxu0
  %v2764 = vadd.f32 0.0, %v2763
  %v2765 = vpop.f32.mrf.mxu0
  %2766 = vdwg.mxu0
  %v2768 = vsel %vm1997, %v2687, 0
  %2770 = vmatprep.subr.mxu0 0.0
  %2771 = vmatpush1.msra.mxu0 0.0
  %2772 = vmatprep.subr.mxu0 0.0
  %2773 = vmatpush1.msra.mxu0 0.0
  %2774 = vmatprep.subr.mxu0 0.0
  %2775 = vmatpush1.msra.mxu0 0.0
  %2776 = vmatprep.subr.mxu0 0.0
  %2777 = vmatpush1.msra.mxu0 0.0
  %2778 = vmatprep.subr.mxu0 0.0
  %2779 = vmatpush1.msra.mxu0 0.0
  %2780 = vmatprep.subr.mxu0 0.0
  %2781 = vmatpush1.msra.mxu0 0.0
  %2782 = vmatprep.subr.mxu0 0.0
  %2783 = vmatpush1.msra.mxu0 0.0
  %2784 = vmatprep.subr.mxu0 0.0
  %2785 = vmatpush1.msra.mxu0 0.0
  %2786 = vmatprep.subr.mxu0 0.0
  %2787 = vmatpush1.msra.mxu0 0.0
  %2788 = vmatprep.subr.mxu0 0.0
  %2789 = vmatpush1.msra.mxu0 0.0
  %2790 = vmatprep.subr.mxu0 0.0
  %2791 = vmatpush1.msra.mxu0 0.0
  %2792 = vmatprep.subr.mxu0 0.0
  %2793 = vmatpush1.msra.mxu0 0.0
  %2794 = vmatprep.subr.mxu0 0.0
  %2795 = vmatpush1.msra.mxu0 0.0
  %2796 = vmatprep.subr.mxu0 0.0
  %2797 = vmatpush1.msra.mxu0 0.0
  %2798 = vmatprep.subr.mxu0 0.0
  %2799 = vmatpush1.msra.mxu0 0.0
  %2800 = vmatprep.subr.mxu0 0.0
  %2801 = vmatpush1.msra.mxu0 %v1574
  %2802 = vmatprep.subr.mxu0 0.0
  %2803 = vmatpush2.msra.mxu0 0.0
  %2804 = vmatprep.subr.mxu0 0.0
  %2805 = vmatpush2.msra.mxu0 0.0
  %2806 = vmatprep.subr.mxu0 0.0
  %2807 = vmatpush2.msra.mxu0 0.0
  %2808 = vmatprep.subr.mxu0 0.0
  %2809 = vmatpush2.msra.mxu0 0.0
  %2810 = vmatprep.subr.mxu0 0.0
  %2811 = vmatpush2.msra.mxu0 0.0
  %2812 = vmatprep.subr.mxu0 0.0
  %2813 = vmatpush2.msra.mxu0 0.0
  %2814 = vmatprep.subr.mxu0 0.0
  %2815 = vmatpush2.msra.mxu0 0.0
  %2816 = vmatprep.subr.mxu0 0.0
  %2817 = vmatpush2.msra.mxu0 0.0
  %2818 = vmatprep.subr.mxu0 0.0
  %2819 = vmatpush2.msra.mxu0 0.0
  %2820 = vmatprep.subr.mxu0 0.0
  %2821 = vmatpush2.msra.mxu0 0.0
  %2822 = vmatprep.subr.mxu0 0.0
  %2823 = vmatpush2.msra.mxu0 0.0
  %2824 = vmatprep.subr.mxu0 0.0
  %2825 = vmatpush2.msra.mxu0 0.0
  %2826 = vmatprep.subr.mxu0 0.0
  %2827 = vmatpush2.msra.mxu0 0.0
  %2828 = vmatprep.subr.mxu0 0.0
  %2829 = vmatpush2.msra.mxu0 0.0
  %2830 = vmatprep.subr.mxu0 0.0
  %2831 = vmatpush2.msra.mxu0 0.0
  %2832 = vmatprep.subr.mxu0 0.0
  %2833 = vmatpush2.msra.mxu0 0.0
  %2834 = vmatprep.mubr.f32.mxu0 0.0
  %2835 = vmatmul.mubr.f32.gmra.mxu0 %v2768
  %v2836 = vpop.f32.mrf.mxu0
  %v2837 = vadd.f32 0.0, %v2836
  %v2838 = vpop.f32.mrf.mxu0
  %2839 = vdwg.mxu0
  %v2841 = vsel %vm1997, %v2688, 0
  %2843 = vmatprep.subr.mxu0 0.0
  %2844 = vmatpush1.msra.mxu0 0.0
  %2845 = vmatprep.subr.mxu0 0.0
  %2846 = vmatpush1.msra.mxu0 0.0
  %2847 = vmatprep.subr.mxu0 0.0
  %2848 = vmatpush1.msra.mxu0 0.0
  %2849 = vmatprep.subr.mxu0 0.0
  %2850 = vmatpush1.msra.mxu0 0.0
  %2851 = vmatprep.subr.mxu0 0.0
  %2852 = vmatpush1.msra.mxu0 0.0
  %2853 = vmatprep.subr.mxu0 0.0
  %2854 = vmatpush1.msra.mxu0 0.0
  %2855 = vmatprep.subr.mxu0 0.0
  %2856 = vmatpush1.msra.mxu0 0.0
  %2857 = vmatprep.subr.mxu0 0.0
  %2858 = vmatpush1.msra.mxu0 0.0
  %2859 = vmatprep.subr.mxu0 0.0
  %2860 = vmatpush1.msra.mxu0 0.0
  %2861 = vmatprep.subr.mxu0 0.0
  %2862 = vmatpush1.msra.mxu0 0.0
  %2863 = vmatprep.subr.mxu0 0.0
  %2864 = vmatpush1.msra.mxu0 0.0
  %2865 = vmatprep.subr.mxu0 0.0
  %2866 = vmatpush1.msra.mxu0 0.0
  %2867 = vmatprep.subr.mxu0 0.0
  %2868 = vmatpush1.msra.mxu0 0.0
  %2869 = vmatprep.subr.mxu0 0.0
  %2870 = vmatpush1.msra.mxu0 0.0
  %2871 = vmatprep.subr.mxu0 0.0
  %2872 = vmatpush1.msra.mxu0 0.0
  %2873 = vmatprep.subr.mxu0 0.0
  %2874 = vmatpush1.msra.mxu0 %v1644
  %2875 = vmatprep.subr.mxu0 0.0
  %2876 = vmatpush2.msra.mxu0 0.0
  %2877 = vmatprep.subr.mxu0 0.0
  %2878 = vmatpush2.msra.mxu0 0.0
  %2879 = vmatprep.subr.mxu0 0.0
  %2880 = vmatpush2.msra.mxu0 0.0
  %2881 = vmatprep.subr.mxu0 0.0
  %2882 = vmatpush2.msra.mxu0 0.0
  %2883 = vmatprep.subr.mxu0 0.0
  %2884 = vmatpush2.msra.mxu0 0.0
  %2885 = vmatprep.subr.mxu0 0.0
  %2886 = vmatpush2.msra.mxu0 0.0
  %2887 = vmatprep.subr.mxu0 0.0
  %2888 = vmatpush2.msra.mxu0 0.0
  %2889 = vmatprep.subr.mxu0 0.0
  %2890 = vmatpush2.msra.mxu0 0.0
  %2891 = vmatprep.subr.mxu0 0.0
  %2892 = vmatpush2.msra.mxu0 0.0
  %2893 = vmatprep.subr.mxu0 0.0
  %2894 = vmatpush2.msra.mxu0 0.0
  %2895 = vmatprep.subr.mxu0 0.0
  %2896 = vmatpush2.msra.mxu0 0.0
  %2897 = vmatprep.subr.mxu0 0.0
  %2898 = vmatpush2.msra.mxu0 0.0
  %2899 = vmatprep.subr.mxu0 0.0
  %2900 = vmatpush2.msra.mxu0 0.0
  %2901 = vmatprep.subr.mxu0 0.0
  %2902 = vmatpush2.msra.mxu0 0.0
  %2903 = vmatprep.subr.mxu0 0.0
  %2904 = vmatpush2.msra.mxu0 0.0
  %2905 = vmatprep.subr.mxu0 0.0
  %2906 = vmatpush2.msra.mxu0 0.0
  %2907 = vmatprep.mubr.f32.mxu0 0.0
  %2908 = vmatmul.mubr.f32.gmra.mxu0 %v2841
  %v2909 = vpop.f32.mrf.mxu0
  %v2910 = vadd.f32 0.0, %v2909
  %v2911 = vpop.f32.mrf.mxu0
  %2912 = vdwg.mxu0
  %v2914 = vsel %vm1997, %v2689, 0
  %2916 = vmatprep.subr.mxu0 0.0
  %2917 = vmatpush1.msra.mxu0 0.0
  %2918 = vmatprep.subr.mxu0 0.0
  %2919 = vmatpush1.msra.mxu0 0.0
  %2920 = vmatprep.subr.mxu0 0.0
  %2921 = vmatpush1.msra.mxu0 0.0
  %2922 = vmatprep.subr.mxu0 0.0
  %2923 = vmatpush1.msra.mxu0 0.0
  %2924 = vmatprep.subr.mxu0 0.0
  %2925 = vmatpush1.msra.mxu0 0.0
  %2926 = vmatprep.subr.mxu0 0.0
  %2927 = vmatpush1.msra.mxu0 0.0
  %2928 = vmatprep.subr.mxu0 0.0
  %2929 = vmatpush1.msra.mxu0 0.0
  %2930 = vmatprep.subr.mxu0 0.0
  %2931 = vmatpush1.msra.mxu0 0.0
  %2932 = vmatprep.subr.mxu0 0.0
  %2933 = vmatpush1.msra.mxu0 0.0
  %2934 = vmatprep.subr.mxu0 0.0
  %2935 = vmatpush1.msra.mxu0 0.0
  %2936 = vmatprep.subr.mxu0 0.0
  %2937 = vmatpush1.msra.mxu0 0.0
  %2938 = vmatprep.subr.mxu0 0.0
  %2939 = vmatpush1.msra.mxu0 0.0
  %2940 = vmatprep.subr.mxu0 0.0
  %2941 = vmatpush1.msra.mxu0 0.0
  %2942 = vmatprep.subr.mxu0 0.0
  %2943 = vmatpush1.msra.mxu0 0.0
  %2944 = vmatprep.subr.mxu0 0.0
  %2945 = vmatpush1.msra.mxu0 0.0
  %2946 = vmatprep.subr.mxu0 0.0
  %2947 = vmatpush1.msra.mxu0 %v1714
  %2948 = vmatprep.subr.mxu0 0.0
  %2949 = vmatpush2.msra.mxu0 0.0
  %2950 = vmatprep.subr.mxu0 0.0
  %2951 = vmatpush2.msra.mxu0 0.0
  %2952 = vmatprep.subr.mxu0 0.0
  %2953 = vmatpush2.msra.mxu0 0.0
  %2954 = vmatprep.subr.mxu0 0.0
  %2955 = vmatpush2.msra.mxu0 0.0
  %2956 = vmatprep.subr.mxu0 0.0
  %2957 = vmatpush2.msra.mxu0 0.0
  %2958 = vmatprep.subr.mxu0 0.0
  %2959 = vmatpush2.msra.mxu0 0.0
  %2960 = vmatprep.subr.mxu0 0.0
  %2961 = vmatpush2.msra.mxu0 0.0
  %2962 = vmatprep.subr.mxu0 0.0
  %2963 = vmatpush2.msra.mxu0 0.0
  %2964 = vmatprep.subr.mxu0 0.0
  %2965 = vmatpush2.msra.mxu0 0.0
  %2966 = vmatprep.subr.mxu0 0.0
  %2967 = vmatpush2.msra.mxu0 0.0
  %2968 = vmatprep.subr.mxu0 0.0
  %2969 = vmatpush2.msra.mxu0 0.0
  %2970 = vmatprep.subr.mxu0 0.0
  %2971 = vmatpush2.msra.mxu0 0.0
  %2972 = vmatprep.subr.mxu0 0.0
  %2973 = vmatpush2.msra.mxu0 0.0
  %2974 = vmatprep.subr.mxu0 0.0
  %2975 = vmatpush2.msra.mxu0 0.0
  %2976 = vmatprep.subr.mxu0 0.0
  %2977 = vmatpush2.msra.mxu0 0.0
  %2978 = vmatprep.subr.mxu0 0.0
  %2979 = vmatpush2.msra.mxu0 0.0
  %2980 = vmatprep.mubr.f32.mxu0 0.0
  %2981 = vmatmul.mubr.f32.gmra.mxu0 %v2914
  %v2982 = vpop.f32.mrf.mxu0
  %v2983 = vadd.f32 0.0, %v2982
  %v2984 = vpop.f32.mrf.mxu0
  %2985 = vdwg.mxu0
  %v2987 = vsel %vm1997, %v2690, 0
  %2989 = vmatprep.subr.mxu0 0.0
  %2990 = vmatpush1.msra.mxu0 0.0
  %2991 = vmatprep.subr.mxu0 0.0
  %2992 = vmatpush1.msra.mxu0 0.0
  %2993 = vmatprep.subr.mxu0 0.0
  %2994 = vmatpush1.msra.mxu0 0.0
  %2995 = vmatprep.subr.mxu0 0.0
  %2996 = vmatpush1.msra.mxu0 0.0
  %2997 = vmatprep.subr.mxu0 0.0
  %2998 = vmatpush1.msra.mxu0 0.0
  %2999 = vmatprep.subr.mxu0 0.0
  %3000 = vmatpush1.msra.mxu0 0.0
  %3001 = vmatprep.subr.mxu0 0.0
  %3002 = vmatpush1.msra.mxu0 0.0
  %3003 = vmatprep.subr.mxu0 0.0
  %3004 = vmatpush1.msra.mxu0 0.0
  %3005 = vmatprep.subr.mxu0 0.0
  %3006 = vmatpush1.msra.mxu0 0.0
  %3007 = vmatprep.subr.mxu0 0.0
  %3008 = vmatpush1.msra.mxu0 0.0
  %3009 = vmatprep.subr.mxu0 0.0
  %3010 = vmatpush1.msra.mxu0 0.0
  %3011 = vmatprep.subr.mxu0 0.0
  %3012 = vmatpush1.msra.mxu0 0.0
  %3013 = vmatprep.subr.mxu0 0.0
  %3014 = vmatpush1.msra.mxu0 0.0
  %3015 = vmatprep.subr.mxu0 0.0
  %3016 = vmatpush1.msra.mxu0 0.0
  %3017 = vmatprep.subr.mxu0 0.0
  %3018 = vmatpush1.msra.mxu0 0.0
  %3019 = vmatprep.subr.mxu0 0.0
  %3020 = vmatpush1.msra.mxu0 %v1784
  %3021 = vmatprep.subr.mxu0 0.0
  %3022 = vmatpush2.msra.mxu0 0.0
  %3023 = vmatprep.subr.mxu0 0.0
  %3024 = vmatpush2.msra.mxu0 0.0
  %3025 = vmatprep.subr.mxu0 0.0
  %3026 = vmatpush2.msra.mxu0 0.0
  %3027 = vmatprep.subr.mxu0 0.0
  %3028 = vmatpush2.msra.mxu0 0.0
  %3029 = vmatprep.subr.mxu0 0.0
  %3030 = vmatpush2.msra.mxu0 0.0
  %3031 = vmatprep.subr.mxu0 0.0
  %3032 = vmatpush2.msra.mxu0 0.0
  %3033 = vmatprep.subr.mxu0 0.0
  %3034 = vmatpush2.msra.mxu0 0.0
  %3035 = vmatprep.subr.mxu0 0.0
  %3036 = vmatpush2.msra.mxu0 0.0
  %3037 = vmatprep.subr.mxu0 0.0
  %3038 = vmatpush2.msra.mxu0 0.0
  %3039 = vmatprep.subr.mxu0 0.0
  %3040 = vmatpush2.msra.mxu0 0.0
  %3041 = vmatprep.subr.mxu0 0.0
  %3042 = vmatpush2.msra.mxu0 0.0
  %3043 = vmatprep.subr.mxu0 0.0
  %3044 = vmatpush2.msra.mxu0 0.0
  %3045 = vmatprep.subr.mxu0 0.0
  %3046 = vmatpush2.msra.mxu0 0.0
  %3047 = vmatprep.subr.mxu0 0.0
  %3048 = vmatpush2.msra.mxu0 0.0
  %3049 = vmatprep.subr.mxu0 0.0
  %3050 = vmatpush2.msra.mxu0 0.0
  %3051 = vmatprep.subr.mxu0 0.0
  %3052 = vmatpush2.msra.mxu0 0.0
  %3053 = vmatprep.mubr.f32.mxu0 0.0
  %3054 = vmatmul.mubr.f32.gmra.mxu0 %v2987
  %v3055 = vpop.f32.mrf.mxu0
  %v3056 = vadd.f32 0.0, %v3055
  %v3057 = vpop.f32.mrf.mxu0
  %3058 = vdwg.mxu0
  %v3060 = vsel %vm1997, %v2691, 0
  %3062 = vmatprep.subr.mxu0 0.0
  %3063 = vmatpush1.msra.mxu0 0.0
  %3064 = vmatprep.subr.mxu0 0.0
  %3065 = vmatpush1.msra.mxu0 0.0
  %3066 = vmatprep.subr.mxu0 0.0
  %3067 = vmatpush1.msra.mxu0 0.0
  %3068 = vmatprep.subr.mxu0 0.0
  %3069 = vmatpush1.msra.mxu0 0.0
  %3070 = vmatprep.subr.mxu0 0.0
  %3071 = vmatpush1.msra.mxu0 0.0
  %3072 = vmatprep.subr.mxu0 0.0
  %3073 = vmatpush1.msra.mxu0 0.0
  %3074 = vmatprep.subr.mxu0 0.0
  %3075 = vmatpush1.msra.mxu0 0.0
  %3076 = vmatprep.subr.mxu0 0.0
  %3077 = vmatpush1.msra.mxu0 0.0
  %3078 = vmatprep.subr.mxu0 0.0
  %3079 = vmatpush1.msra.mxu0 0.0
  %3080 = vmatprep.subr.mxu0 0.0
  %3081 = vmatpush1.msra.mxu0 0.0
  %3082 = vmatprep.subr.mxu0 0.0
  %3083 = vmatpush1.msra.mxu0 0.0
  %3084 = vmatprep.subr.mxu0 0.0
  %3085 = vmatpush1.msra.mxu0 0.0
  %3086 = vmatprep.subr.mxu0 0.0
  %3087 = vmatpush1.msra.mxu0 0.0
  %3088 = vmatprep.subr.mxu0 0.0
  %3089 = vmatpush1.msra.mxu0 0.0
  %3090 = vmatprep.subr.mxu0 0.0
  %3091 = vmatpush1.msra.mxu0 0.0
  %3092 = vmatprep.subr.mxu0 0.0
  %3093 = vmatpush1.msra.mxu0 %v1854
  %3094 = vmatprep.subr.mxu0 0.0
  %3095 = vmatpush2.msra.mxu0 0.0
  %3096 = vmatprep.subr.mxu0 0.0
  %3097 = vmatpush2.msra.mxu0 0.0
  %3098 = vmatprep.subr.mxu0 0.0
  %3099 = vmatpush2.msra.mxu0 0.0
  %3100 = vmatprep.subr.mxu0 0.0
  %3101 = vmatpush2.msra.mxu0 0.0
  %3102 = vmatprep.subr.mxu0 0.0
  %3103 = vmatpush2.msra.mxu0 0.0
  %3104 = vmatprep.subr.mxu0 0.0
  %3105 = vmatpush2.msra.mxu0 0.0
  %3106 = vmatprep.subr.mxu0 0.0
  %3107 = vmatpush2.msra.mxu0 0.0
  %3108 = vmatprep.subr.mxu0 0.0
  %3109 = vmatpush2.msra.mxu0 0.0
  %3110 = vmatprep.subr.mxu0 0.0
  %3111 = vmatpush2.msra.mxu0 0.0
  %3112 = vmatprep.subr.mxu0 0.0
  %3113 = vmatpush2.msra.mxu0 0.0
  %3114 = vmatprep.subr.mxu0 0.0
  %3115 = vmatpush2.msra.mxu0 0.0
  %3116 = vmatprep.subr.mxu0 0.0
  %3117 = vmatpush2.msra.mxu0 0.0
  %3118 = vmatprep.subr.mxu0 0.0
  %3119 = vmatpush2.msra.mxu0 0.0
  %3120 = vmatprep.subr.mxu0 0.0
  %3121 = vmatpush2.msra.mxu0 0.0
  %3122 = vmatprep.subr.mxu0 0.0
  %3123 = vmatpush2.msra.mxu0 0.0
  %3124 = vmatprep.subr.mxu0 0.0
  %3125 = vmatpush2.msra.mxu0 0.0
  %3126 = vmatprep.mubr.f32.mxu0 0.0
  %3127 = vmatmul.mubr.f32.gmra.mxu0 %v3060
  %v3128 = vpop.f32.mrf.mxu0
  %v3129 = vadd.f32 0.0, %v3128
  %v3130 = vpop.f32.mrf.mxu0
  %3131 = vdwg.mxu0
  %v3133 = vsel %vm1997, %v2692, 0
  %3135 = vmatprep.subr.mxu0 0.0
  %3136 = vmatpush1.msra.mxu0 0.0
  %3137 = vmatprep.subr.mxu0 0.0
  %3138 = vmatpush1.msra.mxu0 0.0
  %3139 = vmatprep.subr.mxu0 0.0
  %3140 = vmatpush1.msra.mxu0 0.0
  %3141 = vmatprep.subr.mxu0 0.0
  %3142 = vmatpush1.msra.mxu0 0.0
  %3143 = vmatprep.subr.mxu0 0.0
  %3144 = vmatpush1.msra.mxu0 0.0
  %3145 = vmatprep.subr.mxu0 0.0
  %3146 = vmatpush1.msra.mxu0 0.0
  %3147 = vmatprep.subr.mxu0 0.0
  %3148 = vmatpush1.msra.mxu0 0.0
  %3149 = vmatprep.subr.mxu0 0.0
  %3150 = vmatpush1.msra.mxu0 0.0
  %3151 = vmatprep.subr.mxu0 0.0
  %3152 = vmatpush1.msra.mxu0 0.0
  %3153 = vmatprep.subr.mxu0 0.0
  %3154 = vmatpush1.msra.mxu0 0.0
  %3155 = vmatprep.subr.mxu0 0.0
  %3156 = vmatpush1.msra.mxu0 0.0
  %3157 = vmatprep.subr.mxu0 0.0
  %3158 = vmatpush1.msra.mxu0 0.0
  %3159 = vmatprep.subr.mxu0 0.0
  %3160 = vmatpush1.msra.mxu0 0.0
  %3161 = vmatprep.subr.mxu0 0.0
  %3162 = vmatpush1.msra.mxu0 0.0
  %3163 = vmatprep.subr.mxu0 0.0
  %3164 = vmatpush1.msra.mxu0 0.0
  %3165 = vmatprep.subr.mxu0 0.0
  %3166 = vmatpush1.msra.mxu0 %v1924
  %3167 = vmatprep.subr.mxu0 0.0
  %3168 = vmatpush2.msra.mxu0 0.0
  %3169 = vmatprep.subr.mxu0 0.0
  %3170 = vmatpush2.msra.mxu0 0.0
  %3171 = vmatprep.subr.mxu0 0.0
  %3172 = vmatpush2.msra.mxu0 0.0
  %3173 = vmatprep.subr.mxu0 0.0
  %3174 = vmatpush2.msra.mxu0 0.0
  %3175 = vmatprep.subr.mxu0 0.0
  %3176 = vmatpush2.msra.mxu0 0.0
  %3177 = vmatprep.subr.mxu0 0.0
  %3178 = vmatpush2.msra.mxu0 0.0
  %3179 = vmatprep.subr.mxu0 0.0
  %3180 = vmatpush2.msra.mxu0 0.0
  %3181 = vmatprep.subr.mxu0 0.0
  %3182 = vmatpush2.msra.mxu0 0.0
  %3183 = vmatprep.subr.mxu0 0.0
  %3184 = vmatpush2.msra.mxu0 0.0
  %3185 = vmatprep.subr.mxu0 0.0
  %3186 = vmatpush2.msra.mxu0 0.0
  %3187 = vmatprep.subr.mxu0 0.0
  %3188 = vmatpush2.msra.mxu0 0.0
  %3189 = vmatprep.subr.mxu0 0.0
  %3190 = vmatpush2.msra.mxu0 0.0
  %3191 = vmatprep.subr.mxu0 0.0
  %3192 = vmatpush2.msra.mxu0 0.0
  %3193 = vmatprep.subr.mxu0 0.0
  %3194 = vmatpush2.msra.mxu0 0.0
  %3195 = vmatprep.subr.mxu0 0.0
  %3196 = vmatpush2.msra.mxu0 0.0
  %3197 = vmatprep.subr.mxu0 0.0
  %3198 = vmatpush2.msra.mxu0 0.0
  %3199 = vmatprep.mubr.f32.mxu0 0.0
  %3200 = vmatmul.mubr.f32.gmra.mxu0 %v3133
  %v3201 = vpop.f32.mrf.mxu0
  %v3202 = vadd.f32 0.0, %v3201
  %v3203 = vpop.f32.mrf.mxu0
  %3204 = vdwg.mxu0
  %v3206 = vsel %vm1997, %v2693, 0
  %3208 = vmatprep.subr.mxu0 0.0
  %3209 = vmatpush1.msra.mxu0 0.0
  %3210 = vmatprep.subr.mxu0 0.0
  %3211 = vmatpush1.msra.mxu0 0.0
  %3212 = vmatprep.subr.mxu0 0.0
  %3213 = vmatpush1.msra.mxu0 0.0
  %3214 = vmatprep.subr.mxu0 0.0
  %3215 = vmatpush1.msra.mxu0 0.0
  %3216 = vmatprep.subr.mxu0 0.0
  %3217 = vmatpush1.msra.mxu0 0.0
  %3218 = vmatprep.subr.mxu0 0.0
  %3219 = vmatpush1.msra.mxu0 0.0
  %3220 = vmatprep.subr.mxu0 0.0
  %3221 = vmatpush1.msra.mxu0 0.0
  %3222 = vmatprep.subr.mxu0 0.0
  %3223 = vmatpush1.msra.mxu0 0.0
  %3224 = vmatprep.subr.mxu0 0.0
  %3225 = vmatpush1.msra.mxu0 0.0
  %3226 = vmatprep.subr.mxu0 0.0
  %3227 = vmatpush1.msra.mxu0 0.0
  %3228 = vmatprep.subr.mxu0 0.0
  %3229 = vmatpush1.msra.mxu0 0.0
  %3230 = vmatprep.subr.mxu0 0.0
  %3231 = vmatpush1.msra.mxu0 0.0
  %3232 = vmatprep.subr.mxu0 0.0
  %3233 = vmatpush1.msra.mxu0 0.0
  %3234 = vmatprep.subr.mxu0 0.0
  %3235 = vmatpush1.msra.mxu0 0.0
  %3236 = vmatprep.subr.mxu0 0.0
  %3237 = vmatpush1.msra.mxu0 0.0
  %3238 = vmatprep.subr.mxu0 0.0
  %3239 = vmatpush1.msra.mxu0 %v1994
  %3240 = vmatprep.subr.mxu0 0.0
  %3241 = vmatpush2.msra.mxu0 0.0
  %3242 = vmatprep.subr.mxu0 0.0
  %3243 = vmatpush2.msra.mxu0 0.0
  %3244 = vmatprep.subr.mxu0 0.0
  %3245 = vmatpush2.msra.mxu0 0.0
  %3246 = vmatprep.subr.mxu0 0.0
  %3247 = vmatpush2.msra.mxu0 0.0
  %3248 = vmatprep.subr.mxu0 0.0
  %3249 = vmatpush2.msra.mxu0 0.0
  %3250 = vmatprep.subr.mxu0 0.0
  %3251 = vmatpush2.msra.mxu0 0.0
  %3252 = vmatprep.subr.mxu0 0.0
  %3253 = vmatpush2.msra.mxu0 0.0
  %3254 = vmatprep.subr.mxu0 0.0
  %3255 = vmatpush2.msra.mxu0 0.0
  %3256 = vmatprep.subr.mxu0 0.0
  %3257 = vmatpush2.msra.mxu0 0.0
  %3258 = vmatprep.subr.mxu0 0.0
  %3259 = vmatpush2.msra.mxu0 0.0
  %3260 = vmatprep.subr.mxu0 0.0
  %3261 = vmatpush2.msra.mxu0 0.0
  %3262 = vmatprep.subr.mxu0 0.0
  %3263 = vmatpush2.msra.mxu0 0.0
  %3264 = vmatprep.subr.mxu0 0.0
  %3265 = vmatpush2.msra.mxu0 0.0
  %3266 = vmatprep.subr.mxu0 0.0
  %3267 = vmatpush2.msra.mxu0 0.0
  %3268 = vmatprep.subr.mxu0 0.0
  %3269 = vmatpush2.msra.mxu0 0.0
  %3270 = vmatprep.subr.mxu0 0.0
  %3271 = vmatpush2.msra.mxu0 0.0
  %3272 = vmatprep.mubr.f32.mxu0 0.0
  %3273 = vmatmul.mubr.f32.gmra.mxu0 %v3206
  %v3274 = vpop.f32.mrf.mxu0
  %v3275 = vadd.f32 0.0, %v3274
  %v3276 = vpop.f32.mrf.mxu0
  %3277 = vdwg.mxu0
  %v3278 = vld [vmem:[%s3] sm:$0xff]
  %v3279 = vld [vmem:[%s3 + $0x8] sm:$0xff]
  %v3280 = vld [vmem:[%s3 + $0x10] sm:$0xff]
  %v3281 = vld [vmem:[%s3 + $0x18] sm:$0xff]
  %v3282 = vld [vmem:[%s3 + $0x20] sm:$0xff]
  %v3283 = vld [vmem:[%s3 + $0x28] sm:$0xff]
  %v3284 = vld [vmem:[%s3 + $0x30] sm:$0xff]
  %v3285 = vld [vmem:[%s3 + $0x38] sm:$0xff]
  %v3287 = vsel %vm1997, %v2764, 0
  %3289 = vmatprep.subr.mxu0 0.0
  %3290 = vmatpush1.msra.mxu0 0.0
  %3291 = vmatprep.subr.mxu0 0.0
  %3292 = vmatpush1.msra.mxu0 0.0
  %3293 = vmatprep.subr.mxu0 0.0
  %3294 = vmatpush1.msra.mxu0 0.0
  %3295 = vmatprep.subr.mxu0 0.0
  %3296 = vmatpush1.msra.mxu0 0.0
  %3297 = vmatprep.subr.mxu0 0.0
  %3298 = vmatpush1.msra.mxu0 0.0
  %3299 = vmatprep.subr.mxu0 0.0
  %3300 = vmatpush1.msra.mxu0 0.0
  %3301 = vmatprep.subr.mxu0 0.0
  %3302 = vmatpush1.msra.mxu0 0.0
  %3303 = vmatprep.subr.mxu0 0.0
  %3304 = vmatpush1.msra.mxu0 0.0
  %3305 = vmatprep.subr.mxu0 0.0
  %3306 = vmatpush1.msra.mxu0 0.0
  %3307 = vmatprep.subr.mxu0 0.0
  %3308 = vmatpush1.msra.mxu0 0.0
  %3309 = vmatprep.subr.mxu0 0.0
  %3310 = vmatpush1.msra.mxu0 0.0
  %3311 = vmatprep.subr.mxu0 0.0
  %3312 = vmatpush1.msra.mxu0 0.0
  %3313 = vmatprep.subr.mxu0 0.0
  %3314 = vmatpush1.msra.mxu0 0.0
  %3315 = vmatprep.subr.mxu0 0.0
  %3316 = vmatpush1.msra.mxu0 0.0
  %3317 = vmatprep.subr.mxu0 0.0
  %3318 = vmatpush1.msra.mxu0 0.0
  %3319 = vmatprep.subr.mxu0 0.0
  %3320 = vmatpush1.msra.mxu0 %v3278
  %3321 = vmatprep.subr.mxu0 0.0
  %3322 = vmatpush2.msra.mxu0 0.0
  %3323 = vmatprep.subr.mxu0 0.0
  %3324 = vmatpush2.msra.mxu0 0.0
  %3325 = vmatprep.subr.mxu0 0.0
  %3326 = vmatpush2.msra.mxu0 0.0
  %3327 = vmatprep.subr.mxu0 0.0
  %3328 = vmatpush2.msra.mxu0 0.0
  %3329 = vmatprep.subr.mxu0 0.0
  %3330 = vmatpush2.msra.mxu0 0.0
  %3331 = vmatprep.subr.mxu0 0.0
  %3332 = vmatpush2.msra.mxu0 0.0
  %3333 = vmatprep.subr.mxu0 0.0
  %3334 = vmatpush2.msra.mxu0 0.0
  %3335 = vmatprep.subr.mxu0 0.0
  %3336 = vmatpush2.msra.mxu0 0.0
  %3337 = vmatprep.subr.mxu0 0.0
  %3338 = vmatpush2.msra.mxu0 0.0
  %3339 = vmatprep.subr.mxu0 0.0
  %3340 = vmatpush2.msra.mxu0 0.0
  %3341 = vmatprep.subr.mxu0 0.0
  %3342 = vmatpush2.msra.mxu0 0.0
  %3343 = vmatprep.subr.mxu0 0.0
  %3344 = vmatpush2.msra.mxu0 0.0
  %3345 = vmatprep.subr.mxu0 0.0
  %3346 = vmatpush2.msra.mxu0 0.0
  %3347 = vmatprep.subr.mxu0 0.0
  %3348 = vmatpush2.msra.mxu0 0.0
  %3349 = vmatprep.subr.mxu0 0.0
  %3350 = vmatpush2.msra.mxu0 0.0
  %3351 = vmatprep.subr.mxu0 0.0
  %3352 = vmatpush2.msra.mxu0 0.0
  %3353 = vmatprep.mubr.f32.mxu0 0.0
  %3354 = vmatmul.mubr.f32.gmra.mxu0 %v3287
  %v3355 = vpop.f32.mrf.mxu0
  %v3356 = vadd.f32 0.0, %v3355
  %v3357 = vpop.f32.mrf.mxu0
  %3358 = vdwg.mxu0
  %v3360 = vsel %vm1997, %v2837, 0
  %3362 = vmatprep.subr.mxu0 0.0
  %3363 = vmatpush1.msra.mxu0 0.0
  %3364 = vmatprep.subr.mxu0 0.0
  %3365 = vmatpush1.msra.mxu0 0.0
  %3366 = vmatprep.subr.mxu0 0.0
  %3367 = vmatpush1.msra.mxu0 0.0
  %3368 = vmatprep.subr.mxu0 0.0
  %3369 = vmatpush1.msra.mxu0 0.0
  %3370 = vmatprep.subr.mxu0 0.0
  %3371 = vmatpush1.msra.mxu0 0.0
  %3372 = vmatprep.subr.mxu0 0.0
  %3373 = vmatpush1.msra.mxu0 0.0
  %3374 = vmatprep.subr.mxu0 0.0
  %3375 = vmatpush1.msra.mxu0 0.0
  %3376 = vmatprep.subr.mxu0 0.0
  %3377 = vmatpush1.msra.mxu0 0.0
  %3378 = vmatprep.subr.mxu0 0.0
  %3379 = vmatpush1.msra.mxu0 0.0
  %3380 = vmatprep.subr.mxu0 0.0
  %3381 = vmatpush1.msra.mxu0 0.0
  %3382 = vmatprep.subr.mxu0 0.0
  %3383 = vmatpush1.msra.mxu0 0.0
  %3384 = vmatprep.subr.mxu0 0.0
  %3385 = vmatpush1.msra.mxu0 0.0
  %3386 = vmatprep.subr.mxu0 0.0
  %3387 = vmatpush1.msra.mxu0 0.0
  %3388 = vmatprep.subr.mxu0 0.0
  %3389 = vmatpush1.msra.mxu0 0.0
  %3390 = vmatprep.subr.mxu0 0.0
  %3391 = vmatpush1.msra.mxu0 0.0
  %3392 = vmatprep.subr.mxu0 0.0
  %3393 = vmatpush1.msra.mxu0 %v3279
  %3394 = vmatprep.subr.mxu0 0.0
  %3395 = vmatpush2.msra.mxu0 0.0
  %3396 = vmatprep.subr.mxu0 0.0
  %3397 = vmatpush2.msra.mxu0 0.0
  %3398 = vmatprep.subr.mxu0 0.0
  %3399 = vmatpush2.msra.mxu0 0.0
  %3400 = vmatprep.subr.mxu0 0.0
  %3401 = vmatpush2.msra.mxu0 0.0
  %3402 = vmatprep.subr.mxu0 0.0
  %3403 = vmatpush2.msra.mxu0 0.0
  %3404 = vmatprep.subr.mxu0 0.0
  %3405 = vmatpush2.msra.mxu0 0.0
  %3406 = vmatprep.subr.mxu0 0.0
  %3407 = vmatpush2.msra.mxu0 0.0
  %3408 = vmatprep.subr.mxu0 0.0
  %3409 = vmatpush2.msra.mxu0 0.0
  %3410 = vmatprep.subr.mxu0 0.0
  %3411 = vmatpush2.msra.mxu0 0.0
  %3412 = vmatprep.subr.mxu0 0.0
  %3413 = vmatpush2.msra.mxu0 0.0
  %3414 = vmatprep.subr.mxu0 0.0
  %3415 = vmatpush2.msra.mxu0 0.0
  %3416 = vmatprep.subr.mxu0 0.0
  %3417 = vmatpush2.msra.mxu0 0.0
  %3418 = vmatprep.subr.mxu0 0.0
  %3419 = vmatpush2.msra.mxu0 0.0
  %3420 = vmatprep.subr.mxu0 0.0
  %3421 = vmatpush2.msra.mxu0 0.0
  %3422 = vmatprep.subr.mxu0 0.0
  %3423 = vmatpush2.msra.mxu0 0.0
  %3424 = vmatprep.subr.mxu0 0.0
  %3425 = vmatpush2.msra.mxu0 0.0
  %3426 = vmatprep.mubr.f32.mxu0 0.0
  %3427 = vmatmul.mubr.f32.gmra.mxu0 %v3360
  %v3428 = vpop.f32.mrf.mxu0
  %v3429 = vadd.f32 0.0, %v3428
  %v3430 = vpop.f32.mrf.mxu0
  %3431 = vdwg.mxu0
  %v3433 = vsel %vm1997, %v2910, 0
  %3435 = vmatprep.subr.mxu0 0.0
  %3436 = vmatpush1.msra.mxu0 0.0
  %3437 = vmatprep.subr.mxu0 0.0
  %3438 = vmatpush1.msra.mxu0 0.0
  %3439 = vmatprep.subr.mxu0 0.0
  %3440 = vmatpush1.msra.mxu0 0.0
  %3441 = vmatprep.subr.mxu0 0.0
  %3442 = vmatpush1.msra.mxu0 0.0
  %3443 = vmatprep.subr.mxu0 0.0
  %3444 = vmatpush1.msra.mxu0 0.0
  %3445 = vmatprep.subr.mxu0 0.0
  %3446 = vmatpush1.msra.mxu0 0.0
  %3447 = vmatprep.subr.mxu0 0.0
  %3448 = vmatpush1.msra.mxu0 0.0
  %3449 = vmatprep.subr.mxu0 0.0
  %3450 = vmatpush1.msra.mxu0 0.0
  %3451 = vmatprep.subr.mxu0 0.0
  %3452 = vmatpush1.msra.mxu0 0.0
  %3453 = vmatprep.subr.mxu0 0.0
  %3454 = vmatpush1.msra.mxu0 0.0
  %3455 = vmatprep.subr.mxu0 0.0
  %3456 = vmatpush1.msra.mxu0 0.0
  %3457 = vmatprep.subr.mxu0 0.0
  %3458 = vmatpush1.msra.mxu0 0.0
  %3459 = vmatprep.subr.mxu0 0.0
  %3460 = vmatpush1.msra.mxu0 0.0
  %3461 = vmatprep.subr.mxu0 0.0
  %3462 = vmatpush1.msra.mxu0 0.0
  %3463 = vmatprep.subr.mxu0 0.0
  %3464 = vmatpush1.msra.mxu0 0.0
  %3465 = vmatprep.subr.mxu0 0.0
  %3466 = vmatpush1.msra.mxu0 %v3280
  %3467 = vmatprep.subr.mxu0 0.0
  %3468 = vmatpush2.msra.mxu0 0.0
  %3469 = vmatprep.subr.mxu0 0.0
  %3470 = vmatpush2.msra.mxu0 0.0
  %3471 = vmatprep.subr.mxu0 0.0
  %3472 = vmatpush2.msra.mxu0 0.0
  %3473 = vmatprep.subr.mxu0 0.0
  %3474 = vmatpush2.msra.mxu0 0.0
  %3475 = vmatprep.subr.mxu0 0.0
  %3476 = vmatpush2.msra.mxu0 0.0
  %3477 = vmatprep.subr.mxu0 0.0
  %3478 = vmatpush2.msra.mxu0 0.0
  %3479 = vmatprep.subr.mxu0 0.0
  %3480 = vmatpush2.msra.mxu0 0.0
  %3481 = vmatprep.subr.mxu0 0.0
  %3482 = vmatpush2.msra.mxu0 0.0
  %3483 = vmatprep.subr.mxu0 0.0
  %3484 = vmatpush2.msra.mxu0 0.0
  %3485 = vmatprep.subr.mxu0 0.0
  %3486 = vmatpush2.msra.mxu0 0.0
  %3487 = vmatprep.subr.mxu0 0.0
  %3488 = vmatpush2.msra.mxu0 0.0
  %3489 = vmatprep.subr.mxu0 0.0
  %3490 = vmatpush2.msra.mxu0 0.0
  %3491 = vmatprep.subr.mxu0 0.0
  %3492 = vmatpush2.msra.mxu0 0.0
  %3493 = vmatprep.subr.mxu0 0.0
  %3494 = vmatpush2.msra.mxu0 0.0
  %3495 = vmatprep.subr.mxu0 0.0
  %3496 = vmatpush2.msra.mxu0 0.0
  %3497 = vmatprep.subr.mxu0 0.0
  %3498 = vmatpush2.msra.mxu0 0.0
  %3499 = vmatprep.mubr.f32.mxu0 0.0
  %3500 = vmatmul.mubr.f32.gmra.mxu0 %v3433
  %v3501 = vpop.f32.mrf.mxu0
  %v3502 = vadd.f32 0.0, %v3501
  %v3503 = vpop.f32.mrf.mxu0
  %3504 = vdwg.mxu0
  %v3506 = vsel %vm1997, %v2983, 0
  %3508 = vmatprep.subr.mxu0 0.0
  %3509 = vmatpush1.msra.mxu0 0.0
  %3510 = vmatprep.subr.mxu0 0.0
  %3511 = vmatpush1.msra.mxu0 0.0
  %3512 = vmatprep.subr.mxu0 0.0
  %3513 = vmatpush1.msra.mxu0 0.0
  %3514 = vmatprep.subr.mxu0 0.0
  %3515 = vmatpush1.msra.mxu0 0.0
  %3516 = vmatprep.subr.mxu0 0.0
  %3517 = vmatpush1.msra.mxu0 0.0
  %3518 = vmatprep.subr.mxu0 0.0
  %3519 = vmatpush1.msra.mxu0 0.0
  %3520 = vmatprep.subr.mxu0 0.0
  %3521 = vmatpush1.msra.mxu0 0.0
  %3522 = vmatprep.subr.mxu0 0.0
  %3523 = vmatpush1.msra.mxu0 0.0
  %3524 = vmatprep.subr.mxu0 0.0
  %3525 = vmatpush1.msra.mxu0 0.0
  %3526 = vmatprep.subr.mxu0 0.0
  %3527 = vmatpush1.msra.mxu0 0.0
  %3528 = vmatprep.subr.mxu0 0.0
  %3529 = vmatpush1.msra.mxu0 0.0
  %3530 = vmatprep.subr.mxu0 0.0
  %3531 = vmatpush1.msra.mxu0 0.0
  %3532 = vmatprep.subr.mxu0 0.0
  %3533 = vmatpush1.msra.mxu0 0.0
  %3534 = vmatprep.subr.mxu0 0.0
  %3535 = vmatpush1.msra.mxu0 0.0
  %3536 = vmatprep.subr.mxu0 0.0
  %3537 = vmatpush1.msra.mxu0 0.0
  %3538 = vmatprep.subr.mxu0 0.0
  %3539 = vmatpush1.msra.mxu0 %v3281
  %3540 = vmatprep.subr.mxu0 0.0
  %3541 = vmatpush2.msra.mxu0 0.0
  %3542 = vmatprep.subr.mxu0 0.0
  %3543 = vmatpush2.msra.mxu0 0.0
  %3544 = vmatprep.subr.mxu0 0.0
  %3545 = vmatpush2.msra.mxu0 0.0
  %3546 = vmatprep.subr.mxu0 0.0
  %3547 = vmatpush2.msra.mxu0 0.0
  %3548 = vmatprep.subr.mxu0 0.0
  %3549 = vmatpush2.msra.mxu0 0.0
  %3550 = vmatprep.subr.mxu0 0.0
  %3551 = vmatpush2.msra.mxu0 0.0
  %3552 = vmatprep.subr.mxu0 0.0
  %3553 = vmatpush2.msra.mxu0 0.0
  %3554 = vmatprep.subr.mxu0 0.0
  %3555 = vmatpush2.msra.mxu0 0.0
  %3556 = vmatprep.subr.mxu0 0.0
  %3557 = vmatpush2.msra.mxu0 0.0
  %3558 = vmatprep.subr.mxu0 0.0
  %3559 = vmatpush2.msra.mxu0 0.0
  %3560 = vmatprep.subr.mxu0 0.0
  %3561 = vmatpush2.msra.mxu0 0.0
  %3562 = vmatprep.subr.mxu0 0.0
  %3563 = vmatpush2.msra.mxu0 0.0
  %3564 = vmatprep.subr.mxu0 0.0
  %3565 = vmatpush2.msra.mxu0 0.0
  %3566 = vmatprep.subr.mxu0 0.0
  %3567 = vmatpush2.msra.mxu0 0.0
  %3568 = vmatprep.subr.mxu0 0.0
  %3569 = vmatpush2.msra.mxu0 0.0
  %3570 = vmatprep.subr.mxu0 0.0
  %3571 = vmatpush2.msra.mxu0 0.0
  %3572 = vmatprep.mubr.f32.mxu0 0.0
  %3573 = vmatmul.mubr.f32.gmra.mxu0 %v3506
  %v3574 = vpop.f32.mrf.mxu0
  %v3575 = vadd.f32 0.0, %v3574
  %v3576 = vpop.f32.mrf.mxu0
  %3577 = vdwg.mxu0
  %v3579 = vsel %vm1997, %v3056, 0
  %3581 = vmatprep.subr.mxu0 0.0
  %3582 = vmatpush1.msra.mxu0 0.0
  %3583 = vmatprep.subr.mxu0 0.0
  %3584 = vmatpush1.msra.mxu0 0.0
  %3585 = vmatprep.subr.mxu0 0.0
  %3586 = vmatpush1.msra.mxu0 0.0
  %3587 = vmatprep.subr.mxu0 0.0
  %3588 = vmatpush1.msra.mxu0 0.0
  %3589 = vmatprep.subr.mxu0 0.0
  %3590 = vmatpush1.msra.mxu0 0.0
  %3591 = vmatprep.subr.mxu0 0.0
  %3592 = vmatpush1.msra.mxu0 0.0
  %3593 = vmatprep.subr.mxu0 0.0
  %3594 = vmatpush1.msra.mxu0 0.0
  %3595 = vmatprep.subr.mxu0 0.0
  %3596 = vmatpush1.msra.mxu0 0.0
  %3597 = vmatprep.subr.mxu0 0.0
  %3598 = vmatpush1.msra.mxu0 0.0
  %3599 = vmatprep.subr.mxu0 0.0
  %3600 = vmatpush1.msra.mxu0 0.0
  %3601 = vmatprep.subr.mxu0 0.0
  %3602 = vmatpush1.msra.mxu0 0.0
  %3603 = vmatprep.subr.mxu0 0.0
  %3604 = vmatpush1.msra.mxu0 0.0
  %3605 = vmatprep.subr.mxu0 0.0
  %3606 = vmatpush1.msra.mxu0 0.0
  %3607 = vmatprep.subr.mxu0 0.0
  %3608 = vmatpush1.msra.mxu0 0.0
  %3609 = vmatprep.subr.mxu0 0.0
  %3610 = vmatpush1.msra.mxu0 0.0
  %3611 = vmatprep.subr.mxu0 0.0
  %3612 = vmatpush1.msra.mxu0 %v3282
  %3613 = vmatprep.subr.mxu0 0.0
  %3614 = vmatpush2.msra.mxu0 0.0
  %3615 = vmatprep.subr.mxu0 0.0
  %3616 = vmatpush2.msra.mxu0 0.0
  %3617 = vmatprep.subr.mxu0 0.0
  %3618 = vmatpush2.msra.mxu0 0.0
  %3619 = vmatprep.subr.mxu0 0.0
  %3620 = vmatpush2.msra.mxu0 0.0
  %3621 = vmatprep.subr.mxu0 0.0
  %3622 = vmatpush2.msra.mxu0 0.0
  %3623 = vmatprep.subr.mxu0 0.0
  %3624 = vmatpush2.msra.mxu0 0.0
  %3625 = vmatprep.subr.mxu0 0.0
  %3626 = vmatpush2.msra.mxu0 0.0
  %3627 = vmatprep.subr.mxu0 0.0
  %3628 = vmatpush2.msra.mxu0 0.0
  %3629 = vmatprep.subr.mxu0 0.0
  %3630 = vmatpush2.msra.mxu0 0.0
  %3631 = vmatprep.subr.mxu0 0.0
  %3632 = vmatpush2.msra.mxu0 0.0
  %3633 = vmatprep.subr.mxu0 0.0
  %3634 = vmatpush2.msra.mxu0 0.0
  %3635 = vmatprep.subr.mxu0 0.0
  %3636 = vmatpush2.msra.mxu0 0.0
  %3637 = vmatprep.subr.mxu0 0.0
  %3638 = vmatpush2.msra.mxu0 0.0
  %3639 = vmatprep.subr.mxu0 0.0
  %3640 = vmatpush2.msra.mxu0 0.0
  %3641 = vmatprep.subr.mxu0 0.0
  %3642 = vmatpush2.msra.mxu0 0.0
  %3643 = vmatprep.subr.mxu0 0.0
  %3644 = vmatpush2.msra.mxu0 0.0
  %3645 = vmatprep.mubr.f32.mxu0 0.0
  %3646 = vmatmul.mubr.f32.gmra.mxu0 %v3579
  %v3647 = vpop.f32.mrf.mxu0
  %v3648 = vadd.f32 0.0, %v3647
  %v3649 = vpop.f32.mrf.mxu0
  %3650 = vdwg.mxu0
  %v3652 = vsel %vm1997, %v3129, 0
  %3654 = vmatprep.subr.mxu0 0.0
  %3655 = vmatpush1.msra.mxu0 0.0
  %3656 = vmatprep.subr.mxu0 0.0
  %3657 = vmatpush1.msra.mxu0 0.0
  %3658 = vmatprep.subr.mxu0 0.0
  %3659 = vmatpush1.msra.mxu0 0.0
  %3660 = vmatprep.subr.mxu0 0.0
  %3661 = vmatpush1.msra.mxu0 0.0
  %3662 = vmatprep.subr.mxu0 0.0
  %3663 = vmatpush1.msra.mxu0 0.0
  %3664 = vmatprep.subr.mxu0 0.0
  %3665 = vmatpush1.msra.mxu0 0.0
  %3666 = vmatprep.subr.mxu0 0.0
  %3667 = vmatpush1.msra.mxu0 0.0
  %3668 = vmatprep.subr.mxu0 0.0
  %3669 = vmatpush1.msra.mxu0 0.0
  %3670 = vmatprep.subr.mxu0 0.0
  %3671 = vmatpush1.msra.mxu0 0.0
  %3672 = vmatprep.subr.mxu0 0.0
  %3673 = vmatpush1.msra.mxu0 0.0
  %3674 = vmatprep.subr.mxu0 0.0
  %3675 = vmatpush1.msra.mxu0 0.0
  %3676 = vmatprep.subr.mxu0 0.0
  %3677 = vmatpush1.msra.mxu0 0.0
  %3678 = vmatprep.subr.mxu0 0.0
  %3679 = vmatpush1.msra.mxu0 0.0
  %3680 = vmatprep.subr.mxu0 0.0
  %3681 = vmatpush1.msra.mxu0 0.0
  %3682 = vmatprep.subr.mxu0 0.0
  %3683 = vmatpush1.msra.mxu0 0.0
  %3684 = vmatprep.subr.mxu0 0.0
  %3685 = vmatpush1.msra.mxu0 %v3283
  %3686 = vmatprep.subr.mxu0 0.0
  %3687 = vmatpush2.msra.mxu0 0.0
  %3688 = vmatprep.subr.mxu0 0.0
  %3689 = vmatpush2.msra.mxu0 0.0
  %3690 = vmatprep.subr.mxu0 0.0
  %3691 = vmatpush2.msra.mxu0 0.0
  %3692 = vmatprep.subr.mxu0 0.0
  %3693 = vmatpush2.msra.mxu0 0.0
  %3694 = vmatprep.subr.mxu0 0.0
  %3695 = vmatpush2.msra.mxu0 0.0
  %3696 = vmatprep.subr.mxu0 0.0
  %3697 = vmatpush2.msra.mxu0 0.0
  %3698 = vmatprep.subr.mxu0 0.0
  %3699 = vmatpush2.msra.mxu0 0.0
  %3700 = vmatprep.subr.mxu0 0.0
  %3701 = vmatpush2.msra.mxu0 0.0
  %3702 = vmatprep.subr.mxu0 0.0
  %3703 = vmatpush2.msra.mxu0 0.0
  %3704 = vmatprep.subr.mxu0 0.0
  %3705 = vmatpush2.msra.mxu0 0.0
  %3706 = vmatprep.subr.mxu0 0.0
  %3707 = vmatpush2.msra.mxu0 0.0
  %3708 = vmatprep.subr.mxu0 0.0
  %3709 = vmatpush2.msra.mxu0 0.0
  %3710 = vmatprep.subr.mxu0 0.0
  %3711 = vmatpush2.msra.mxu0 0.0
  %3712 = vmatprep.subr.mxu0 0.0
  %3713 = vmatpush2.msra.mxu0 0.0
  %3714 = vmatprep.subr.mxu0 0.0
  %3715 = vmatpush2.msra.mxu0 0.0
  %3716 = vmatprep.subr.mxu0 0.0
  %3717 = vmatpush2.msra.mxu0 0.0
  %3718 = vmatprep.mubr.f32.mxu0 0.0
  %3719 = vmatmul.mubr.f32.gmra.mxu0 %v3652
  %v3720 = vpop.f32.mrf.mxu0
  %v3721 = vadd.f32 0.0, %v3720
  %v3722 = vpop.f32.mrf.mxu0
  %3723 = vdwg.mxu0
  %v3725 = vsel %vm1997, %v3202, 0
  %3727 = vmatprep.subr.mxu0 0.0
  %3728 = vmatpush1.msra.mxu0 0.0
  %3729 = vmatprep.subr.mxu0 0.0
  %3730 = vmatpush1.msra.mxu0 0.0
  %3731 = vmatprep.subr.mxu0 0.0
  %3732 = vmatpush1.msra.mxu0 0.0
  %3733 = vmatprep.subr.mxu0 0.0
  %3734 = vmatpush1.msra.mxu0 0.0
  %3735 = vmatprep.subr.mxu0 0.0
  %3736 = vmatpush1.msra.mxu0 0.0
  %3737 = vmatprep.subr.mxu0 0.0
  %3738 = vmatpush1.msra.mxu0 0.0
  %3739 = vmatprep.subr.mxu0 0.0
  %3740 = vmatpush1.msra.mxu0 0.0
  %3741 = vmatprep.subr.mxu0 0.0
  %3742 = vmatpush1.msra.mxu0 0.0
  %3743 = vmatprep.subr.mxu0 0.0
  %3744 = vmatpush1.msra.mxu0 0.0
  %3745 = vmatprep.subr.mxu0 0.0
  %3746 = vmatpush1.msra.mxu0 0.0
  %3747 = vmatprep.subr.mxu0 0.0
  %3748 = vmatpush1.msra.mxu0 0.0
  %3749 = vmatprep.subr.mxu0 0.0
  %3750 = vmatpush1.msra.mxu0 0.0
  %3751 = vmatprep.subr.mxu0 0.0
  %3752 = vmatpush1.msra.mxu0 0.0
  %3753 = vmatprep.subr.mxu0 0.0
  %3754 = vmatpush1.msra.mxu0 0.0
  %3755 = vmatprep.subr.mxu0 0.0
  %3756 = vmatpush1.msra.mxu0 0.0
  %3757 = vmatprep.subr.mxu0 0.0
  %3758 = vmatpush1.msra.mxu0 %v3284
  %3759 = vmatprep.subr.mxu0 0.0
  %3760 = vmatpush2.msra.mxu0 0.0
  %3761 = vmatprep.subr.mxu0 0.0
  %3762 = vmatpush2.msra.mxu0 0.0
  %3763 = vmatprep.subr.mxu0 0.0
  %3764 = vmatpush2.msra.mxu0 0.0
  %3765 = vmatprep.subr.mxu0 0.0
  %3766 = vmatpush2.msra.mxu0 0.0
  %3767 = vmatprep.subr.mxu0 0.0
  %3768 = vmatpush2.msra.mxu0 0.0
  %3769 = vmatprep.subr.mxu0 0.0
  %3770 = vmatpush2.msra.mxu0 0.0
  %3771 = vmatprep.subr.mxu0 0.0
  %3772 = vmatpush2.msra.mxu0 0.0
  %3773 = vmatprep.subr.mxu0 0.0
  %3774 = vmatpush2.msra.mxu0 0.0
  %3775 = vmatprep.subr.mxu0 0.0
  %3776 = vmatpush2.msra.mxu0 0.0
  %3777 = vmatprep.subr.mxu0 0.0
  %3778 = vmatpush2.msra.mxu0 0.0
  %3779 = vmatprep.subr.mxu0 0.0
  %3780 = vmatpush2.msra.mxu0 0.0
  %3781 = vmatprep.subr.mxu0 0.0
  %3782 = vmatpush2.msra.mxu0 0.0
  %3783 = vmatprep.subr.mxu0 0.0
  %3784 = vmatpush2.msra.mxu0 0.0
  %3785 = vmatprep.subr.mxu0 0.0
  %3786 = vmatpush2.msra.mxu0 0.0
  %3787 = vmatprep.subr.mxu0 0.0
  %3788 = vmatpush2.msra.mxu0 0.0
  %3789 = vmatprep.subr.mxu0 0.0
  %3790 = vmatpush2.msra.mxu0 0.0
  %3791 = vmatprep.mubr.f32.mxu0 0.0
  %3792 = vmatmul.mubr.f32.gmra.mxu0 %v3725
  %v3793 = vpop.f32.mrf.mxu0
  %v3794 = vadd.f32 0.0, %v3793
  %v3795 = vpop.f32.mrf.mxu0
  %3796 = vdwg.mxu0
  %v3798 = vsel %vm1997, %v3275, 0
  %3800 = vmatprep.subr.mxu0 0.0
  %3801 = vmatpush1.msra.mxu0 0.0
  %3802 = vmatprep.subr.mxu0 0.0
  %3803 = vmatpush1.msra.mxu0 0.0
  %3804 = vmatprep.subr.mxu0 0.0
  %3805 = vmatpush1.msra.mxu0 0.0
  %3806 = vmatprep.subr.mxu0 0.0
  %3807 = vmatpush1.msra.mxu0 0.0
  %3808 = vmatprep.subr.mxu0 0.0
  %3809 = vmatpush1.msra.mxu0 0.0
  %3810 = vmatprep.subr.mxu0 0.0
  %3811 = vmatpush1.msra.mxu0 0.0
  %3812 = vmatprep.subr.mxu0 0.0
  %3813 = vmatpush1.msra.mxu0 0.0
  %3814 = vmatprep.subr.mxu0 0.0
  %3815 = vmatpush1.msra.mxu0 0.0
  %3816 = vmatprep.subr.mxu0 0.0
  %3817 = vmatpush1.msra.mxu0 0.0
  %3818 = vmatprep.subr.mxu0 0.0
  %3819 = vmatpush1.msra.mxu0 0.0
  %3820 = vmatprep.subr.mxu0 0.0
  %3821 = vmatpush1.msra.mxu0 0.0
  %3822 = vmatprep.subr.mxu0 0.0
  %3823 = vmatpush1.msra.mxu0 0.0
  %3824 = vmatprep.subr.mxu0 0.0
  %3825 = vmatpush1.msra.mxu0 0.0
  %3826 = vmatprep.subr.mxu0 0.0
  %3827 = vmatpush1.msra.mxu0 0.0
  %3828 = vmatprep.subr.mxu0 0.0
  %3829 = vmatpush1.msra.mxu0 0.0
  %3830 = vmatprep.subr.mxu0 0.0
  %3831 = vmatpush1.msra.mxu0 %v3285
  %3832 = vmatprep.subr.mxu0 0.0
  %3833 = vmatpush2.msra.mxu0 0.0
  %3834 = vmatprep.subr.mxu0 0.0
  %3835 = vmatpush2.msra.mxu0 0.0
  %3836 = vmatprep.subr.mxu0 0.0
  %3837 = vmatpush2.msra.mxu0 0.0
  %3838 = vmatprep.subr.mxu0 0.0
  %3839 = vmatpush2.msra.mxu0 0.0
  %3840 = vmatprep.subr.mxu0 0.0
  %3841 = vmatpush2.msra.mxu0 0.0
  %3842 = vmatprep.subr.mxu0 0.0
  %3843 = vmatpush2.msra.mxu0 0.0
  %3844 = vmatprep.subr.mxu0 0.0
  %3845 = vmatpush2.msra.mxu0 0.0
  %3846 = vmatprep.subr.mxu0 0.0
  %3847 = vmatpush2.msra.mxu0 0.0
  %3848 = vmatprep.subr.mxu0 0.0
  %3849 = vmatpush2.msra.mxu0 0.0
  %3850 = vmatprep.subr.mxu0 0.0
  %3851 = vmatpush2.msra.mxu0 0.0
  %3852 = vmatprep.subr.mxu0 0.0
  %3853 = vmatpush2.msra.mxu0 0.0
  %3854 = vmatprep.subr.mxu0 0.0
  %3855 = vmatpush2.msra.mxu0 0.0
  %3856 = vmatprep.subr.mxu0 0.0
  %3857 = vmatpush2.msra.mxu0 0.0
  %3858 = vmatprep.subr.mxu0 0.0
  %3859 = vmatpush2.msra.mxu0 0.0
  %3860 = vmatprep.subr.mxu0 0.0
  %3861 = vmatpush2.msra.mxu0 0.0
  %3862 = vmatprep.subr.mxu0 0.0
  %3863 = vmatpush2.msra.mxu0 0.0
  %3864 = vmatprep.mubr.f32.mxu0 0.0
  %3865 = vmatmul.mubr.f32.gmra.mxu0 %v3798
  %v3866 = vpop.f32.mrf.mxu0
  %v3867 = vadd.f32 0.0, %v3866
  %v3868 = vpop.f32.mrf.mxu0
  %3869 = vdwg.mxu0
  %v3870 = vsel %vm310, %v3356, 0.0
  %v3871 = vsel %vm310, %v3429, 0.0
  %v3872 = vadd.f32 %v3870, %v3871
  %v3873 = vsel %vm310, %v3502, 0.0
  %v3874 = vadd.f32 %v3872, %v3873
  %v3875 = vsel %vm310, %v3575, 0.0
  %v3876 = vadd.f32 %v3874, %v3875
  %v3877 = vsel %vm310, %v3648, 0.0
  %v3878 = vsel %vm310, %v3721, 0.0
  %v3879 = vadd.f32 %v3877, %v3878
  %v3880 = vsel %vm310, %v3794, 0.0
  %v3881 = vadd.f32 %v3879, %v3880
  %v3882 = vsel %vm310, %v3867, 0.0
  %v3883 = vadd.f32 %v3881, %v3882
  %v3884 = vld [vmem:[%s4] sm:$0x1]
  %v3886 = vlaneseq
  %v3887 = vshrl.u32 %v3886, 7
  %v3888 = vsub.s32 0, %v3887
  %v3889 = vrot.slane %v3884, %v3888
  %v3891 = vadd.f32 %v3876, %v3889
  %v3892 = vadd.f32 %v3883, %v3889
  %v3893 = vadd.f32 %v44, %v3891
  %v3894 = vadd.f32 %v45, %v3892
  %v3895 = vld [vmem:[%s5] sm:$0x1]
  %v3896 = vld [vmem:[%s6] sm:$0x1]
  %v3897 = vsel %vm310, %v3893, 0.0
  %3898 = vadd.xlane.f32.xlu0 %v3897
  %v3899 = vpop.xlane.xlu0 %3898
  %v3900 = vsel %vm310, %v3894, 0.0
  %3901 = vadd.xlane.f32.xlu0 %v3900
  %v3902 = vpop.xlane.xlu0 %3901
  %v3903 = vrcp.pop 32.0
  %v3904 = vmul.f32 %v3899, %v3903
  %v3905 = vmul.f32 %v3902, %v3903
  %v3906 = vsub.f32 %v3893, %v3904
  %v3907 = vsub.f32 %v3894, %v3905
  %v3908 = vmul.f32 %v3906, %v3906
  %v3909 = vmul.f32 %v3907, %v3907
  %v3910 = vsel %vm310, %v3908, 0.0
  %3911 = vadd.xlane.f32.xlu0 %v3910
  %v3912 = vpop.xlane.xlu0 %3911
  %v3913 = vsel %vm310, %v3909, 0.0
  %3914 = vadd.xlane.f32.xlu0 %v3913
  %v3915 = vpop.xlane.xlu0 %3914
  %v3916 = vmul.f32 %v3912, %v3903
  %v3917 = vmul.f32 %v3915, %v3903
  %v3918 = vadd.f32 %v3916, 1e-05
  %v3919 = vadd.f32 %v3917, 1e-05
  %v3920 = vrsqrt.pop %v3918
  %v3921 = vrsqrt.pop %v3919
  %v3922 = vmul.f32 %v3906, %v3920
  %v3923 = vmul.f32 %v3907, %v3921
  %v3925 = vlaneseq
  %v3926 = vshrl.u32 %v3925, 7
  %v3927 = vsub.s32 0, %v3926
  %v3928 = vrot.slane %v3895, %v3927
  %v3930 = vmul.f32 %v3922, %v3928
  %v3931 = vmul.f32 %v3923, %v3928
  %v3933 = vlaneseq
  %v3934 = vshrl.u32 %v3933, 7
  %v3935 = vsub.s32 0, %v3934
  %v3936 = vrot.slane %v3896, %v3935
  %v3938 = vadd.f32 %v3930, %v3936
  %v3939 = vadd.f32 %v3931, %v3936
  %v3940 = vld [vmem:[%s7] sm:$0xff]
  %v3941 = vld [vmem:[%s7 + $0x8] sm:$0xff]
  %v3942 = vld [vmem:[%s7 + $0x10] sm:$0xff]
  %v3943 = vld [vmem:[%s7 + $0x18] sm:$0xff]
  %v3944 = vld [vmem:[%s8] sm:$0x1]
  %v3946 = vlaneseq
  %v3947 = vshrl.u32 %v3946, 7
  %v3948 = vsub.s32 0, %v3947
  %v3949 = vrot.slane %v3944, %v3948
  %v3952 = vsel %vm310, %v3938, 0
  %v3955 = vsel %vm310, %v3939, 0
  %3957 = vmatprep.subr.mxu0 0.0
  %3958 = vmatpush1.msra.mxu0 0.0
  %3959 = vmatprep.subr.mxu0 0.0
  %3960 = vmatpush1.msra.mxu0 0.0
  %3961 = vmatprep.subr.mxu0 0.0
  %3962 = vmatpush1.msra.mxu0 0.0
  %3963 = vmatprep.subr.mxu0 0.0
  %3964 = vmatpush1.msra.mxu0 0.0
  %3965 = vmatprep.subr.mxu0 0.0
  %3966 = vmatpush1.msra.mxu0 0.0
  %3967 = vmatprep.subr.mxu0 0.0
  %3968 = vmatpush1.msra.mxu0 0.0
  %3969 = vmatprep.subr.mxu0 0.0
  %3970 = vmatpush1.msra.mxu0 0.0
  %3971 = vmatprep.subr.mxu0 0.0
  %3972 = vmatpush1.msra.mxu0 0.0
  %3973 = vmatprep.subr.mxu0 0.0
  %3974 = vmatpush1.msra.mxu0 0.0
  %3975 = vmatprep.subr.mxu0 0.0
  %3976 = vmatpush1.msra.mxu0 0.0
  %3977 = vmatprep.subr.mxu0 0.0
  %3978 = vmatpush1.msra.mxu0 0.0
  %3979 = vmatprep.subr.mxu0 0.0
  %3980 = vmatpush1.msra.mxu0 0.0
  %3981 = vmatprep.subr.mxu0 0.0
  %3982 = vmatpush1.msra.mxu0 %v3943
  %3983 = vmatprep.subr.mxu0 0.0
  %3984 = vmatpush1.msra.mxu0 %v3942
  %3985 = vmatprep.subr.mxu0 0.0
  %3986 = vmatpush1.msra.mxu0 %v3941
  %3987 = vmatprep.subr.mxu0 0.0
  %3988 = vmatpush1.msra.mxu0 %v3940
  %3989 = vmatprep.subr.mxu0 0.0
  %3990 = vmatpush2.msra.mxu0 0.0
  %3991 = vmatprep.subr.mxu0 0.0
  %3992 = vmatpush2.msra.mxu0 0.0
  %3993 = vmatprep.subr.mxu0 0.0
  %3994 = vmatpush2.msra.mxu0 0.0
  %3995 = vmatprep.subr.mxu0 0.0
  %3996 = vmatpush2.msra.mxu0 0.0
  %3997 = vmatprep.subr.mxu0 0.0
  %3998 = vmatpush2.msra.mxu0 0.0
  %3999 = vmatprep.subr.mxu0 0.0
  %4000 = vmatpush2.msra.mxu0 0.0
  %4001 = vmatprep.subr.mxu0 0.0
  %4002 = vmatpush2.msra.mxu0 0.0
  %4003 = vmatprep.subr.mxu0 0.0
  %4004 = vmatpush2.msra.mxu0 0.0
  %4005 = vmatprep.subr.mxu0 0.0
  %4006 = vmatpush2.msra.mxu0 0.0
  %4007 = vmatprep.subr.mxu0 0.0
  %4008 = vmatpush2.msra.mxu0 0.0
  %4009 = vmatprep.subr.mxu0 0.0
  %4010 = vmatpush2.msra.mxu0 0.0
  %4011 = vmatprep.subr.mxu0 0.0
  %4012 = vmatpush2.msra.mxu0 0.0
  %4013 = vmatprep.subr.mxu0 0.0
  %4014 = vmatpush2.msra.mxu0 0.0
  %4015 = vmatprep.subr.mxu0 0.0
  %4016 = vmatpush2.msra.mxu0 0.0
  %4017 = vmatprep.subr.mxu0 0.0
  %4018 = vmatpush2.msra.mxu0 0.0
  %4019 = vmatprep.subr.mxu0 0.0
  %4020 = vmatpush2.msra.mxu0 0.0
  %4021 = vmatprep.mubr.f32.mxu0 0.0
  %4022 = vmatmul.mubr.f32.gmra.mxu0 %v3952
  %v4023 = vpop.f32.mrf.mxu0
  %v4024 = vadd.f32 %v3949, %v4023
  %v4025 = vpop.f32.mrf.mxu0
  %4026 = vmatprep.mubr.f32.mxu0 0.0
  %4027 = vmatmul.mubr.f32.gmra.mxu0 %v3955
  %v4028 = vpop.f32.mrf.mxu0
  %v4029 = vadd.f32 %v3949, %v4028
  %v4030 = vpop.f32.mrf.mxu0
  %4031 = vdwg.mxu0
  %v4032 = vmax.f32 %v4024, 0.0
  %v4033 = vmax.f32 %v4029, 0.0
  %v4034 = vld [vmem:[%s9] sm:$0xff]
  %v4035 = vld [vmem:[%s9 + $0x8] sm:$0xff]
  %v4036 = vld [vmem:[%s9 + $0x10] sm:$0xff]
  %v4037 = vld [vmem:[%s9 + $0x18] sm:$0xff]
  %v4038 = vld [vmem:[%s9 + $0x20] sm:$0xff]
  %v4039 = vld [vmem:[%s9 + $0x28] sm:$0xff]
  %v4040 = vld [vmem:[%s9 + $0x30] sm:$0xff]
  %v4041 = vld [vmem:[%s9 + $0x38] sm:$0xff]
  %v4042 = vld [vmem:[%s10] sm:$0x1]
  %v4044 = vlaneseq
  %v4045 = vshrl.u32 %v4044, 7
  %v4046 = vsub.s32 0, %v4045
  %v4047 = vrot.slane %v4042, %v4046
  %vm4049 = vcmask 523264
  %v4051 = vsel %vm4049, %v4032, 0
  %v4054 = vsel %vm4049, %v4033, 0
  %4056 = vmatprep.subr.mxu0 0.0
  %4057 = vmatpush1.msra.mxu0 0.0
  %4058 = vmatprep.subr.mxu0 0.0
  %4059 = vmatpush1.msra.mxu0 0.0
  %4060 = vmatprep.subr.mxu0 0.0
  %4061 = vmatpush1.msra.mxu0 0.0
  %4062 = vmatprep.subr.mxu0 0.0
  %4063 = vmatpush1.msra.mxu0 0.0
  %4064 = vmatprep.subr.mxu0 0.0
  %4065 = vmatpush1.msra.mxu0 0.0
  %4066 = vmatprep.subr.mxu0 0.0
  %4067 = vmatpush1.msra.mxu0 0.0
  %4068 = vmatprep.subr.mxu0 0.0
  %4069 = vmatpush1.msra.mxu0 0.0
  %4070 = vmatprep.subr.mxu0 0.0
  %4071 = vmatpush1.msra.mxu0 0.0
  %4072 = vmatprep.subr.mxu0 0.0
  %4073 = vmatpush1.msra.mxu0 %v4041
  %4074 = vmatprep.subr.mxu0 0.0
  %4075 = vmatpush1.msra.mxu0 %v4040
  %4076 = vmatprep.subr.mxu0 0.0
  %4077 = vmatpush1.msra.mxu0 %v4039
  %4078 = vmatprep.subr.mxu0 0.0
  %4079 = vmatpush1.msra.mxu0 %v4038
  %4080 = vmatprep.subr.mxu0 0.0
  %4081 = vmatpush1.msra.mxu0 %v4037
  %4082 = vmatprep.subr.mxu0 0.0
  %4083 = vmatpush1.msra.mxu0 %v4036
  %4084 = vmatprep.subr.mxu0 0.0
  %4085 = vmatpush1.msra.mxu0 %v4035
  %4086 = vmatprep.subr.mxu0 0.0
  %4087 = vmatpush1.msra.mxu0 %v4034
  %4088 = vmatprep.subr.mxu0 0.0
  %4089 = vmatpush2.msra.mxu0 0.0
  %4090 = vmatprep.subr.mxu0 0.0
  %4091 = vmatpush2.msra.mxu0 0.0
  %4092 = vmatprep.subr.mxu0 0.0
  %4093 = vmatpush2.msra.mxu0 0.0
  %4094 = vmatprep.subr.mxu0 0.0
  %4095 = vmatpush2.msra.mxu0 0.0
  %4096 = vmatprep.subr.mxu0 0.0
  %4097 = vmatpush2.msra.mxu0 0.0
  %4098 = vmatprep.subr.mxu0 0.0
  %4099 = vmatpush2.msra.mxu0 0.0
  %4100 = vmatprep.subr.mxu0 0.0
  %4101 = vmatpush2.msra.mxu0 0.0
  %4102 = vmatprep.subr.mxu0 0.0
  %4103 = vmatpush2.msra.mxu0 0.0
  %4104 = vmatprep.subr.mxu0 0.0
  %4105 = vmatpush2.msra.mxu0 0.0
  %4106 = vmatprep.subr.mxu0 0.0
  %4107 = vmatpush2.msra.mxu0 0.0
  %4108 = vmatprep.subr.mxu0 0.0
  %4109 = vmatpush2.msra.mxu0 0.0
  %4110 = vmatprep.subr.mxu0 0.0
  %4111 = vmatpush2.msra.mxu0 0.0
  %4112 = vmatprep.subr.mxu0 0.0
  %4113 = vmatpush2.msra.mxu0 0.0
  %4114 = vmatprep.subr.mxu0 0.0
  %4115 = vmatpush2.msra.mxu0 0.0
  %4116 = vmatprep.subr.mxu0 0.0
  %4117 = vmatpush2.msra.mxu0 0.0
  %4118 = vmatprep.subr.mxu0 0.0
  %4119 = vmatpush2.msra.mxu0 0.0
  %4120 = vmatprep.mubr.f32.mxu0 0.0
  %4121 = vmatmul.mubr.f32.gmra.mxu0 %v4051
  %v4122 = vpop.f32.mrf.mxu0
  %v4123 = vadd.f32 %v4047, %v4122
  %v4124 = vpop.f32.mrf.mxu0
  %4125 = vmatprep.mubr.f32.mxu0 0.0
  %4126 = vmatmul.mubr.f32.gmra.mxu0 %v4054
  %v4127 = vpop.f32.mrf.mxu0
  %v4128 = vadd.f32 %v4047, %v4127
  %v4129 = vpop.f32.mrf.mxu0
  %4130 = vdwg.mxu0
  %v4131 = vadd.f32 %v3938, %v4123
  %v4132 = vadd.f32 %v3939, %v4128
  %v4133 = vld [vmem:[%s11] sm:$0x1]
  %v4134 = vld [vmem:[%s12] sm:$0x1]
  %v4135 = vsel %vm310, %v4131, 0.0
  %4136 = vadd.xlane.f32.xlu0 %v4135
  %v4137 = vpop.xlane.xlu0 %4136
  %v4138 = vsel %vm310, %v4132, 0.0
  %4139 = vadd.xlane.f32.xlu0 %v4138
  %v4140 = vpop.xlane.xlu0 %4139
  %v4141 = vmul.f32 %v4137, %v3903
  %v4142 = vmul.f32 %v4140, %v3903
  %v4143 = vsub.f32 %v4131, %v4141
  %v4144 = vsub.f32 %v4132, %v4142
  %v4145 = vmul.f32 %v4143, %v4143
  %v4146 = vmul.f32 %v4144, %v4144
  %v4147 = vsel %vm310, %v4145, 0.0
  %4148 = vadd.xlane.f32.xlu0 %v4147
  %v4149 = vpop.xlane.xlu0 %4148
  %v4150 = vsel %vm310, %v4146, 0.0
  %4151 = vadd.xlane.f32.xlu0 %v4150
  %v4152 = vpop.xlane.xlu0 %4151
  %v4153 = vmul.f32 %v4149, %v3903
  %v4154 = vmul.f32 %v4152, %v3903
  %v4155 = vadd.f32 %v4153, 1e-05
  %v4156 = vadd.f32 %v4154, 1e-05
  %v4157 = vrsqrt.pop %v4155
  %v4158 = vrsqrt.pop %v4156
  %v4159 = vmul.f32 %v4143, %v4157
  %v4160 = vmul.f32 %v4144, %v4158
  %v4162 = vlaneseq
  %v4163 = vshrl.u32 %v4162, 7
  %v4164 = vsub.s32 0, %v4163
  %v4165 = vrot.slane %v4133, %v4164
  %v4167 = vmul.f32 %v4159, %v4165
  %v4168 = vmul.f32 %v4160, %v4165
  %v4170 = vlaneseq
  %v4171 = vshrl.u32 %v4170, 7
  %v4172 = vsub.s32 0, %v4171
  %v4173 = vrot.slane %v4134, %v4172
  %v4175 = vadd.f32 %v4167, %v4173
  %v4176 = vadd.f32 %v4168, %v4173
  %v4178 = vrot.slane %v4175, 4
  %4179 = vrot.lane.b32.xlu0 %v4178, 32
  %v4180 = vpop.permute.xlu0 %4179
  %4183 = vrot.lane.b32.xlu0 %v4176, 64
  %v4184 = vpop.permute.xlu0 %4183
  %v4186 = vrot.slane %v4176, 4
  %4187 = vrot.lane.b32.xlu0 %v4186, 96
  %v4188 = vpop.permute.xlu0 %4187
  %v4190 = vsel %vm310, %v4175, %v4180
  %v4191 = vsel %vm4049, %v4190, %v4184
  %vm4192 = vcmask 785408
  %v4193 = vsel %vm4192, %v4191, %v4188
  %4194 = vst [vmem:[%s13] sm:$0xf] %v4193
  // Predicated region
  $region54: #{transformer_sentence_encoder_layer.1} parent=0 // pred_check
    _
  $region55: #{transformer_sentence_encoder_layer.1} parent=0 // pred_check_branch
    %4196 = sbr.rel (0) target = $region57
  $region56: #{transformer_sentence_encoder_layer.1} parent=0 // pred_region
    _
  $region57: #{transformer_sentence_encoder_layer.1} parent=0 // pred_fallthru
    _
  // Predicated region
  $region58: #{transformer_sentence_encoder_layer.1} parent=0 // pred_check
    _
  $region59: #{transformer_sentence_encoder_layer.1} parent=0 // pred_check_branch
    %4198 = sbr.rel (0) target = $region61
  $region60: #{transformer_sentence_encoder_layer.1} parent=0 // pred_region
    _
  $region61: #{transformer_sentence_encoder_layer.1} parent=0 // pred_fallthru
    _

</llo_original>
